<compile_context>
chip_gen: v7x
topology: tpu7x:2x2x1
jax: 0.10.0
libtpu: 0.0.40
codegen_flags: <defaults>
</compile_context>

<pallas_src>
from functools import partial

import jax
import jax.numpy as jnp
from jax.experimental import pallas as pl
from jax.experimental.pallas import tpu as pltpu


def _round_up(x, m):
    return (x + m - 1) // m * m


def _sigmoid(x):
    # Single-transcendental sigmoid: tanh hits the EUP slot once; the mul/add
    # stay on the VPU.  Works in f32 or bf16 depending on x.dtype.
    return 0.5 * jnp.tanh(0.5 * x) + 0.5


def fasttext_mlp_kernel(x_ref, w1_ref, b1_ref, w2_ref, b2_ref, w3_ref, b3_ref,
                        out_ref, *, num_splits):
    # x_ref: [TB, E_pad] bf16 (already mean-pooled over the sequence).
    # Biases are stored in the activation dtype (bf16 on v6e/v7x, f32 on v5e),
    # which statically selects the elementwise precision below.
    w1 = w1_ref[...]
    w2 = w2_ref[...]
    w3 = w3_ref[...]
    b1 = b1_ref[...]
    b2 = b2_ref[...]
    b3 = b3_ref[...]

    rows = x_ref.shape[0]
    chunk = rows // num_splits

    # num_splits independent chains, unrolled into one basic block, so the LLO
    # scheduler can overlap the MXU work of one chunk with the EUP/VPU sigmoid
    # of the other.
    for s in range(num_splits):
        rs = pl.ds(s * chunk, chunk)
        x = x_ref[rs, :]                                              # bf16

        h1 = jnp.dot(x, w1, preferred_element_type=jnp.float32)      # MXU f32 acc
        h1 = _sigmoid(h1.astype(b1.dtype) + b1)                      # [chunk, 512]

        h2 = jnp.dot(h1.astype(jnp.bfloat16), w2,
                     preferred_element_type=jnp.float32)
        h2 = _sigmoid(h2.astype(b2.dtype) + b2)                      # [chunk, 2048]

        out = jnp.dot(h2.astype(jnp.bfloat16), w3,
                      preferred_element_type=jnp.float32)
        out_ref[rs, :] = out + b3                                    # f32, lane-dense


def prepare_params(params):
    """One-time conversion of f32 params into kernel-ready padded slabs.

    Call once and reuse the result across forward calls -- keeps the per-call
    path free of the ~5 MiB weight cast/pad traffic flagged in the review.
    """
    E, H1 = params["w1"].shape
    H2, C = params["w3"].shape
    E_pad = _round_up(E, 128)      # K-dim alignment for GEMM1
    C_pad = _round_up(C, 128)      # lane-dense output slab

    kind = jax.devices()[0].device_kind.lower()
    bf16_act = ("v6" in kind) or ("v7" in kind)   # bf16 VPU/EUP available
    act_dtype = jnp.bfloat16 if bf16_act else jnp.float32

    w1 = jnp.zeros((E_pad, H1), jnp.bfloat16).at[:E, :].set(
        params["w1"].astype(jnp.bfloat16))
    b1 = params["b1"].reshape(1, H1).astype(act_dtype)
    w2 = params["w2"].astype(jnp.bfloat16)
    b2 = params["b2"].reshape(1, H2).astype(act_dtype)
    w3 = jnp.zeros((H2, C_pad), jnp.bfloat16).at[:, :C].set(
        params["w3"].astype(jnp.bfloat16))
    b3 = jnp.zeros((1, C_pad), jnp.float32).at[:, :C].set(
        params["b3"].reshape(1, C).astype(jnp.float32))
    emb = params["embeddings"].astype(jnp.bfloat16)   # bf16 gather, f32 mean

    return {"emb": emb, "w1": w1, "b1": b1, "w2": w2, "b2": b2,
            "w3": w3, "b3": b3}


def _tile_config(B):
    """Static (trace-time) batch-tile selection, generation aware."""
    kind = jax.devices()[0].device_kind.lower()
    is_v6_plus = ("v6" in kind) or ("v7" in kind)
    tb_max = 512 if is_v6_plus else 256      # v5e: respect 16 MiB scoped VMEM
    num_tc = 2 if "v7" in kind else 1        # v7x: 2 TensorCores per chip

    b16 = _round_up(B, 16)                   # bf16 min sublane tile is 16
    # Enough grid steps to cover the batch AND (on v7x) to span both TCs.
    n_steps = max(pl.cdiv(b16, tb_max), num_tc if b16 > 16 else 1)
    tb = _round_up(pl.cdiv(b16, n_steps), 16)
    b_pad = n_steps * tb
    # Half-tile interleave only when each half still meets the (16,128) tile.
    num_splits = 2 if tb % 32 == 0 else 1
    return tb, b_pad, num_splits


@partial(jax.jit, static_argnames=("num_classes",))
def fasttext_forward(token_ids, prepped, *, num_classes):
    """token_ids: int32 [B, S]; returns float32 [B, num_classes] logits."""
    emb = prepped["emb"]                      # [V, E] bf16
    w1, b1 = prepped["w1"], prepped["b1"]
    w2, b2 = prepped["w2"], prepped["b2"]
    w3, b3 = prepped["w3"], prepped["b3"]

    B = token_ids.shape[0]
    E = emb.shape[1]
    E_pad, H1 = w1.shape
    H2, C_pad = w3.shape

    # Glue in XLA: bf16 gather + f32-accumulated mean (torch.mean(x, dim=1)).
    # The kernel only ever sees the pooled [B, E] activation.
    pooled = jnp.mean(jnp.take(emb, token_ids, axis=0), axis=1,
                      dtype=jnp.float32)                       # [B, E] f32

    TB, B_pad, num_splits = _tile_config(B)

    x = jnp.zeros((B_pad, E_pad), jnp.bfloat16)
    x = x.at[:B, :E].set(pooled.astype(jnp.bfloat16))

    out_padded = pl.pallas_call(
        partial(fasttext_mlp_kernel, num_splits=num_splits),
        out_shape=jax.ShapeDtypeStruct((B_pad, C_pad), jnp.float32),
        grid=(B_pad // TB,),
        in_specs=[
            pl.BlockSpec((TB, E_pad), lambda i: (i, 0)),   # batch-tiled input
            pl.BlockSpec((E_pad, H1), lambda i: (0, 0)),   # weights: VMEM-resident
            pl.BlockSpec((1, H1), lambda i: (0, 0)),
            pl.BlockSpec((H1, H2), lambda i: (0, 0)),
            pl.BlockSpec((1, H2), lambda i: (0, 0)),
            pl.BlockSpec((H2, C_pad), lambda i: (0, 0)),
            pl.BlockSpec((1, C_pad), lambda i: (0, 0)),
        ],
        out_specs=pl.BlockSpec((TB, C_pad), lambda i: (i, 0)),
        compiler_params=pltpu.CompilerParams(
            dimension_semantics=("parallel",),
        ),
    )(x, w1, b1, w2, b2, w3, b3)

    return out_padded[:B, :num_classes]


def fasttext_reference(token_ids, params):
    """Pure-JAX f32 reference matching the PyTorch forward (eval mode)."""
    x = jnp.take(params["embeddings"], token_ids, axis=0)
    pooled = jnp.mean(x, axis=1)
    h1 = jax.nn.sigmoid(pooled @ params["w1"] + params["b1"])
    h2 = jax.nn.sigmoid(h1 @ params["w2"] + params["b2"])
    return h2 @ params["w3"] + params["b3"]


def init_params(key, vocab_size, embedding_dim, num_classes):
    """Deterministic parameter init mimicking PyTorch defaults in shape."""
    k_emb, k1, kb1, k2, kb2, k3, kb3 = jax.random.split(key, 7)

    emb = jax.random.normal(k_emb, (vocab_size, embedding_dim), jnp.float32)
    emb = emb.at[0].set(0.0)  # padding_idx=0 row is zero

    def linear(kw, kb, fan_in, fan_out):
        bound = 1.0 / jnp.sqrt(fan_in)
        # stored as [in, out] (transposed vs torch's [out, in]) for row-major matmul
        w = jax.random.uniform(kw, (fan_in, fan_out), jnp.float32, -bound, bound)
        b = jax.random.uniform(kb, (1, fan_out), jnp.float32, -bound, bound)
        return w, b

    w1, b1 = linear(k1, kb1, embedding_dim, 512)
    w2, b2 = linear(k2, kb2, 512, 2048)
    w3, b3 = linear(k3, kb3, 2048, num_classes)

    return {"embeddings": emb,
            "w1": w1, "b1": b1,
            "w2": w2, "b2": b2,
            "w3": w3, "b3": b3}


if __name__ == "__main__":
    vocab_size = 50
    embedding_dim = 32
    num_classes = 4
    batch = 2
    seq_len = 8

    key = jax.random.PRNGKey(0)
    k_params, k_tokens = jax.random.split(key)

    params = init_params(k_params, vocab_size, embedding_dim, num_classes)
    token_ids = jax.random.randint(k_tokens, (batch, seq_len), 0, vocab_size,
                                   dtype=jnp.int32)

    prepped = prepare_params(params)   # one-time weight cast/pad (hoisted)

    out = fasttext_forward(token_ids, prepped, num_classes=num_classes)
    out = jax.block_until_ready(out)

    assert out.shape == (batch, num_classes)
    assert out.dtype == jnp.float32

    # bf16 weights/activations -> loose tolerance vs the f32 reference.
    ref = fasttext_reference(token_ids, params)
    assert jnp.allclose(out, ref, atol=5e-2, rtol=5e-2), (out, ref)

    print("KERNEL_OK")
</pallas_src>

<mosaic_0001>
module attributes {stable_mosaic.version = 11 : i64} {
  func.func @fasttext_mlp_kernel(%arg0: i32, %arg1: memref<16x128xbf16, #tpu.memory_space<vmem>>, %arg2: memref<128x512xbf16, #tpu.memory_space<vmem>>, %arg3: memref<1x512xf32, #tpu.memory_space<vmem>>, %arg4: memref<512x2048xbf16, #tpu.memory_space<vmem>>, %arg5: memref<1x2048xf32, #tpu.memory_space<vmem>>, %arg6: memref<2048x128xbf16, #tpu.memory_space<vmem>>, %arg7: memref<1x128xf32, #tpu.memory_space<vmem>>, %arg8: memref<16x128xf32, #tpu.memory_space<vmem>>) attributes {dimension_semantics = [#tpu.dimension_semantics<parallel>], iteration_bounds = array<i64: 1>, scalar_prefetch = 0 : i64, scratch_operands = 0 : i64, tpu.core_type = #tpu.core_type<tc>, window_params = [{transform_indices = @transform_0, window_bounds = array<i64: 16, 128>}, {pipeline_mode = #tpu.pipeline_mode<synchronous>, transform_indices = @transform_1, window_bounds = array<i64: 128, 512>}, {pipeline_mode = #tpu.pipeline_mode<synchronous>, transform_indices = @transform_2, window_bounds = array<i64: 1, 512>}, {pipeline_mode = #tpu.pipeline_mode<synchronous>, transform_indices = @transform_3, window_bounds = array<i64: 512, 2048>}, {pipeline_mode = #tpu.pipeline_mode<synchronous>, transform_indices = @transform_4, window_bounds = array<i64: 1, 2048>}, {pipeline_mode = #tpu.pipeline_mode<synchronous>, transform_indices = @transform_5, window_bounds = array<i64: 2048, 128>}, {pipeline_mode = #tpu.pipeline_mode<synchronous>, transform_indices = @transform_6, window_bounds = array<i64: 1, 128>}, {transform_indices = @transform_7, window_bounds = array<i64: 16, 128>}]} {
    %c0 = arith.constant 0 : index
    %c0_0 = arith.constant 0 : index
    %0 = vector.load %arg2[%c0, %c0_0] : memref<128x512xbf16, #tpu.memory_space<vmem>>, vector<128x512xbf16>
    %c0_1 = arith.constant 0 : index
    %c0_2 = arith.constant 0 : index
    %1 = vector.load %arg4[%c0_1, %c0_2] : memref<512x2048xbf16, #tpu.memory_space<vmem>>, vector<512x2048xbf16>
    %c0_3 = arith.constant 0 : index
    %c0_4 = arith.constant 0 : index
    %2 = vector.load %arg6[%c0_3, %c0_4] : memref<2048x128xbf16, #tpu.memory_space<vmem>>, vector<2048x128xbf16>
    %c0_5 = arith.constant 0 : index
    %c0_6 = arith.constant 0 : index
    %3 = vector.load %arg3[%c0_5, %c0_6] : memref<1x512xf32, #tpu.memory_space<vmem>>, vector<1x512xf32>
    %c0_7 = arith.constant 0 : index
    %c0_8 = arith.constant 0 : index
    %4 = vector.load %arg5[%c0_7, %c0_8] : memref<1x2048xf32, #tpu.memory_space<vmem>>, vector<1x2048xf32>
    %c0_9 = arith.constant 0 : index
    %c0_10 = arith.constant 0 : index
    %5 = vector.load %arg7[%c0_9, %c0_10] : memref<1x128xf32, #tpu.memory_space<vmem>>, vector<1x128xf32>
    %c0_11 = arith.constant 0 : index
    %c0_12 = arith.constant 0 : index
    %6 = vector.load %arg1[%c0_11, %c0_12] : memref<16x128xbf16, #tpu.memory_space<vmem>>, vector<16x128xbf16>
    %cst = arith.constant dense<0.000000e+00> : vector<16x512xf32>
    %7 = tpu.matmul %6, %0, %cst {dimension_numbers = #tpu.dot_dimension_numbers<[1], [0], [0], [1], [0, 0, 1, 1], [], []>} : vector<16x128xbf16>, vector<128x512xbf16>, vector<16x512xf32> -> vector<16x512xf32>
    %8 = vector.broadcast %3 : vector<1x512xf32> to vector<16x512xf32>
    %9 = arith.addf %7, %8 : vector<16x512xf32>
    %cst_13 = arith.constant 5.000000e-01 : f32
    %10 = vector.broadcast %cst_13 : f32 to vector<16x512xf32>
    %11 = arith.mulf %10, %9 : vector<16x512xf32>
    %12 = math.tanh %11 : vector<16x512xf32>
    %cst_14 = arith.constant 5.000000e-01 : f32
    %13 = vector.broadcast %cst_14 : f32 to vector<16x512xf32>
    %14 = arith.mulf %13, %12 : vector<16x512xf32>
    %cst_15 = arith.constant 5.000000e-01 : f32
    %15 = vector.broadcast %cst_15 : f32 to vector<16x512xf32>
    %16 = arith.addf %14, %15 : vector<16x512xf32>
    %17 = arith.truncf %16 : vector<16x512xf32> to vector<16x512xbf16>
    %cst_16 = arith.constant dense<0.000000e+00> : vector<16x2048xf32>
    %18 = tpu.matmul %17, %1, %cst_16 {dimension_numbers = #tpu.dot_dimension_numbers<[1], [0], [0], [1], [0, 0, 1, 1], [], []>} : vector<16x512xbf16>, vector<512x2048xbf16>, vector<16x2048xf32> -> vector<16x2048xf32>
    %19 = vector.broadcast %4 : vector<1x2048xf32> to vector<16x2048xf32>
    %20 = arith.addf %18, %19 : vector<16x2048xf32>
    %cst_17 = arith.constant 5.000000e-01 : f32
    %21 = vector.broadcast %cst_17 : f32 to vector<16x2048xf32>
    %22 = arith.mulf %21, %20 : vector<16x2048xf32>
    %23 = math.tanh %22 : vector<16x2048xf32>
    %cst_18 = arith.constant 5.000000e-01 : f32
    %24 = vector.broadcast %cst_18 : f32 to vector<16x2048xf32>
    %25 = arith.mulf %24, %23 : vector<16x2048xf32>
    %cst_19 = arith.constant 5.000000e-01 : f32
    %26 = vector.broadcast %cst_19 : f32 to vector<16x2048xf32>
    %27 = arith.addf %25, %26 : vector<16x2048xf32>
    %28 = arith.truncf %27 : vector<16x2048xf32> to vector<16x2048xbf16>
    %cst_20 = arith.constant dense<0.000000e+00> : vector<16x128xf32>
    %29 = tpu.matmul %28, %2, %cst_20 {dimension_numbers = #tpu.dot_dimension_numbers<[1], [0], [0], [1], [0, 0, 1, 1], [], []>} : vector<16x2048xbf16>, vector<2048x128xbf16>, vector<16x128xf32> -> vector<16x128xf32>
    %30 = vector.broadcast %5 : vector<1x128xf32> to vector<16x128xf32>
    %31 = arith.addf %29, %30 : vector<16x128xf32>
    %c0_21 = arith.constant 0 : index
    %c0_22 = arith.constant 0 : index
    %32 = vector.load %arg8[%c0_21, %c0_22] : memref<16x128xf32, #tpu.memory_space<vmem>>, vector<16x128xf32>
    tpu.vector_store %arg8[%c0_21, %c0_22], %31 {strides = array<i32>} : memref<16x128xf32, #tpu.memory_space<vmem>>, vector<16x128xf32>,
    return
  }
  func.func @transform_0(%arg0: i32) -> (i32, i32) {
    %c0_i32 = arith.constant 0 : i32
    %c0_i32_0 = arith.constant 0 : i32
    return %arg0, %c0_i32 : i32, i32
  }
  func.func @transform_1(%arg0: i32) -> (i32, i32) {
    %c0_i32 = arith.constant 0 : i32
    %c0_i32_0 = arith.constant 0 : i32
    %c0_i32_1 = arith.constant 0 : i32
    return %c0_i32, %c0_i32_0 : i32, i32
  }
  func.func @transform_2(%arg0: i32) -> (i32, i32) {
    %c0_i32 = arith.constant 0 : i32
    %c0_i32_0 = arith.constant 0 : i32
    %c0_i32_1 = arith.constant 0 : i32
    return %c0_i32, %c0_i32_0 : i32, i32
  }
  func.func @transform_3(%arg0: i32) -> (i32, i32) {
    %c0_i32 = arith.constant 0 : i32
    %c0_i32_0 = arith.constant 0 : i32
    %c0_i32_1 = arith.constant 0 : i32
    return %c0_i32, %c0_i32_0 : i32, i32
  }
  func.func @transform_4(%arg0: i32) -> (i32, i32) {
    %c0_i32 = arith.constant 0 : i32
    %c0_i32_0 = arith.constant 0 : i32
    %c0_i32_1 = arith.constant 0 : i32
    return %c0_i32, %c0_i32_0 : i32, i32
  }
  func.func @transform_5(%arg0: i32) -> (i32, i32) {
    %c0_i32 = arith.constant 0 : i32
    %c0_i32_0 = arith.constant 0 : i32
    %c0_i32_1 = arith.constant 0 : i32
    return %c0_i32, %c0_i32_0 : i32, i32
  }
  func.func @transform_6(%arg0: i32) -> (i32, i32) {
    %c0_i32 = arith.constant 0 : i32
    %c0_i32_0 = arith.constant 0 : i32
    %c0_i32_1 = arith.constant 0 : i32
    return %c0_i32, %c0_i32_0 : i32, i32
  }
  func.func @transform_7(%arg0: i32) -> (i32, i32) {
    %c0_i32 = arith.constant 0 : i32
    %c0_i32_0 = arith.constant 0 : i32
    return %arg0, %c0_i32 : i32, i32
  }
}

</mosaic_0001>

<llo_original>
// kernel: fasttext_forward.1
$region0: #{fasttext_forward.1}
  #allocation0 [shape = 'u32[]', space=smem, size = 0x4, offset = 0x4, fixed_abs, tag = 'smem constant byte address 0x4 - core index']
  #allocation1 [shape = 'u32[144,128]{1,0:T(1,128)}', space=vmem, size = 0x12000, scoped, tag = 'internal scratch']
  %s0 = inlined_call_operand.vmem [shape: bf16[16,128], index: 0, kind: input, shape index: {}]
  %s1 = inlined_call_operand.hbm [shape: bf16[128,512], index: 1, kind: input, shape index: {}]
  %s2 = inlined_call_operand.hbm [shape: f32[1,512], index: 2, kind: input, shape index: {}]
  %s3 = inlined_call_operand.hbm [shape: bf16[512,2048], index: 3, kind: input, shape index: {}]
  %s4 = inlined_call_operand.hbm [shape: f32[1,2048], index: 4, kind: input, shape index: {}]
  %s5 = inlined_call_operand.hbm [shape: bf16[2048,128], index: 5, kind: input, shape index: {}]
  %s6 = inlined_call_operand.hbm [shape: f32[1,128], index: 6, kind: input, shape index: {}]
  %s7 = inlined_call_operand.vmem [shape: f32[16,128], index: 7, kind: output, shape index: {}]
  %s8 = sld [smem:[#allocation0]]
  $region62: #{fasttext_forward.1} parent=0
    _
  %s10 = ssub.s32 1, %s8
  %s11 = scalar_select 0, %s10, %s8
  $region1: #{fasttext_forward.1} parent=0
    #allocation2 [shape = 'u8[131072]{0}', space=vmem, size = 0x20000, scoped, tag = 'input window, operand 1, single buffered']
    #allocation3 [shape = 's32[1]{0}', space=sflag, size = 0x4, scoped, tag = 'scoped memory for fasttext_forward.1']
    #allocation4 [shape = 'u8[2048]{0}', space=vmem, size = 0x800, scoped, tag = 'input window, operand 2, single buffered']
    #allocation5 [shape = 's32[1]{0}', space=sflag, size = 0x4, scoped, tag = 'scoped memory for fasttext_forward.1']
    #allocation6 [shape = 'u8[2097152]{0}', space=vmem, size = 0x200000, scoped, tag = 'input window, operand 3, single buffered']
    #allocation7 [shape = 'u8[8192]{0}', space=vmem, size = 0x2000, scoped, tag = 'input window, operand 4, single buffered']
    #allocation8 [shape = 's32[1]{0}', space=sflag, size = 0x4, scoped, tag = 'scoped memory for fasttext_forward.1']
    #allocation9 [shape = 'u8[524288]{0}', space=vmem, size = 0x80000, scoped, tag = 'input window, operand 5, single buffered']
    #allocation10 [shape = 'u8[512]{0}', space=vmem, size = 0x400, scoped, tag = 'input window, operand 6, single buffered']
    #allocation11 [shape = 's32[1]{0}', space=sflag, size = 0x4, scoped, tag = 'scoped memory for fasttext_forward.1']
    %12 = vsyncpa [#allocation3], 0
    %13 = vsyncpa [#allocation5], 0
    %14 = vsyncpa [#allocation8], 0
    %15 = vsyncpa [#allocation11], 0
    // Predicated region
    $region2: #{fasttext_forward.1} parent=1 // pred_check
      _
    $region3: #{fasttext_forward.1} parent=1 // pred_check_branch
      %17 = sbr.rel (0) target = $region5
    $region4: #{fasttext_forward.1} parent=1 // pred_region
      _
    $region5: #{fasttext_forward.1} parent=1 // pred_fallthru
      _
    // Predicated region
    $region6: #{fasttext_forward.1} parent=1 // pred_check
      _
    $region7: #{fasttext_forward.1} parent=1 // pred_check_branch
      %19 = sbr.rel (0) target = $region9
    $region8: #{fasttext_forward.1} parent=1 // pred_region
      %s21 = ssub.s32 4096, 4096
      %22 = vsyncadd [#allocation3], %s21
      %s23 = sshll.u32 [#allocation2], 4
      %s24 = int_to_ptr.vmem [resolvable:$true] %s23
      %29 = dma.hbm_to_vmem [thread:$0]  %s1, 4096, %s24, [#allocation3], 256, 256, 16
    $region9: #{fasttext_forward.1} parent=1 // pred_fallthru
      _
    // Predicated region
    $region10: #{fasttext_forward.1} parent=1 // pred_check
      _
    $region11: #{fasttext_forward.1} parent=1 // pred_check_branch
      %31 = sbr.rel (0) target = $region13
    $region12: #{fasttext_forward.1} parent=1 // pred_region
      %s33 = ssub.s32 64, 64
      %34 = vsyncadd [#allocation5], %s33
      %s36 = sshll.u32 [#allocation4], 4
      %s37 = int_to_ptr.vmem [resolvable:$true] %s36
      %39 = dma.hbm_to_vmem [thread:$0]  %s2, 64, %s37, [#allocation5]
    $region13: #{fasttext_forward.1} parent=1 // pred_fallthru
      _
    // Predicated region
    $region14: #{fasttext_forward.1} parent=1 // pred_check
      _
    $region15: #{fasttext_forward.1} parent=1 // pred_check_branch
      %41 = sbr.rel (0) target = $region17
    $region16: #{fasttext_forward.1} parent=1 // pred_region
      %s43 = ssub.s32 65536, 65536
      %44 = vsyncadd [#allocation5], %s43
      %s45 = sshll.u32 [#allocation6], 4
      %s46 = int_to_ptr.vmem [resolvable:$true] %s45
      %51 = dma.hbm_to_vmem [thread:$0]  %s3, 65536, %s46, [#allocation5], 1024, 1024, 64
    $region17: #{fasttext_forward.1} parent=1 // pred_fallthru
      _
    // Predicated region
    $region18: #{fasttext_forward.1} parent=1 // pred_check
      _
    $region19: #{fasttext_forward.1} parent=1 // pred_check_branch
      %53 = sbr.rel (0) target = $region21
    $region20: #{fasttext_forward.1} parent=1 // pred_region
      %s55 = ssub.s32 256, 256
      %56 = vsyncadd [#allocation8], %s55
      %s58 = sshll.u32 [#allocation7], 4
      %s59 = int_to_ptr.vmem [resolvable:$true] %s58
      %61 = dma.hbm_to_vmem [thread:$0]  %s4, 256, %s59, [#allocation8]
    $region21: #{fasttext_forward.1} parent=1 // pred_fallthru
      _
    // Predicated region
    $region22: #{fasttext_forward.1} parent=1 // pred_check
      _
    $region23: #{fasttext_forward.1} parent=1 // pred_check_branch
      %63 = sbr.rel (0) target = $region25
    $region24: #{fasttext_forward.1} parent=1 // pred_region
      %s65 = ssub.s32 16384, 16384
      %66 = vsyncadd [#allocation8], %s65
      %s67 = sshll.u32 [#allocation9], 4
      %s68 = int_to_ptr.vmem [resolvable:$true] %s67
      %73 = dma.hbm_to_vmem [thread:$0]  %s5, 16384, %s68, [#allocation8], 64, 64, 4
    $region25: #{fasttext_forward.1} parent=1 // pred_fallthru
      _
    // Predicated region
    $region26: #{fasttext_forward.1} parent=1 // pred_check
      _
    $region27: #{fasttext_forward.1} parent=1 // pred_check_branch
      %75 = sbr.rel (0) target = $region29
    $region28: #{fasttext_forward.1} parent=1 // pred_region
      %s77 = ssub.s32 16, 16
      %78 = vsyncadd [#allocation11], %s77
      %s80 = sshll.u32 [#allocation10], 4
      %s81 = int_to_ptr.vmem [resolvable:$true] %s80
      %83 = dma.hbm_to_vmem [thread:$0]  %s6, 16, %s81, [#allocation11]
    $region29: #{fasttext_forward.1} parent=1 // pred_fallthru
      _
    // Predicated region
    $region30: #{fasttext_forward.1} parent=1 // pred_check
      _
    $region31: #{fasttext_forward.1} parent=1 // pred_check_branch
      %85 = sbr.rel (0) target = $region33
    $region32: #{fasttext_forward.1} parent=1 // pred_region
      %86 = dma.done [#allocation3], 4096
    $region33: #{fasttext_forward.1} parent=1 // pred_fallthru
      _
    // Predicated region
    $region34: #{fasttext_forward.1} parent=1 // pred_check
      _
    $region35: #{fasttext_forward.1} parent=1 // pred_check_branch
      %88 = sbr.rel (0) target = $region37
    $region36: #{fasttext_forward.1} parent=1 // pred_region
      %89 = dma.done [#allocation5], 64
    $region37: #{fasttext_forward.1} parent=1 // pred_fallthru
      _
    // Predicated region
    $region38: #{fasttext_forward.1} parent=1 // pred_check
      _
    $region39: #{fasttext_forward.1} parent=1 // pred_check_branch
      %91 = sbr.rel (0) target = $region41
    $region40: #{fasttext_forward.1} parent=1 // pred_region
      %92 = dma.done [#allocation5], 65536
    $region41: #{fasttext_forward.1} parent=1 // pred_fallthru
      _
    // Predicated region
    $region42: #{fasttext_forward.1} parent=1 // pred_check
      _
    $region43: #{fasttext_forward.1} parent=1 // pred_check_branch
      %94 = sbr.rel (0) target = $region45
    $region44: #{fasttext_forward.1} parent=1 // pred_region
      %95 = dma.done [#allocation8], 256
    $region45: #{fasttext_forward.1} parent=1 // pred_fallthru
      _
    // Predicated region
    $region46: #{fasttext_forward.1} parent=1 // pred_check
      _
    $region47: #{fasttext_forward.1} parent=1 // pred_check_branch
      %97 = sbr.rel (0) target = $region49
    $region48: #{fasttext_forward.1} parent=1 // pred_region
      %98 = dma.done [#allocation8], 16384
    $region49: #{fasttext_forward.1} parent=1 // pred_fallthru
      _
    // Predicated region
    $region50: #{fasttext_forward.1} parent=1 // pred_check
      _
    $region51: #{fasttext_forward.1} parent=1 // pred_check_branch
      %100 = sbr.rel (0) target = $region53
    $region52: #{fasttext_forward.1} parent=1 // pred_region
      %101 = dma.done [#allocation11], 16
    $region53: #{fasttext_forward.1} parent=1 // pred_fallthru
      _
    %v103 = vld [vmem:[#allocation2] sm:$0xff]
    %v104 = vld [vmem:[#allocation2 + $0x8] sm:$0xff]
    %v105 = vld [vmem:[#allocation2 + $0x10] sm:$0xff]
    %v106 = vld [vmem:[#allocation2 + $0x18] sm:$0xff]
    %v107 = vld [vmem:[#allocation2 + $0x20] sm:$0xff]
    %v108 = vld [vmem:[#allocation2 + $0x28] sm:$0xff]
    %v109 = vld [vmem:[#allocation2 + $0x30] sm:$0xff]
    %v110 = vld [vmem:[#allocation2 + $0x38] sm:$0xff]
    %v111 = vld [vmem:[#allocation2 + $0x40] sm:$0xff]
    %v112 = vld [vmem:[#allocation2 + $0x48] sm:$0xff]
    %v113 = vld [vmem:[#allocation2 + $0x50] sm:$0xff]
    %v114 = vld [vmem:[#allocation2 + $0x58] sm:$0xff]
    %v115 = vld [vmem:[#allocation2 + $0x60] sm:$0xff]
    %v116 = vld [vmem:[#allocation2 + $0x68] sm:$0xff]
    %v117 = vld [vmem:[#allocation2 + $0x70] sm:$0xff]
    %v118 = vld [vmem:[#allocation2 + $0x78] sm:$0xff]
    %v119 = vld [vmem:[#allocation2 + $0x80] sm:$0xff]
    %v120 = vld [vmem:[#allocation2 + $0x88] sm:$0xff]
    %v121 = vld [vmem:[#allocation2 + $0x90] sm:$0xff]
    %v122 = vld [vmem:[#allocation2 + $0x98] sm:$0xff]
    %v123 = vld [vmem:[#allocation2 + $0xa0] sm:$0xff]
    %v124 = vld [vmem:[#allocation2 + $0xa8] sm:$0xff]
    %v125 = vld [vmem:[#allocation2 + $0xb0] sm:$0xff]
    %v126 = vld [vmem:[#allocation2 + $0xb8] sm:$0xff]
    %v127 = vld [vmem:[#allocation2 + $0xc0] sm:$0xff]
    %v128 = vld [vmem:[#allocation2 + $0xc8] sm:$0xff]
    %v129 = vld [vmem:[#allocation2 + $0xd0] sm:$0xff]
    %v130 = vld [vmem:[#allocation2 + $0xd8] sm:$0xff]
    %v131 = vld [vmem:[#allocation2 + $0xe0] sm:$0xff]
    %v132 = vld [vmem:[#allocation2 + $0xe8] sm:$0xff]
    %v133 = vld [vmem:[#allocation2 + $0xf0] sm:$0xff]
    %v134 = vld [vmem:[#allocation2 + $0xf8] sm:$0xff]
    %v135 = vld [vmem:[#allocation6] sm:$0xff]
    %v136 = vld [vmem:[#allocation6 + $0x8] sm:$0xff]
    %v137 = vld [vmem:[#allocation6 + $0x10] sm:$0xff]
    %v138 = vld [vmem:[#allocation6 + $0x18] sm:$0xff]
    %v139 = vld [vmem:[#allocation6 + $0x20] sm:$0xff]
    %v140 = vld [vmem:[#allocation6 + $0x28] sm:$0xff]
    %v141 = vld [vmem:[#allocation6 + $0x30] sm:$0xff]
    %v142 = vld [vmem:[#allocation6 + $0x38] sm:$0xff]
    %v143 = vld [vmem:[#allocation6 + $0x40] sm:$0xff]
    %v144 = vld [vmem:[#allocation6 + $0x48] sm:$0xff]
    %v145 = vld [vmem:[#allocation6 + $0x50] sm:$0xff]
    %v146 = vld [vmem:[#allocation6 + $0x58] sm:$0xff]
    %v147 = vld [vmem:[#allocation6 + $0x60] sm:$0xff]
    %v148 = vld [vmem:[#allocation6 + $0x68] sm:$0xff]
    %v149 = vld [vmem:[#allocation6 + $0x70] sm:$0xff]
    %v150 = vld [vmem:[#allocation6 + $0x78] sm:$0xff]
    %v151 = vld [vmem:[#allocation6 + $0x80] sm:$0xff]
    %v152 = vld [vmem:[#allocation6 + $0x88] sm:$0xff]
    %v153 = vld [vmem:[#allocation6 + $0x90] sm:$0xff]
    %v154 = vld [vmem:[#allocation6 + $0x98] sm:$0xff]
    %v155 = vld [vmem:[#allocation6 + $0xa0] sm:$0xff]
    %v156 = vld [vmem:[#allocation6 + $0xa8] sm:$0xff]
    %v157 = vld [vmem:[#allocation6 + $0xb0] sm:$0xff]
    %v158 = vld [vmem:[#allocation6 + $0xb8] sm:$0xff]
    %v159 = vld [vmem:[#allocation6 + $0xc0] sm:$0xff]
    %v160 = vld [vmem:[#allocation6 + $0xc8] sm:$0xff]
    %v161 = vld [vmem:[#allocation6 + $0xd0] sm:$0xff]
    %v162 = vld [vmem:[#allocation6 + $0xd8] sm:$0xff]
    %v163 = vld [vmem:[#allocation6 + $0xe0] sm:$0xff]
    %v164 = vld [vmem:[#allocation6 + $0xe8] sm:$0xff]
    %v165 = vld [vmem:[#allocation6 + $0xf0] sm:$0xff]
    %v166 = vld [vmem:[#allocation6 + $0xf8] sm:$0xff]
    %v167 = vld [vmem:[#allocation6 + $0x100] sm:$0xff]
    %v168 = vld [vmem:[#allocation6 + $0x108] sm:$0xff]
    %v169 = vld [vmem:[#allocation6 + $0x110] sm:$0xff]
    %v170 = vld [vmem:[#allocation6 + $0x118] sm:$0xff]
    %v171 = vld [vmem:[#allocation6 + $0x120] sm:$0xff]
    %v172 = vld [vmem:[#allocation6 + $0x128] sm:$0xff]
    %v173 = vld [vmem:[#allocation6 + $0x130] sm:$0xff]
    %v174 = vld [vmem:[#allocation6 + $0x138] sm:$0xff]
    %v175 = vld [vmem:[#allocation6 + $0x140] sm:$0xff]
    %v176 = vld [vmem:[#allocation6 + $0x148] sm:$0xff]
    %v177 = vld [vmem:[#allocation6 + $0x150] sm:$0xff]
    %v178 = vld [vmem:[#allocation6 + $0x158] sm:$0xff]
    %v179 = vld [vmem:[#allocation6 + $0x160] sm:$0xff]
    %v180 = vld [vmem:[#allocation6 + $0x168] sm:$0xff]
    %v181 = vld [vmem:[#allocation6 + $0x170] sm:$0xff]
    %v182 = vld [vmem:[#allocation6 + $0x178] sm:$0xff]
    %v183 = vld [vmem:[#allocation6 + $0x180] sm:$0xff]
    %v184 = vld [vmem:[#allocation6 + $0x188] sm:$0xff]
    %v185 = vld [vmem:[#allocation6 + $0x190] sm:$0xff]
    %v186 = vld [vmem:[#allocation6 + $0x198] sm:$0xff]
    %v187 = vld [vmem:[#allocation6 + $0x1a0] sm:$0xff]
    %v188 = vld [vmem:[#allocation6 + $0x1a8] sm:$0xff]
    %v189 = vld [vmem:[#allocation6 + $0x1b0] sm:$0xff]
    %v190 = vld [vmem:[#allocation6 + $0x1b8] sm:$0xff]
    %v191 = vld [vmem:[#allocation6 + $0x1c0] sm:$0xff]
    %v192 = vld [vmem:[#allocation6 + $0x1c8] sm:$0xff]
    %v193 = vld [vmem:[#allocation6 + $0x1d0] sm:$0xff]
    %v194 = vld [vmem:[#allocation6 + $0x1d8] sm:$0xff]
    %v195 = vld [vmem:[#allocation6 + $0x1e0] sm:$0xff]
    %v196 = vld [vmem:[#allocation6 + $0x1e8] sm:$0xff]
    %v197 = vld [vmem:[#allocation6 + $0x1f0] sm:$0xff]
    %v198 = vld [vmem:[#allocation6 + $0x1f8] sm:$0xff]
    %v199 = vld [vmem:[#allocation6 + $0x200] sm:$0xff]
    %v200 = vld [vmem:[#allocation6 + $0x208] sm:$0xff]
    %v201 = vld [vmem:[#allocation6 + $0x210] sm:$0xff]
    %v202 = vld [vmem:[#allocation6 + $0x218] sm:$0xff]
    %v203 = vld [vmem:[#allocation6 + $0x220] sm:$0xff]
    %v204 = vld [vmem:[#allocation6 + $0x228] sm:$0xff]
    %v205 = vld [vmem:[#allocation6 + $0x230] sm:$0xff]
    %v206 = vld [vmem:[#allocation6 + $0x238] sm:$0xff]
    %v207 = vld [vmem:[#allocation6 + $0x240] sm:$0xff]
    %v208 = vld [vmem:[#allocation6 + $0x248] sm:$0xff]
    %v209 = vld [vmem:[#allocation6 + $0x250] sm:$0xff]
    %v210 = vld [vmem:[#allocation6 + $0x258] sm:$0xff]
    %v211 = vld [vmem:[#allocation6 + $0x260] sm:$0xff]
    %v212 = vld [vmem:[#allocation6 + $0x268] sm:$0xff]
    %v213 = vld [vmem:[#allocation6 + $0x270] sm:$0xff]
    %v214 = vld [vmem:[#allocation6 + $0x278] sm:$0xff]
    %v215 = vld [vmem:[#allocation6 + $0x280] sm:$0xff]
    %v216 = vld [vmem:[#allocation6 + $0x288] sm:$0xff]
    %v217 = vld [vmem:[#allocation6 + $0x290] sm:$0xff]
    %v218 = vld [vmem:[#allocation6 + $0x298] sm:$0xff]
    %v219 = vld [vmem:[#allocation6 + $0x2a0] sm:$0xff]
    %v220 = vld [vmem:[#allocation6 + $0x2a8] sm:$0xff]
    %v221 = vld [vmem:[#allocation6 + $0x2b0] sm:$0xff]
    %v222 = vld [vmem:[#allocation6 + $0x2b8] sm:$0xff]
    %v223 = vld [vmem:[#allocation6 + $0x2c0] sm:$0xff]
    %v224 = vld [vmem:[#allocation6 + $0x2c8] sm:$0xff]
    %v225 = vld [vmem:[#allocation6 + $0x2d0] sm:$0xff]
    %v226 = vld [vmem:[#allocation6 + $0x2d8] sm:$0xff]
    %v227 = vld [vmem:[#allocation6 + $0x2e0] sm:$0xff]
    %v228 = vld [vmem:[#allocation6 + $0x2e8] sm:$0xff]
    %v229 = vld [vmem:[#allocation6 + $0x2f0] sm:$0xff]
    %v230 = vld [vmem:[#allocation6 + $0x2f8] sm:$0xff]
    %v231 = vld [vmem:[#allocation6 + $0x300] sm:$0xff]
    %v232 = vld [vmem:[#allocation6 + $0x308] sm:$0xff]
    %v233 = vld [vmem:[#allocation6 + $0x310] sm:$0xff]
    %v234 = vld [vmem:[#allocation6 + $0x318] sm:$0xff]
    %v235 = vld [vmem:[#allocation6 + $0x320] sm:$0xff]
    %v236 = vld [vmem:[#allocation6 + $0x328] sm:$0xff]
    %v237 = vld [vmem:[#allocation6 + $0x330] sm:$0xff]
    %v238 = vld [vmem:[#allocation6 + $0x338] sm:$0xff]
    %v239 = vld [vmem:[#allocation6 + $0x340] sm:$0xff]
    %v240 = vld [vmem:[#allocation6 + $0x348] sm:$0xff]
    %v241 = vld [vmem:[#allocation6 + $0x350] sm:$0xff]
    %v242 = vld [vmem:[#allocation6 + $0x358] sm:$0xff]
    %v243 = vld [vmem:[#allocation6 + $0x360] sm:$0xff]
    %v244 = vld [vmem:[#allocation6 + $0x368] sm:$0xff]
    %v245 = vld [vmem:[#allocation6 + $0x370] sm:$0xff]
    %v246 = vld [vmem:[#allocation6 + $0x378] sm:$0xff]
    %v247 = vld [vmem:[#allocation6 + $0x380] sm:$0xff]
    %v248 = vld [vmem:[#allocation6 + $0x388] sm:$0xff]
    %v249 = vld [vmem:[#allocation6 + $0x390] sm:$0xff]
    %v250 = vld [vmem:[#allocation6 + $0x398] sm:$0xff]
    %v251 = vld [vmem:[#allocation6 + $0x3a0] sm:$0xff]
    %v252 = vld [vmem:[#allocation6 + $0x3a8] sm:$0xff]
    %v253 = vld [vmem:[#allocation6 + $0x3b0] sm:$0xff]
    %v254 = vld [vmem:[#allocation6 + $0x3b8] sm:$0xff]
    %v255 = vld [vmem:[#allocation6 + $0x3c0] sm:$0xff]
    %v256 = vld [vmem:[#allocation6 + $0x3c8] sm:$0xff]
    %v257 = vld [vmem:[#allocation6 + $0x3d0] sm:$0xff]
    %v258 = vld [vmem:[#allocation6 + $0x3d8] sm:$0xff]
    %v259 = vld [vmem:[#allocation6 + $0x3e0] sm:$0xff]
    %v260 = vld [vmem:[#allocation6 + $0x3e8] sm:$0xff]
    %v261 = vld [vmem:[#allocation6 + $0x3f0] sm:$0xff]
    %v262 = vld [vmem:[#allocation6 + $0x3f8] sm:$0xff]
    %v263 = vld [vmem:[#allocation6 + $0x400] sm:$0xff]
    %v264 = vld [vmem:[#allocation6 + $0x408] sm:$0xff]
    %v265 = vld [vmem:[#allocation6 + $0x410] sm:$0xff]
    %v266 = vld [vmem:[#allocation6 + $0x418] sm:$0xff]
    %v267 = vld [vmem:[#allocation6 + $0x420] sm:$0xff]
    %v268 = vld [vmem:[#allocation6 + $0x428] sm:$0xff]
    %v269 = vld [vmem:[#allocation6 + $0x430] sm:$0xff]
    %v270 = vld [vmem:[#allocation6 + $0x438] sm:$0xff]
    %v271 = vld [vmem:[#allocation6 + $0x440] sm:$0xff]
    %v272 = vld [vmem:[#allocation6 + $0x448] sm:$0xff]
    %v273 = vld [vmem:[#allocation6 + $0x450] sm:$0xff]
    %v274 = vld [vmem:[#allocation6 + $0x458] sm:$0xff]
    %v275 = vld [vmem:[#allocation6 + $0x460] sm:$0xff]
    %v276 = vld [vmem:[#allocation6 + $0x468] sm:$0xff]
    %v277 = vld [vmem:[#allocation6 + $0x470] sm:$0xff]
    %v278 = vld [vmem:[#allocation6 + $0x478] sm:$0xff]
    %v279 = vld [vmem:[#allocation6 + $0x480] sm:$0xff]
    %v280 = vld [vmem:[#allocation6 + $0x488] sm:$0xff]
    %v281 = vld [vmem:[#allocation6 + $0x490] sm:$0xff]
    %v282 = vld [vmem:[#allocation6 + $0x498] sm:$0xff]
    %v283 = vld [vmem:[#allocation6 + $0x4a0] sm:$0xff]
    %v284 = vld [vmem:[#allocation6 + $0x4a8] sm:$0xff]
    %v285 = vld [vmem:[#allocation6 + $0x4b0] sm:$0xff]
    %v286 = vld [vmem:[#allocation6 + $0x4b8] sm:$0xff]
    %v287 = vld [vmem:[#allocation6 + $0x4c0] sm:$0xff]
    %v288 = vld [vmem:[#allocation6 + $0x4c8] sm:$0xff]
    %v289 = vld [vmem:[#allocation6 + $0x4d0] sm:$0xff]
    %v290 = vld [vmem:[#allocation6 + $0x4d8] sm:$0xff]
    %v291 = vld [vmem:[#allocation6 + $0x4e0] sm:$0xff]
    %v292 = vld [vmem:[#allocation6 + $0x4e8] sm:$0xff]
    %v293 = vld [vmem:[#allocation6 + $0x4f0] sm:$0xff]
    %v294 = vld [vmem:[#allocation6 + $0x4f8] sm:$0xff]
    %v295 = vld [vmem:[#allocation6 + $0x500] sm:$0xff]
    %v296 = vld [vmem:[#allocation6 + $0x508] sm:$0xff]
    %v297 = vld [vmem:[#allocation6 + $0x510] sm:$0xff]
    %v298 = vld [vmem:[#allocation6 + $0x518] sm:$0xff]
    %v299 = vld [vmem:[#allocation6 + $0x520] sm:$0xff]
    %v300 = vld [vmem:[#allocation6 + $0x528] sm:$0xff]
    %v301 = vld [vmem:[#allocation6 + $0x530] sm:$0xff]
    %v302 = vld [vmem:[#allocation6 + $0x538] sm:$0xff]
    %v303 = vld [vmem:[#allocation6 + $0x540] sm:$0xff]
    %v304 = vld [vmem:[#allocation6 + $0x548] sm:$0xff]
    %v305 = vld [vmem:[#allocation6 + $0x550] sm:$0xff]
    %v306 = vld [vmem:[#allocation6 + $0x558] sm:$0xff]
    %v307 = vld [vmem:[#allocation6 + $0x560] sm:$0xff]
    %v308 = vld [vmem:[#allocation6 + $0x568] sm:$0xff]
    %v309 = vld [vmem:[#allocation6 + $0x570] sm:$0xff]
    %v310 = vld [vmem:[#allocation6 + $0x578] sm:$0xff]
    %v311 = vld [vmem:[#allocation6 + $0x580] sm:$0xff]
    %v312 = vld [vmem:[#allocation6 + $0x588] sm:$0xff]
    %v313 = vld [vmem:[#allocation6 + $0x590] sm:$0xff]
    %v314 = vld [vmem:[#allocation6 + $0x598] sm:$0xff]
    %v315 = vld [vmem:[#allocation6 + $0x5a0] sm:$0xff]
    %v316 = vld [vmem:[#allocation6 + $0x5a8] sm:$0xff]
    %v317 = vld [vmem:[#allocation6 + $0x5b0] sm:$0xff]
    %v318 = vld [vmem:[#allocation6 + $0x5b8] sm:$0xff]
    %v319 = vld [vmem:[#allocation6 + $0x5c0] sm:$0xff]
    %v320 = vld [vmem:[#allocation6 + $0x5c8] sm:$0xff]
    %v321 = vld [vmem:[#allocation6 + $0x5d0] sm:$0xff]
    %v322 = vld [vmem:[#allocation6 + $0x5d8] sm:$0xff]
    %v323 = vld [vmem:[#allocation6 + $0x5e0] sm:$0xff]
    %v324 = vld [vmem:[#allocation6 + $0x5e8] sm:$0xff]
    %v325 = vld [vmem:[#allocation6 + $0x5f0] sm:$0xff]
    %v326 = vld [vmem:[#allocation6 + $0x5f8] sm:$0xff]
    %v327 = vld [vmem:[#allocation6 + $0x600] sm:$0xff]
    %v328 = vld [vmem:[#allocation6 + $0x608] sm:$0xff]
    %v329 = vld [vmem:[#allocation6 + $0x610] sm:$0xff]
    %v330 = vld [vmem:[#allocation6 + $0x618] sm:$0xff]
    %v331 = vld [vmem:[#allocation6 + $0x620] sm:$0xff]
    %v332 = vld [vmem:[#allocation6 + $0x628] sm:$0xff]
    %v333 = vld [vmem:[#allocation6 + $0x630] sm:$0xff]
    %v334 = vld [vmem:[#allocation6 + $0x638] sm:$0xff]
    %v335 = vld [vmem:[#allocation6 + $0x640] sm:$0xff]
    %v336 = vld [vmem:[#allocation6 + $0x648] sm:$0xff]
    %v337 = vld [vmem:[#allocation6 + $0x650] sm:$0xff]
    %v338 = vld [vmem:[#allocation6 + $0x658] sm:$0xff]
    %v339 = vld [vmem:[#allocation6 + $0x660] sm:$0xff]
    %v340 = vld [vmem:[#allocation6 + $0x668] sm:$0xff]
    %v341 = vld [vmem:[#allocation6 + $0x670] sm:$0xff]
    %v342 = vld [vmem:[#allocation6 + $0x678] sm:$0xff]
    %v343 = vld [vmem:[#allocation6 + $0x680] sm:$0xff]
    %v344 = vld [vmem:[#allocation6 + $0x688] sm:$0xff]
    %v345 = vld [vmem:[#allocation6 + $0x690] sm:$0xff]
    %v346 = vld [vmem:[#allocation6 + $0x698] sm:$0xff]
    %v347 = vld [vmem:[#allocation6 + $0x6a0] sm:$0xff]
    %v348 = vld [vmem:[#allocation6 + $0x6a8] sm:$0xff]
    %v349 = vld [vmem:[#allocation6 + $0x6b0] sm:$0xff]
    %v350 = vld [vmem:[#allocation6 + $0x6b8] sm:$0xff]
    %v351 = vld [vmem:[#allocation6 + $0x6c0] sm:$0xff]
    %v352 = vld [vmem:[#allocation6 + $0x6c8] sm:$0xff]
    %v353 = vld [vmem:[#allocation6 + $0x6d0] sm:$0xff]
    %v354 = vld [vmem:[#allocation6 + $0x6d8] sm:$0xff]
    %v355 = vld [vmem:[#allocation6 + $0x6e0] sm:$0xff]
    %v356 = vld [vmem:[#allocation6 + $0x6e8] sm:$0xff]
    %v357 = vld [vmem:[#allocation6 + $0x6f0] sm:$0xff]
    %v358 = vld [vmem:[#allocation6 + $0x6f8] sm:$0xff]
    %v359 = vld [vmem:[#allocation6 + $0x700] sm:$0xff]
    %v360 = vld [vmem:[#allocation6 + $0x708] sm:$0xff]
    %v361 = vld [vmem:[#allocation6 + $0x710] sm:$0xff]
    %v362 = vld [vmem:[#allocation6 + $0x718] sm:$0xff]
    %v363 = vld [vmem:[#allocation6 + $0x720] sm:$0xff]
    %v364 = vld [vmem:[#allocation6 + $0x728] sm:$0xff]
    %v365 = vld [vmem:[#allocation6 + $0x730] sm:$0xff]
    %v366 = vld [vmem:[#allocation6 + $0x738] sm:$0xff]
    %v367 = vld [vmem:[#allocation6 + $0x740] sm:$0xff]
    %v368 = vld [vmem:[#allocation6 + $0x748] sm:$0xff]
    %v369 = vld [vmem:[#allocation6 + $0x750] sm:$0xff]
    %v370 = vld [vmem:[#allocation6 + $0x758] sm:$0xff]
    %v371 = vld [vmem:[#allocation6 + $0x760] sm:$0xff]
    %v372 = vld [vmem:[#allocation6 + $0x768] sm:$0xff]
    %v373 = vld [vmem:[#allocation6 + $0x770] sm:$0xff]
    %v374 = vld [vmem:[#allocation6 + $0x778] sm:$0xff]
    %v375 = vld [vmem:[#allocation6 + $0x780] sm:$0xff]
    %v376 = vld [vmem:[#allocation6 + $0x788] sm:$0xff]
    %v377 = vld [vmem:[#allocation6 + $0x790] sm:$0xff]
    %v378 = vld [vmem:[#allocation6 + $0x798] sm:$0xff]
    %v379 = vld [vmem:[#allocation6 + $0x7a0] sm:$0xff]
    %v380 = vld [vmem:[#allocation6 + $0x7a8] sm:$0xff]
    %v381 = vld [vmem:[#allocation6 + $0x7b0] sm:$0xff]
    %v382 = vld [vmem:[#allocation6 + $0x7b8] sm:$0xff]
    %v383 = vld [vmem:[#allocation6 + $0x7c0] sm:$0xff]
    %v384 = vld [vmem:[#allocation6 + $0x7c8] sm:$0xff]
    %v385 = vld [vmem:[#allocation6 + $0x7d0] sm:$0xff]
    %v386 = vld [vmem:[#allocation6 + $0x7d8] sm:$0xff]
    %v387 = vld [vmem:[#allocation6 + $0x7e0] sm:$0xff]
    %v388 = vld [vmem:[#allocation6 + $0x7e8] sm:$0xff]
    %v389 = vld [vmem:[#allocation6 + $0x7f0] sm:$0xff]
    %v390 = vld [vmem:[#allocation6 + $0x7f8] sm:$0xff]
    %v391 = vld [vmem:[#allocation6 + $0x800] sm:$0xff]
    %v392 = vld [vmem:[#allocation6 + $0x808] sm:$0xff]
    %v393 = vld [vmem:[#allocation6 + $0x810] sm:$0xff]
    %v394 = vld [vmem:[#allocation6 + $0x818] sm:$0xff]
    %v395 = vld [vmem:[#allocation6 + $0x820] sm:$0xff]
    %v396 = vld [vmem:[#allocation6 + $0x828] sm:$0xff]
    %v397 = vld [vmem:[#allocation6 + $0x830] sm:$0xff]
    %v398 = vld [vmem:[#allocation6 + $0x838] sm:$0xff]
    %v399 = vld [vmem:[#allocation6 + $0x840] sm:$0xff]
    %v400 = vld [vmem:[#allocation6 + $0x848] sm:$0xff]
    %v401 = vld [vmem:[#allocation6 + $0x850] sm:$0xff]
    %v402 = vld [vmem:[#allocation6 + $0x858] sm:$0xff]
    %v403 = vld [vmem:[#allocation6 + $0x860] sm:$0xff]
    %v404 = vld [vmem:[#allocation6 + $0x868] sm:$0xff]
    %v405 = vld [vmem:[#allocation6 + $0x870] sm:$0xff]
    %v406 = vld [vmem:[#allocation6 + $0x878] sm:$0xff]
    %v407 = vld [vmem:[#allocation6 + $0x880] sm:$0xff]
    %v408 = vld [vmem:[#allocation6 + $0x888] sm:$0xff]
    %v409 = vld [vmem:[#allocation6 + $0x890] sm:$0xff]
    %v410 = vld [vmem:[#allocation6 + $0x898] sm:$0xff]
    %v411 = vld [vmem:[#allocation6 + $0x8a0] sm:$0xff]
    %v412 = vld [vmem:[#allocation6 + $0x8a8] sm:$0xff]
    %v413 = vld [vmem:[#allocation6 + $0x8b0] sm:$0xff]
    %v414 = vld [vmem:[#allocation6 + $0x8b8] sm:$0xff]
    %v415 = vld [vmem:[#allocation6 + $0x8c0] sm:$0xff]
    %v416 = vld [vmem:[#allocation6 + $0x8c8] sm:$0xff]
    %v417 = vld [vmem:[#allocation6 + $0x8d0] sm:$0xff]
    %v418 = vld [vmem:[#allocation6 + $0x8d8] sm:$0xff]
    %v419 = vld [vmem:[#allocation6 + $0x8e0] sm:$0xff]
    %v420 = vld [vmem:[#allocation6 + $0x8e8] sm:$0xff]
    %v421 = vld [vmem:[#allocation6 + $0x8f0] sm:$0xff]
    %v422 = vld [vmem:[#allocation6 + $0x8f8] sm:$0xff]
    %v423 = vld [vmem:[#allocation6 + $0x900] sm:$0xff]
    %v424 = vld [vmem:[#allocation6 + $0x908] sm:$0xff]
    %v425 = vld [vmem:[#allocation6 + $0x910] sm:$0xff]
    %v426 = vld [vmem:[#allocation6 + $0x918] sm:$0xff]
    %v427 = vld [vmem:[#allocation6 + $0x920] sm:$0xff]
    %v428 = vld [vmem:[#allocation6 + $0x928] sm:$0xff]
    %v429 = vld [vmem:[#allocation6 + $0x930] sm:$0xff]
    %v430 = vld [vmem:[#allocation6 + $0x938] sm:$0xff]
    %v431 = vld [vmem:[#allocation6 + $0x940] sm:$0xff]
    %v432 = vld [vmem:[#allocation6 + $0x948] sm:$0xff]
    %v433 = vld [vmem:[#allocation6 + $0x950] sm:$0xff]
    %v434 = vld [vmem:[#allocation6 + $0x958] sm:$0xff]
    %v435 = vld [vmem:[#allocation6 + $0x960] sm:$0xff]
    %v436 = vld [vmem:[#allocation6 + $0x968] sm:$0xff]
    %v437 = vld [vmem:[#allocation6 + $0x970] sm:$0xff]
    %v438 = vld [vmem:[#allocation6 + $0x978] sm:$0xff]
    %v439 = vld [vmem:[#allocation6 + $0x980] sm:$0xff]
    %v440 = vld [vmem:[#allocation6 + $0x988] sm:$0xff]
    %v441 = vld [vmem:[#allocation6 + $0x990] sm:$0xff]
    %v442 = vld [vmem:[#allocation6 + $0x998] sm:$0xff]
    %v443 = vld [vmem:[#allocation6 + $0x9a0] sm:$0xff]
    %v444 = vld [vmem:[#allocation6 + $0x9a8] sm:$0xff]
    %v445 = vld [vmem:[#allocation6 + $0x9b0] sm:$0xff]
    %v446 = vld [vmem:[#allocation6 + $0x9b8] sm:$0xff]
    %v447 = vld [vmem:[#allocation6 + $0x9c0] sm:$0xff]
    %v448 = vld [vmem:[#allocation6 + $0x9c8] sm:$0xff]
    %v449 = vld [vmem:[#allocation6 + $0x9d0] sm:$0xff]
    %v450 = vld [vmem:[#allocation6 + $0x9d8] sm:$0xff]
    %v451 = vld [vmem:[#allocation6 + $0x9e0] sm:$0xff]
    %v452 = vld [vmem:[#allocation6 + $0x9e8] sm:$0xff]
    %v453 = vld [vmem:[#allocation6 + $0x9f0] sm:$0xff]
    %v454 = vld [vmem:[#allocation6 + $0x9f8] sm:$0xff]
    %v455 = vld [vmem:[#allocation6 + $0xa00] sm:$0xff]
    %v456 = vld [vmem:[#allocation6 + $0xa08] sm:$0xff]
    %v457 = vld [vmem:[#allocation6 + $0xa10] sm:$0xff]
    %v458 = vld [vmem:[#allocation6 + $0xa18] sm:$0xff]
    %v459 = vld [vmem:[#allocation6 + $0xa20] sm:$0xff]
    %v460 = vld [vmem:[#allocation6 + $0xa28] sm:$0xff]
    %v461 = vld [vmem:[#allocation6 + $0xa30] sm:$0xff]
    %v462 = vld [vmem:[#allocation6 + $0xa38] sm:$0xff]
    %v463 = vld [vmem:[#allocation6 + $0xa40] sm:$0xff]
    %v464 = vld [vmem:[#allocation6 + $0xa48] sm:$0xff]
    %v465 = vld [vmem:[#allocation6 + $0xa50] sm:$0xff]
    %v466 = vld [vmem:[#allocation6 + $0xa58] sm:$0xff]
    %v467 = vld [vmem:[#allocation6 + $0xa60] sm:$0xff]
    %v468 = vld [vmem:[#allocation6 + $0xa68] sm:$0xff]
    %v469 = vld [vmem:[#allocation6 + $0xa70] sm:$0xff]
    %v470 = vld [vmem:[#allocation6 + $0xa78] sm:$0xff]
    %v471 = vld [vmem:[#allocation6 + $0xa80] sm:$0xff]
    %v472 = vld [vmem:[#allocation6 + $0xa88] sm:$0xff]
    %v473 = vld [vmem:[#allocation6 + $0xa90] sm:$0xff]
    %v474 = vld [vmem:[#allocation6 + $0xa98] sm:$0xff]
    %v475 = vld [vmem:[#allocation6 + $0xaa0] sm:$0xff]
    %v476 = vld [vmem:[#allocation6 + $0xaa8] sm:$0xff]
    %v477 = vld [vmem:[#allocation6 + $0xab0] sm:$0xff]
    %v478 = vld [vmem:[#allocation6 + $0xab8] sm:$0xff]
    %v479 = vld [vmem:[#allocation6 + $0xac0] sm:$0xff]
    %v480 = vld [vmem:[#allocation6 + $0xac8] sm:$0xff]
    %v481 = vld [vmem:[#allocation6 + $0xad0] sm:$0xff]
    %v482 = vld [vmem:[#allocation6 + $0xad8] sm:$0xff]
    %v483 = vld [vmem:[#allocation6 + $0xae0] sm:$0xff]
    %v484 = vld [vmem:[#allocation6 + $0xae8] sm:$0xff]
    %v485 = vld [vmem:[#allocation6 + $0xaf0] sm:$0xff]
    %v486 = vld [vmem:[#allocation6 + $0xaf8] sm:$0xff]
    %v487 = vld [vmem:[#allocation6 + $0xb00] sm:$0xff]
    %v488 = vld [vmem:[#allocation6 + $0xb08] sm:$0xff]
    %v489 = vld [vmem:[#allocation6 + $0xb10] sm:$0xff]
    %v490 = vld [vmem:[#allocation6 + $0xb18] sm:$0xff]
    %v491 = vld [vmem:[#allocation6 + $0xb20] sm:$0xff]
    %v492 = vld [vmem:[#allocation6 + $0xb28] sm:$0xff]
    %v493 = vld [vmem:[#allocation6 + $0xb30] sm:$0xff]
    %v494 = vld [vmem:[#allocation6 + $0xb38] sm:$0xff]
    %v495 = vld [vmem:[#allocation6 + $0xb40] sm:$0xff]
    %v496 = vld [vmem:[#allocation6 + $0xb48] sm:$0xff]
    %v497 = vld [vmem:[#allocation6 + $0xb50] sm:$0xff]
    %v498 = vld [vmem:[#allocation6 + $0xb58] sm:$0xff]
    %v499 = vld [vmem:[#allocation6 + $0xb60] sm:$0xff]
    %v500 = vld [vmem:[#allocation6 + $0xb68] sm:$0xff]
    %v501 = vld [vmem:[#allocation6 + $0xb70] sm:$0xff]
    %v502 = vld [vmem:[#allocation6 + $0xb78] sm:$0xff]
    %v503 = vld [vmem:[#allocation6 + $0xb80] sm:$0xff]
    %v504 = vld [vmem:[#allocation6 + $0xb88] sm:$0xff]
    %v505 = vld [vmem:[#allocation6 + $0xb90] sm:$0xff]
    %v506 = vld [vmem:[#allocation6 + $0xb98] sm:$0xff]
    %v507 = vld [vmem:[#allocation6 + $0xba0] sm:$0xff]
    %v508 = vld [vmem:[#allocation6 + $0xba8] sm:$0xff]
    %v509 = vld [vmem:[#allocation6 + $0xbb0] sm:$0xff]
    %v510 = vld [vmem:[#allocation6 + $0xbb8] sm:$0xff]
    %v511 = vld [vmem:[#allocation6 + $0xbc0] sm:$0xff]
    %v512 = vld [vmem:[#allocation6 + $0xbc8] sm:$0xff]
    %v513 = vld [vmem:[#allocation6 + $0xbd0] sm:$0xff]
    %v514 = vld [vmem:[#allocation6 + $0xbd8] sm:$0xff]
    %v515 = vld [vmem:[#allocation6 + $0xbe0] sm:$0xff]
    %v516 = vld [vmem:[#allocation6 + $0xbe8] sm:$0xff]
    %v517 = vld [vmem:[#allocation6 + $0xbf0] sm:$0xff]
    %v518 = vld [vmem:[#allocation6 + $0xbf8] sm:$0xff]
    %v519 = vld [vmem:[#allocation6 + $0xc00] sm:$0xff]
    %v520 = vld [vmem:[#allocation6 + $0xc08] sm:$0xff]
    %v521 = vld [vmem:[#allocation6 + $0xc10] sm:$0xff]
    %v522 = vld [vmem:[#allocation6 + $0xc18] sm:$0xff]
    %v523 = vld [vmem:[#allocation6 + $0xc20] sm:$0xff]
    %v524 = vld [vmem:[#allocation6 + $0xc28] sm:$0xff]
    %v525 = vld [vmem:[#allocation6 + $0xc30] sm:$0xff]
    %v526 = vld [vmem:[#allocation6 + $0xc38] sm:$0xff]
    %v527 = vld [vmem:[#allocation6 + $0xc40] sm:$0xff]
    %v528 = vld [vmem:[#allocation6 + $0xc48] sm:$0xff]
    %v529 = vld [vmem:[#allocation6 + $0xc50] sm:$0xff]
    %v530 = vld [vmem:[#allocation6 + $0xc58] sm:$0xff]
    %v531 = vld [vmem:[#allocation6 + $0xc60] sm:$0xff]
    %v532 = vld [vmem:[#allocation6 + $0xc68] sm:$0xff]
    %v533 = vld [vmem:[#allocation6 + $0xc70] sm:$0xff]
    %v534 = vld [vmem:[#allocation6 + $0xc78] sm:$0xff]
    %v535 = vld [vmem:[#allocation6 + $0xc80] sm:$0xff]
    %v536 = vld [vmem:[#allocation6 + $0xc88] sm:$0xff]
    %v537 = vld [vmem:[#allocation6 + $0xc90] sm:$0xff]
    %v538 = vld [vmem:[#allocation6 + $0xc98] sm:$0xff]
    %v539 = vld [vmem:[#allocation6 + $0xca0] sm:$0xff]
    %v540 = vld [vmem:[#allocation6 + $0xca8] sm:$0xff]
    %v541 = vld [vmem:[#allocation6 + $0xcb0] sm:$0xff]
    %v542 = vld [vmem:[#allocation6 + $0xcb8] sm:$0xff]
    %v543 = vld [vmem:[#allocation6 + $0xcc0] sm:$0xff]
    %v544 = vld [vmem:[#allocation6 + $0xcc8] sm:$0xff]
    %v545 = vld [vmem:[#allocation6 + $0xcd0] sm:$0xff]
    %v546 = vld [vmem:[#allocation6 + $0xcd8] sm:$0xff]
    %v547 = vld [vmem:[#allocation6 + $0xce0] sm:$0xff]
    %v548 = vld [vmem:[#allocation6 + $0xce8] sm:$0xff]
    %v549 = vld [vmem:[#allocation6 + $0xcf0] sm:$0xff]
    %v550 = vld [vmem:[#allocation6 + $0xcf8] sm:$0xff]
    %v551 = vld [vmem:[#allocation6 + $0xd00] sm:$0xff]
    %v552 = vld [vmem:[#allocation6 + $0xd08] sm:$0xff]
    %v553 = vld [vmem:[#allocation6 + $0xd10] sm:$0xff]
    %v554 = vld [vmem:[#allocation6 + $0xd18] sm:$0xff]
    %v555 = vld [vmem:[#allocation6 + $0xd20] sm:$0xff]
    %v556 = vld [vmem:[#allocation6 + $0xd28] sm:$0xff]
    %v557 = vld [vmem:[#allocation6 + $0xd30] sm:$0xff]
    %v558 = vld [vmem:[#allocation6 + $0xd38] sm:$0xff]
    %v559 = vld [vmem:[#allocation6 + $0xd40] sm:$0xff]
    %v560 = vld [vmem:[#allocation6 + $0xd48] sm:$0xff]
    %v561 = vld [vmem:[#allocation6 + $0xd50] sm:$0xff]
    %v562 = vld [vmem:[#allocation6 + $0xd58] sm:$0xff]
    %v563 = vld [vmem:[#allocation6 + $0xd60] sm:$0xff]
    %v564 = vld [vmem:[#allocation6 + $0xd68] sm:$0xff]
    %v565 = vld [vmem:[#allocation6 + $0xd70] sm:$0xff]
    %v566 = vld [vmem:[#allocation6 + $0xd78] sm:$0xff]
    %v567 = vld [vmem:[#allocation6 + $0xd80] sm:$0xff]
    %v568 = vld [vmem:[#allocation6 + $0xd88] sm:$0xff]
    %v569 = vld [vmem:[#allocation6 + $0xd90] sm:$0xff]
    %v570 = vld [vmem:[#allocation6 + $0xd98] sm:$0xff]
    %v571 = vld [vmem:[#allocation6 + $0xda0] sm:$0xff]
    %v572 = vld [vmem:[#allocation6 + $0xda8] sm:$0xff]
    %v573 = vld [vmem:[#allocation6 + $0xdb0] sm:$0xff]
    %v574 = vld [vmem:[#allocation6 + $0xdb8] sm:$0xff]
    %v575 = vld [vmem:[#allocation6 + $0xdc0] sm:$0xff]
    %v576 = vld [vmem:[#allocation6 + $0xdc8] sm:$0xff]
    %v577 = vld [vmem:[#allocation6 + $0xdd0] sm:$0xff]
    %v578 = vld [vmem:[#allocation6 + $0xdd8] sm:$0xff]
    %v579 = vld [vmem:[#allocation6 + $0xde0] sm:$0xff]
    %v580 = vld [vmem:[#allocation6 + $0xde8] sm:$0xff]
    %v581 = vld [vmem:[#allocation6 + $0xdf0] sm:$0xff]
    %v582 = vld [vmem:[#allocation6 + $0xdf8] sm:$0xff]
    %v583 = vld [vmem:[#allocation6 + $0xe00] sm:$0xff]
    %v584 = vld [vmem:[#allocation6 + $0xe08] sm:$0xff]
    %v585 = vld [vmem:[#allocation6 + $0xe10] sm:$0xff]
    %v586 = vld [vmem:[#allocation6 + $0xe18] sm:$0xff]
    %v587 = vld [vmem:[#allocation6 + $0xe20] sm:$0xff]
    %v588 = vld [vmem:[#allocation6 + $0xe28] sm:$0xff]
    %v589 = vld [vmem:[#allocation6 + $0xe30] sm:$0xff]
    %v590 = vld [vmem:[#allocation6 + $0xe38] sm:$0xff]
    %v591 = vld [vmem:[#allocation6 + $0xe40] sm:$0xff]
    %v592 = vld [vmem:[#allocation6 + $0xe48] sm:$0xff]
    %v593 = vld [vmem:[#allocation6 + $0xe50] sm:$0xff]
    %v594 = vld [vmem:[#allocation6 + $0xe58] sm:$0xff]
    %v595 = vld [vmem:[#allocation6 + $0xe60] sm:$0xff]
    %v596 = vld [vmem:[#allocation6 + $0xe68] sm:$0xff]
    %v597 = vld [vmem:[#allocation6 + $0xe70] sm:$0xff]
    %v598 = vld [vmem:[#allocation6 + $0xe78] sm:$0xff]
    %v599 = vld [vmem:[#allocation6 + $0xe80] sm:$0xff]
    %v600 = vld [vmem:[#allocation6 + $0xe88] sm:$0xff]
    %v601 = vld [vmem:[#allocation6 + $0xe90] sm:$0xff]
    %v602 = vld [vmem:[#allocation6 + $0xe98] sm:$0xff]
    %v603 = vld [vmem:[#allocation6 + $0xea0] sm:$0xff]
    %v604 = vld [vmem:[#allocation6 + $0xea8] sm:$0xff]
    %v605 = vld [vmem:[#allocation6 + $0xeb0] sm:$0xff]
    %v606 = vld [vmem:[#allocation6 + $0xeb8] sm:$0xff]
    %v607 = vld [vmem:[#allocation6 + $0xec0] sm:$0xff]
    %v608 = vld [vmem:[#allocation6 + $0xec8] sm:$0xff]
    %v609 = vld [vmem:[#allocation6 + $0xed0] sm:$0xff]
    %v610 = vld [vmem:[#allocation6 + $0xed8] sm:$0xff]
    %v611 = vld [vmem:[#allocation6 + $0xee0] sm:$0xff]
    %v612 = vld [vmem:[#allocation6 + $0xee8] sm:$0xff]
    %v613 = vld [vmem:[#allocation6 + $0xef0] sm:$0xff]
    %v614 = vld [vmem:[#allocation6 + $0xef8] sm:$0xff]
    %v615 = vld [vmem:[#allocation6 + $0xf00] sm:$0xff]
    %v616 = vld [vmem:[#allocation6 + $0xf08] sm:$0xff]
    %v617 = vld [vmem:[#allocation6 + $0xf10] sm:$0xff]
    %v618 = vld [vmem:[#allocation6 + $0xf18] sm:$0xff]
    %v619 = vld [vmem:[#allocation6 + $0xf20] sm:$0xff]
    %v620 = vld [vmem:[#allocation6 + $0xf28] sm:$0xff]
    %v621 = vld [vmem:[#allocation6 + $0xf30] sm:$0xff]
    %v622 = vld [vmem:[#allocation6 + $0xf38] sm:$0xff]
    %v623 = vld [vmem:[#allocation6 + $0xf40] sm:$0xff]
    %v624 = vld [vmem:[#allocation6 + $0xf48] sm:$0xff]
    %v625 = vld [vmem:[#allocation6 + $0xf50] sm:$0xff]
    %v626 = vld [vmem:[#allocation6 + $0xf58] sm:$0xff]
    %v627 = vld [vmem:[#allocation6 + $0xf60] sm:$0xff]
    %v628 = vld [vmem:[#allocation6 + $0xf68] sm:$0xff]
    %v629 = vld [vmem:[#allocation6 + $0xf70] sm:$0xff]
    %v630 = vld [vmem:[#allocation6 + $0xf78] sm:$0xff]
    %v631 = vld [vmem:[#allocation6 + $0xf80] sm:$0xff]
    %v632 = vld [vmem:[#allocation6 + $0xf88] sm:$0xff]
    %v633 = vld [vmem:[#allocation6 + $0xf90] sm:$0xff]
    %v634 = vld [vmem:[#allocation6 + $0xf98] sm:$0xff]
    %v635 = vld [vmem:[#allocation6 + $0xfa0] sm:$0xff]
    %v636 = vld [vmem:[#allocation6 + $0xfa8] sm:$0xff]
    %v637 = vld [vmem:[#allocation6 + $0xfb0] sm:$0xff]
    %v638 = vld [vmem:[#allocation6 + $0xfb8] sm:$0xff]
    %v639 = vld [vmem:[#allocation6 + $0xfc0] sm:$0xff]
    %v640 = vld [vmem:[#allocation6 + $0xfc8] sm:$0xff]
    %v641 = vld [vmem:[#allocation6 + $0xfd0] sm:$0xff]
    %v642 = vld [vmem:[#allocation6 + $0xfd8] sm:$0xff]
    %v643 = vld [vmem:[#allocation6 + $0xfe0] sm:$0xff]
    %v644 = vld [vmem:[#allocation6 + $0xfe8] sm:$0xff]
    %v645 = vld [vmem:[#allocation6 + $0xff0] sm:$0xff]
    %v646 = vld [vmem:[#allocation6 + $0xff8] sm:$0xff]
    %v647 = vld [vmem:[#allocation9] sm:$0xf]
    %v648 = vld [vmem:[#allocation9 + $0x4] sm:$0xf]
    %v649 = vld [vmem:[#allocation9 + $0x8] sm:$0xf]
    %v650 = vld [vmem:[#allocation9 + $0xc] sm:$0xf]
    %v651 = vld [vmem:[#allocation9 + $0x10] sm:$0xf]
    %v652 = vld [vmem:[#allocation9 + $0x14] sm:$0xf]
    %v653 = vld [vmem:[#allocation9 + $0x18] sm:$0xf]
    %v654 = vld [vmem:[#allocation9 + $0x1c] sm:$0xf]
    %v655 = vld [vmem:[#allocation9 + $0x20] sm:$0xf]
    %v656 = vld [vmem:[#allocation9 + $0x24] sm:$0xf]
    %v657 = vld [vmem:[#allocation9 + $0x28] sm:$0xf]
    %v658 = vld [vmem:[#allocation9 + $0x2c] sm:$0xf]
    %v659 = vld [vmem:[#allocation9 + $0x30] sm:$0xf]
    %v660 = vld [vmem:[#allocation9 + $0x34] sm:$0xf]
    %v661 = vld [vmem:[#allocation9 + $0x38] sm:$0xf]
    %v662 = vld [vmem:[#allocation9 + $0x3c] sm:$0xf]
    %v663 = vld [vmem:[#allocation9 + $0x40] sm:$0xf]
    %v664 = vld [vmem:[#allocation9 + $0x44] sm:$0xf]
    %v665 = vld [vmem:[#allocation9 + $0x48] sm:$0xf]
    %v666 = vld [vmem:[#allocation9 + $0x4c] sm:$0xf]
    %v667 = vld [vmem:[#allocation9 + $0x50] sm:$0xf]
    %v668 = vld [vmem:[#allocation9 + $0x54] sm:$0xf]
    %v669 = vld [vmem:[#allocation9 + $0x58] sm:$0xf]
    %v670 = vld [vmem:[#allocation9 + $0x5c] sm:$0xf]
    %v671 = vld [vmem:[#allocation9 + $0x60] sm:$0xf]
    %v672 = vld [vmem:[#allocation9 + $0x64] sm:$0xf]
    %v673 = vld [vmem:[#allocation9 + $0x68] sm:$0xf]
    %v674 = vld [vmem:[#allocation9 + $0x6c] sm:$0xf]
    %v675 = vld [vmem:[#allocation9 + $0x70] sm:$0xf]
    %v676 = vld [vmem:[#allocation9 + $0x74] sm:$0xf]
    %v677 = vld [vmem:[#allocation9 + $0x78] sm:$0xf]
    %v678 = vld [vmem:[#allocation9 + $0x7c] sm:$0xf]
    %v679 = vld [vmem:[#allocation9 + $0x80] sm:$0xf]
    %v680 = vld [vmem:[#allocation9 + $0x84] sm:$0xf]
    %v681 = vld [vmem:[#allocation9 + $0x88] sm:$0xf]
    %v682 = vld [vmem:[#allocation9 + $0x8c] sm:$0xf]
    %v683 = vld [vmem:[#allocation9 + $0x90] sm:$0xf]
    %v684 = vld [vmem:[#allocation9 + $0x94] sm:$0xf]
    %v685 = vld [vmem:[#allocation9 + $0x98] sm:$0xf]
    %v686 = vld [vmem:[#allocation9 + $0x9c] sm:$0xf]
    %v687 = vld [vmem:[#allocation9 + $0xa0] sm:$0xf]
    %v688 = vld [vmem:[#allocation9 + $0xa4] sm:$0xf]
    %v689 = vld [vmem:[#allocation9 + $0xa8] sm:$0xf]
    %v690 = vld [vmem:[#allocation9 + $0xac] sm:$0xf]
    %v691 = vld [vmem:[#allocation9 + $0xb0] sm:$0xf]
    %v692 = vld [vmem:[#allocation9 + $0xb4] sm:$0xf]
    %v693 = vld [vmem:[#allocation9 + $0xb8] sm:$0xf]
    %v694 = vld [vmem:[#allocation9 + $0xbc] sm:$0xf]
    %v695 = vld [vmem:[#allocation9 + $0xc0] sm:$0xf]
    %v696 = vld [vmem:[#allocation9 + $0xc4] sm:$0xf]
    %v697 = vld [vmem:[#allocation9 + $0xc8] sm:$0xf]
    %v698 = vld [vmem:[#allocation9 + $0xcc] sm:$0xf]
    %v699 = vld [vmem:[#allocation9 + $0xd0] sm:$0xf]
    %v700 = vld [vmem:[#allocation9 + $0xd4] sm:$0xf]
    %v701 = vld [vmem:[#allocation9 + $0xd8] sm:$0xf]
    %v702 = vld [vmem:[#allocation9 + $0xdc] sm:$0xf]
    %v703 = vld [vmem:[#allocation9 + $0xe0] sm:$0xf]
    %v704 = vld [vmem:[#allocation9 + $0xe4] sm:$0xf]
    %v705 = vld [vmem:[#allocation9 + $0xe8] sm:$0xf]
    %v706 = vld [vmem:[#allocation9 + $0xec] sm:$0xf]
    %v707 = vld [vmem:[#allocation9 + $0xf0] sm:$0xf]
    %v708 = vld [vmem:[#allocation9 + $0xf4] sm:$0xf]
    %v709 = vld [vmem:[#allocation9 + $0xf8] sm:$0xf]
    %v710 = vld [vmem:[#allocation9 + $0xfc] sm:$0xf]
    %v711 = vld [vmem:[#allocation9 + $0x100] sm:$0xf]
    %v712 = vld [vmem:[#allocation9 + $0x104] sm:$0xf]
    %v713 = vld [vmem:[#allocation9 + $0x108] sm:$0xf]
    %v714 = vld [vmem:[#allocation9 + $0x10c] sm:$0xf]
    %v715 = vld [vmem:[#allocation9 + $0x110] sm:$0xf]
    %v716 = vld [vmem:[#allocation9 + $0x114] sm:$0xf]
    %v717 = vld [vmem:[#allocation9 + $0x118] sm:$0xf]
    %v718 = vld [vmem:[#allocation9 + $0x11c] sm:$0xf]
    %v719 = vld [vmem:[#allocation9 + $0x120] sm:$0xf]
    %v720 = vld [vmem:[#allocation9 + $0x124] sm:$0xf]
    %v721 = vld [vmem:[#allocation9 + $0x128] sm:$0xf]
    %v722 = vld [vmem:[#allocation9 + $0x12c] sm:$0xf]
    %v723 = vld [vmem:[#allocation9 + $0x130] sm:$0xf]
    %v724 = vld [vmem:[#allocation9 + $0x134] sm:$0xf]
    %v725 = vld [vmem:[#allocation9 + $0x138] sm:$0xf]
    %v726 = vld [vmem:[#allocation9 + $0x13c] sm:$0xf]
    %v727 = vld [vmem:[#allocation9 + $0x140] sm:$0xf]
    %v728 = vld [vmem:[#allocation9 + $0x144] sm:$0xf]
    %v729 = vld [vmem:[#allocation9 + $0x148] sm:$0xf]
    %v730 = vld [vmem:[#allocation9 + $0x14c] sm:$0xf]
    %v731 = vld [vmem:[#allocation9 + $0x150] sm:$0xf]
    %v732 = vld [vmem:[#allocation9 + $0x154] sm:$0xf]
    %v733 = vld [vmem:[#allocation9 + $0x158] sm:$0xf]
    %v734 = vld [vmem:[#allocation9 + $0x15c] sm:$0xf]
    %v735 = vld [vmem:[#allocation9 + $0x160] sm:$0xf]
    %v736 = vld [vmem:[#allocation9 + $0x164] sm:$0xf]
    %v737 = vld [vmem:[#allocation9 + $0x168] sm:$0xf]
    %v738 = vld [vmem:[#allocation9 + $0x16c] sm:$0xf]
    %v739 = vld [vmem:[#allocation9 + $0x170] sm:$0xf]
    %v740 = vld [vmem:[#allocation9 + $0x174] sm:$0xf]
    %v741 = vld [vmem:[#allocation9 + $0x178] sm:$0xf]
    %v742 = vld [vmem:[#allocation9 + $0x17c] sm:$0xf]
    %v743 = vld [vmem:[#allocation9 + $0x180] sm:$0xf]
    %v744 = vld [vmem:[#allocation9 + $0x184] sm:$0xf]
    %v745 = vld [vmem:[#allocation9 + $0x188] sm:$0xf]
    %v746 = vld [vmem:[#allocation9 + $0x18c] sm:$0xf]
    %v747 = vld [vmem:[#allocation9 + $0x190] sm:$0xf]
    %v748 = vld [vmem:[#allocation9 + $0x194] sm:$0xf]
    %v749 = vld [vmem:[#allocation9 + $0x198] sm:$0xf]
    %v750 = vld [vmem:[#allocation9 + $0x19c] sm:$0xf]
    %v751 = vld [vmem:[#allocation9 + $0x1a0] sm:$0xf]
    %v752 = vld [vmem:[#allocation9 + $0x1a4] sm:$0xf]
    %v753 = vld [vmem:[#allocation9 + $0x1a8] sm:$0xf]
    %v754 = vld [vmem:[#allocation9 + $0x1ac] sm:$0xf]
    %v755 = vld [vmem:[#allocation9 + $0x1b0] sm:$0xf]
    %v756 = vld [vmem:[#allocation9 + $0x1b4] sm:$0xf]
    %v757 = vld [vmem:[#allocation9 + $0x1b8] sm:$0xf]
    %v758 = vld [vmem:[#allocation9 + $0x1bc] sm:$0xf]
    %v759 = vld [vmem:[#allocation9 + $0x1c0] sm:$0xf]
    %v760 = vld [vmem:[#allocation9 + $0x1c4] sm:$0xf]
    %v761 = vld [vmem:[#allocation9 + $0x1c8] sm:$0xf]
    %v762 = vld [vmem:[#allocation9 + $0x1cc] sm:$0xf]
    %v763 = vld [vmem:[#allocation9 + $0x1d0] sm:$0xf]
    %v764 = vld [vmem:[#allocation9 + $0x1d4] sm:$0xf]
    %v765 = vld [vmem:[#allocation9 + $0x1d8] sm:$0xf]
    %v766 = vld [vmem:[#allocation9 + $0x1dc] sm:$0xf]
    %v767 = vld [vmem:[#allocation9 + $0x1e0] sm:$0xf]
    %v768 = vld [vmem:[#allocation9 + $0x1e4] sm:$0xf]
    %v769 = vld [vmem:[#allocation9 + $0x1e8] sm:$0xf]
    %v770 = vld [vmem:[#allocation9 + $0x1ec] sm:$0xf]
    %v771 = vld [vmem:[#allocation9 + $0x1f0] sm:$0xf]
    %v772 = vld [vmem:[#allocation9 + $0x1f4] sm:$0xf]
    %v773 = vld [vmem:[#allocation9 + $0x1f8] sm:$0xf]
    %v774 = vld [vmem:[#allocation9 + $0x1fc] sm:$0xf]
    %v775 = vld [vmem:[#allocation9 + $0x200] sm:$0xf]
    %v776 = vld [vmem:[#allocation9 + $0x204] sm:$0xf]
    %v777 = vld [vmem:[#allocation9 + $0x208] sm:$0xf]
    %v778 = vld [vmem:[#allocation9 + $0x20c] sm:$0xf]
    %v779 = vld [vmem:[#allocation9 + $0x210] sm:$0xf]
    %v780 = vld [vmem:[#allocation9 + $0x214] sm:$0xf]
    %v781 = vld [vmem:[#allocation9 + $0x218] sm:$0xf]
    %v782 = vld [vmem:[#allocation9 + $0x21c] sm:$0xf]
    %v783 = vld [vmem:[#allocation9 + $0x220] sm:$0xf]
    %v784 = vld [vmem:[#allocation9 + $0x224] sm:$0xf]
    %v785 = vld [vmem:[#allocation9 + $0x228] sm:$0xf]
    %v786 = vld [vmem:[#allocation9 + $0x22c] sm:$0xf]
    %v787 = vld [vmem:[#allocation9 + $0x230] sm:$0xf]
    %v788 = vld [vmem:[#allocation9 + $0x234] sm:$0xf]
    %v789 = vld [vmem:[#allocation9 + $0x238] sm:$0xf]
    %v790 = vld [vmem:[#allocation9 + $0x23c] sm:$0xf]
    %v791 = vld [vmem:[#allocation9 + $0x240] sm:$0xf]
    %v792 = vld [vmem:[#allocation9 + $0x244] sm:$0xf]
    %v793 = vld [vmem:[#allocation9 + $0x248] sm:$0xf]
    %v794 = vld [vmem:[#allocation9 + $0x24c] sm:$0xf]
    %v795 = vld [vmem:[#allocation9 + $0x250] sm:$0xf]
    %v796 = vld [vmem:[#allocation9 + $0x254] sm:$0xf]
    %v797 = vld [vmem:[#allocation9 + $0x258] sm:$0xf]
    %v798 = vld [vmem:[#allocation9 + $0x25c] sm:$0xf]
    %v799 = vld [vmem:[#allocation9 + $0x260] sm:$0xf]
    %v800 = vld [vmem:[#allocation9 + $0x264] sm:$0xf]
    %v801 = vld [vmem:[#allocation9 + $0x268] sm:$0xf]
    %v802 = vld [vmem:[#allocation9 + $0x26c] sm:$0xf]
    %v803 = vld [vmem:[#allocation9 + $0x270] sm:$0xf]
    %v804 = vld [vmem:[#allocation9 + $0x274] sm:$0xf]
    %v805 = vld [vmem:[#allocation9 + $0x278] sm:$0xf]
    %v806 = vld [vmem:[#allocation9 + $0x27c] sm:$0xf]
    %v807 = vld [vmem:[#allocation9 + $0x280] sm:$0xf]
    %v808 = vld [vmem:[#allocation9 + $0x284] sm:$0xf]
    %v809 = vld [vmem:[#allocation9 + $0x288] sm:$0xf]
    %v810 = vld [vmem:[#allocation9 + $0x28c] sm:$0xf]
    %v811 = vld [vmem:[#allocation9 + $0x290] sm:$0xf]
    %v812 = vld [vmem:[#allocation9 + $0x294] sm:$0xf]
    %v813 = vld [vmem:[#allocation9 + $0x298] sm:$0xf]
    %v814 = vld [vmem:[#allocation9 + $0x29c] sm:$0xf]
    %v815 = vld [vmem:[#allocation9 + $0x2a0] sm:$0xf]
    %v816 = vld [vmem:[#allocation9 + $0x2a4] sm:$0xf]
    %v817 = vld [vmem:[#allocation9 + $0x2a8] sm:$0xf]
    %v818 = vld [vmem:[#allocation9 + $0x2ac] sm:$0xf]
    %v819 = vld [vmem:[#allocation9 + $0x2b0] sm:$0xf]
    %v820 = vld [vmem:[#allocation9 + $0x2b4] sm:$0xf]
    %v821 = vld [vmem:[#allocation9 + $0x2b8] sm:$0xf]
    %v822 = vld [vmem:[#allocation9 + $0x2bc] sm:$0xf]
    %v823 = vld [vmem:[#allocation9 + $0x2c0] sm:$0xf]
    %v824 = vld [vmem:[#allocation9 + $0x2c4] sm:$0xf]
    %v825 = vld [vmem:[#allocation9 + $0x2c8] sm:$0xf]
    %v826 = vld [vmem:[#allocation9 + $0x2cc] sm:$0xf]
    %v827 = vld [vmem:[#allocation9 + $0x2d0] sm:$0xf]
    %v828 = vld [vmem:[#allocation9 + $0x2d4] sm:$0xf]
    %v829 = vld [vmem:[#allocation9 + $0x2d8] sm:$0xf]
    %v830 = vld [vmem:[#allocation9 + $0x2dc] sm:$0xf]
    %v831 = vld [vmem:[#allocation9 + $0x2e0] sm:$0xf]
    %v832 = vld [vmem:[#allocation9 + $0x2e4] sm:$0xf]
    %v833 = vld [vmem:[#allocation9 + $0x2e8] sm:$0xf]
    %v834 = vld [vmem:[#allocation9 + $0x2ec] sm:$0xf]
    %v835 = vld [vmem:[#allocation9 + $0x2f0] sm:$0xf]
    %v836 = vld [vmem:[#allocation9 + $0x2f4] sm:$0xf]
    %v837 = vld [vmem:[#allocation9 + $0x2f8] sm:$0xf]
    %v838 = vld [vmem:[#allocation9 + $0x2fc] sm:$0xf]
    %v839 = vld [vmem:[#allocation9 + $0x300] sm:$0xf]
    %v840 = vld [vmem:[#allocation9 + $0x304] sm:$0xf]
    %v841 = vld [vmem:[#allocation9 + $0x308] sm:$0xf]
    %v842 = vld [vmem:[#allocation9 + $0x30c] sm:$0xf]
    %v843 = vld [vmem:[#allocation9 + $0x310] sm:$0xf]
    %v844 = vld [vmem:[#allocation9 + $0x314] sm:$0xf]
    %v845 = vld [vmem:[#allocation9 + $0x318] sm:$0xf]
    %v846 = vld [vmem:[#allocation9 + $0x31c] sm:$0xf]
    %v847 = vld [vmem:[#allocation9 + $0x320] sm:$0xf]
    %v848 = vld [vmem:[#allocation9 + $0x324] sm:$0xf]
    %v849 = vld [vmem:[#allocation9 + $0x328] sm:$0xf]
    %v850 = vld [vmem:[#allocation9 + $0x32c] sm:$0xf]
    %v851 = vld [vmem:[#allocation9 + $0x330] sm:$0xf]
    %v852 = vld [vmem:[#allocation9 + $0x334] sm:$0xf]
    %v853 = vld [vmem:[#allocation9 + $0x338] sm:$0xf]
    %v854 = vld [vmem:[#allocation9 + $0x33c] sm:$0xf]
    %v855 = vld [vmem:[#allocation9 + $0x340] sm:$0xf]
    %v856 = vld [vmem:[#allocation9 + $0x344] sm:$0xf]
    %v857 = vld [vmem:[#allocation9 + $0x348] sm:$0xf]
    %v858 = vld [vmem:[#allocation9 + $0x34c] sm:$0xf]
    %v859 = vld [vmem:[#allocation9 + $0x350] sm:$0xf]
    %v860 = vld [vmem:[#allocation9 + $0x354] sm:$0xf]
    %v861 = vld [vmem:[#allocation9 + $0x358] sm:$0xf]
    %v862 = vld [vmem:[#allocation9 + $0x35c] sm:$0xf]
    %v863 = vld [vmem:[#allocation9 + $0x360] sm:$0xf]
    %v864 = vld [vmem:[#allocation9 + $0x364] sm:$0xf]
    %v865 = vld [vmem:[#allocation9 + $0x368] sm:$0xf]
    %v866 = vld [vmem:[#allocation9 + $0x36c] sm:$0xf]
    %v867 = vld [vmem:[#allocation9 + $0x370] sm:$0xf]
    %v868 = vld [vmem:[#allocation9 + $0x374] sm:$0xf]
    %v869 = vld [vmem:[#allocation9 + $0x378] sm:$0xf]
    %v870 = vld [vmem:[#allocation9 + $0x37c] sm:$0xf]
    %v871 = vld [vmem:[#allocation9 + $0x380] sm:$0xf]
    %v872 = vld [vmem:[#allocation9 + $0x384] sm:$0xf]
    %v873 = vld [vmem:[#allocation9 + $0x388] sm:$0xf]
    %v874 = vld [vmem:[#allocation9 + $0x38c] sm:$0xf]
    %v875 = vld [vmem:[#allocation9 + $0x390] sm:$0xf]
    %v876 = vld [vmem:[#allocation9 + $0x394] sm:$0xf]
    %v877 = vld [vmem:[#allocation9 + $0x398] sm:$0xf]
    %v878 = vld [vmem:[#allocation9 + $0x39c] sm:$0xf]
    %v879 = vld [vmem:[#allocation9 + $0x3a0] sm:$0xf]
    %v880 = vld [vmem:[#allocation9 + $0x3a4] sm:$0xf]
    %v881 = vld [vmem:[#allocation9 + $0x3a8] sm:$0xf]
    %v882 = vld [vmem:[#allocation9 + $0x3ac] sm:$0xf]
    %v883 = vld [vmem:[#allocation9 + $0x3b0] sm:$0xf]
    %v884 = vld [vmem:[#allocation9 + $0x3b4] sm:$0xf]
    %v885 = vld [vmem:[#allocation9 + $0x3b8] sm:$0xf]
    %v886 = vld [vmem:[#allocation9 + $0x3bc] sm:$0xf]
    %v887 = vld [vmem:[#allocation9 + $0x3c0] sm:$0xf]
    %v888 = vld [vmem:[#allocation9 + $0x3c4] sm:$0xf]
    %v889 = vld [vmem:[#allocation9 + $0x3c8] sm:$0xf]
    %v890 = vld [vmem:[#allocation9 + $0x3cc] sm:$0xf]
    %v891 = vld [vmem:[#allocation9 + $0x3d0] sm:$0xf]
    %v892 = vld [vmem:[#allocation9 + $0x3d4] sm:$0xf]
    %v893 = vld [vmem:[#allocation9 + $0x3d8] sm:$0xf]
    %v894 = vld [vmem:[#allocation9 + $0x3dc] sm:$0xf]
    %v895 = vld [vmem:[#allocation9 + $0x3e0] sm:$0xf]
    %v896 = vld [vmem:[#allocation9 + $0x3e4] sm:$0xf]
    %v897 = vld [vmem:[#allocation9 + $0x3e8] sm:$0xf]
    %v898 = vld [vmem:[#allocation9 + $0x3ec] sm:$0xf]
    %v899 = vld [vmem:[#allocation9 + $0x3f0] sm:$0xf]
    %v900 = vld [vmem:[#allocation9 + $0x3f4] sm:$0xf]
    %v901 = vld [vmem:[#allocation9 + $0x3f8] sm:$0xf]
    %v902 = vld [vmem:[#allocation9 + $0x3fc] sm:$0xf]
    %v903 = vld [vmem:[#allocation4] sm:$0xf]
    %v904 = vld [vmem:[#allocation7] sm:$0xff]
    %v905 = vld [vmem:[#allocation7 + $0x8] sm:$0xff]
    %v906 = vld [vmem:[#allocation10] sm:$0x1]
    %v907 = vld [vmem:[%s0] sm:$0xf]
    %v908 = vld [vmem:[%s0 + $0x4] sm:$0xf]
    %v910 = vlaneseq
    %v911 = vshrl.u32 %v910, 7
    %v912 = vsub.s32 0, %v911
    %v913 = vrot.slane %v903, %v912
    %v914 = vlaneseq
    %v915 = vshrl.u32 %v914, 7
    %v916 = vsub.s32 1, %v915
    %v917 = vrot.slane %v903, %v916
    %v918 = vlaneseq
    %v919 = vshrl.u32 %v918, 7
    %v920 = vsub.s32 2, %v919
    %v921 = vrot.slane %v903, %v920
    %v922 = vlaneseq
    %v923 = vshrl.u32 %v922, 7
    %v924 = vsub.s32 3, %v923
    %v925 = vrot.slane %v903, %v924
    %v932 = vunpack.c.l.b16 %v907
    %v933 = vunpack.c.l.b16 %v908
    %v934 = vpack.c.b16 %v933, %v932
    %v968 = vunpack.c.l.b16 %v103
    %v969 = vunpack.c.h.b16 %v103
    %v970 = vunpack.c.l.b16 %v104
    %v971 = vunpack.c.h.b16 %v104
    %v972 = vunpack.c.l.b16 %v105
    %v973 = vunpack.c.h.b16 %v105
    %v974 = vunpack.c.l.b16 %v106
    %v975 = vunpack.c.h.b16 %v106
    %v976 = vunpack.c.l.b16 %v107
    %v977 = vunpack.c.h.b16 %v107
    %v978 = vunpack.c.l.b16 %v108
    %v979 = vunpack.c.h.b16 %v108
    %v980 = vunpack.c.l.b16 %v109
    %v981 = vunpack.c.h.b16 %v109
    %v982 = vunpack.c.l.b16 %v110
    %v983 = vunpack.c.h.b16 %v110
    %v984 = vunpack.c.l.b16 %v111
    %v985 = vunpack.c.h.b16 %v111
    %v986 = vunpack.c.l.b16 %v112
    %v987 = vunpack.c.h.b16 %v112
    %v988 = vunpack.c.l.b16 %v113
    %v989 = vunpack.c.h.b16 %v113
    %v990 = vunpack.c.l.b16 %v114
    %v991 = vunpack.c.h.b16 %v114
    %v992 = vunpack.c.l.b16 %v115
    %v993 = vunpack.c.h.b16 %v115
    %v994 = vunpack.c.l.b16 %v116
    %v995 = vunpack.c.h.b16 %v116
    %v996 = vunpack.c.l.b16 %v117
    %v997 = vunpack.c.h.b16 %v117
    %v998 = vunpack.c.l.b16 %v118
    %v999 = vunpack.c.h.b16 %v118
    %v1000 = vunpack.c.l.b16 %v119
    %v1001 = vunpack.c.h.b16 %v119
    %v1002 = vunpack.c.l.b16 %v120
    %v1003 = vunpack.c.h.b16 %v120
    %v1004 = vunpack.c.l.b16 %v121
    %v1005 = vunpack.c.h.b16 %v121
    %v1006 = vunpack.c.l.b16 %v122
    %v1007 = vunpack.c.h.b16 %v122
    %v1008 = vunpack.c.l.b16 %v123
    %v1009 = vunpack.c.h.b16 %v123
    %v1010 = vunpack.c.l.b16 %v124
    %v1011 = vunpack.c.h.b16 %v124
    %v1012 = vunpack.c.l.b16 %v125
    %v1013 = vunpack.c.h.b16 %v125
    %v1014 = vunpack.c.l.b16 %v126
    %v1015 = vunpack.c.h.b16 %v126
    %v1016 = vunpack.c.l.b16 %v127
    %v1017 = vunpack.c.h.b16 %v127
    %v1018 = vunpack.c.l.b16 %v128
    %v1019 = vunpack.c.h.b16 %v128
    %v1020 = vunpack.c.l.b16 %v129
    %v1021 = vunpack.c.h.b16 %v129
    %v1022 = vunpack.c.l.b16 %v130
    %v1023 = vunpack.c.h.b16 %v130
    %v1024 = vunpack.c.l.b16 %v131
    %v1025 = vunpack.c.h.b16 %v131
    %v1026 = vunpack.c.l.b16 %v132
    %v1027 = vunpack.c.h.b16 %v132
    %v1028 = vunpack.c.l.b16 %v133
    %v1029 = vunpack.c.h.b16 %v133
    %v1030 = vunpack.c.l.b16 %v134
    %v1031 = vunpack.c.h.b16 %v134
    %v1032 = vpack.c.b16 %v972, %v968
    %v1033 = vpack.c.b16 %v973, %v969
    %v1034 = vpack.c.b16 %v974, %v970
    %v1035 = vpack.c.b16 %v975, %v971
    %v1036 = vpack.c.b16 %v980, %v976
    %v1037 = vpack.c.b16 %v981, %v977
    %v1038 = vpack.c.b16 %v982, %v978
    %v1039 = vpack.c.b16 %v983, %v979
    %v1040 = vpack.c.b16 %v988, %v984
    %v1041 = vpack.c.b16 %v989, %v985
    %v1042 = vpack.c.b16 %v990, %v986
    %v1043 = vpack.c.b16 %v991, %v987
    %v1044 = vpack.c.b16 %v996, %v992
    %v1045 = vpack.c.b16 %v997, %v993
    %v1046 = vpack.c.b16 %v998, %v994
    %v1047 = vpack.c.b16 %v999, %v995
    %v1048 = vpack.c.b16 %v1004, %v1000
    %v1049 = vpack.c.b16 %v1005, %v1001
    %v1050 = vpack.c.b16 %v1006, %v1002
    %v1051 = vpack.c.b16 %v1007, %v1003
    %v1052 = vpack.c.b16 %v1012, %v1008
    %v1053 = vpack.c.b16 %v1013, %v1009
    %v1054 = vpack.c.b16 %v1014, %v1010
    %v1055 = vpack.c.b16 %v1015, %v1011
    %v1056 = vpack.c.b16 %v1020, %v1016
    %v1057 = vpack.c.b16 %v1021, %v1017
    %v1058 = vpack.c.b16 %v1022, %v1018
    %v1059 = vpack.c.b16 %v1023, %v1019
    %v1060 = vpack.c.b16 %v1028, %v1024
    %v1061 = vpack.c.b16 %v1029, %v1025
    %v1062 = vpack.c.b16 %v1030, %v1026
    %v1063 = vpack.c.b16 %v1031, %v1027
    %1096 = vmatprep.subr.bf16.mxu0 %v1033
    %1097 = vmatpush1.bf16.msra.mxu0 %v1032
    %1098 = vmatprep.subr.bf16.mxu0 %v1037
    %1099 = vmatpush1.bf16.msra.mxu0 %v1036
    %1100 = vmatprep.subr.bf16.mxu0 %v1041
    %1101 = vmatpush1.bf16.msra.mxu0 %v1040
    %1102 = vmatprep.subr.bf16.mxu0 %v1045
    %1103 = vmatpush1.bf16.msra.mxu0 %v1044
    %1104 = vmatprep.subr.bf16.mxu0 %v1049
    %1105 = vmatpush1.bf16.msra.mxu0 %v1048
    %1106 = vmatprep.subr.bf16.mxu0 %v1053
    %1107 = vmatpush1.bf16.msra.mxu0 %v1052
    %1108 = vmatprep.subr.bf16.mxu0 %v1057
    %1109 = vmatpush1.bf16.msra.mxu0 %v1056
    %1110 = vmatprep.subr.bf16.mxu0 %v1061
    %1111 = vmatpush1.bf16.msra.mxu0 %v1060
    %1112 = vmatprep.subr.bf16.mxu0 0
    %1113 = vmatpush1.bf16.msra.mxu0 0
    %1114 = vmatprep.subr.bf16.mxu0 0
    %1115 = vmatpush1.bf16.msra.mxu0 0
    %1116 = vmatprep.subr.bf16.mxu0 0
    %1117 = vmatpush1.bf16.msra.mxu0 0
    %1118 = vmatprep.subr.bf16.mxu0 0
    %1119 = vmatpush1.bf16.msra.mxu0 0
    %1120 = vmatprep.subr.bf16.mxu0 0
    %1121 = vmatpush1.bf16.msra.mxu0 0
    %1122 = vmatprep.subr.bf16.mxu0 0
    %1123 = vmatpush1.bf16.msra.mxu0 0
    %1124 = vmatprep.subr.bf16.mxu0 0
    %1125 = vmatpush1.bf16.msra.mxu0 0
    %1126 = vmatprep.subr.bf16.mxu0 0
    %1127 = vmatpush1.bf16.msra.mxu0 0
    %1128 = vmatprep.mubr.bf16.mxu0 0
    %1129 = vmatmul.mubr.bf16.gmra.mrb[0].mxu0 %v934
    %v1130 = vpop.f32.mrb[0].mxu0
    %v1131 = vadd.f32 %v913, %v1130
    %v1132 = vpop.f32.mrb[0].mxu0
    %v1133 = vadd.f32 %v917, %v1132
    %v1134 = vpop.f32.mrb[0].mxu0
    %v1135 = vadd.f32 %v913, %v1134
    %v1136 = vpop.f32.mrb[0].mxu0
    %v1137 = vadd.f32 %v917, %v1136
    %1138 = vdwg.mxu0
    %1139 = vmatprep.subr.bf16.mxu0 %v1035
    %1140 = vmatpush1.bf16.msra.mxu0 %v1034
    %1141 = vmatprep.subr.bf16.mxu0 %v1039
    %1142 = vmatpush1.bf16.msra.mxu0 %v1038
    %1143 = vmatprep.subr.bf16.mxu0 %v1043
    %1144 = vmatpush1.bf16.msra.mxu0 %v1042
    %1145 = vmatprep.subr.bf16.mxu0 %v1047
    %1146 = vmatpush1.bf16.msra.mxu0 %v1046
    %1147 = vmatprep.subr.bf16.mxu0 %v1051
    %1148 = vmatpush1.bf16.msra.mxu0 %v1050
    %1149 = vmatprep.subr.bf16.mxu0 %v1055
    %1150 = vmatpush1.bf16.msra.mxu0 %v1054
    %1151 = vmatprep.subr.bf16.mxu0 %v1059
    %1152 = vmatpush1.bf16.msra.mxu0 %v1058
    %1153 = vmatprep.subr.bf16.mxu0 %v1063
    %1154 = vmatpush1.bf16.msra.mxu0 %v1062
    %1155 = vmatprep.subr.bf16.mxu0 0
    %1156 = vmatpush1.bf16.msra.mxu0 0
    %1157 = vmatprep.subr.bf16.mxu0 0
    %1158 = vmatpush1.bf16.msra.mxu0 0
    %1159 = vmatprep.subr.bf16.mxu0 0
    %1160 = vmatpush1.bf16.msra.mxu0 0
    %1161 = vmatprep.subr.bf16.mxu0 0
    %1162 = vmatpush1.bf16.msra.mxu0 0
    %1163 = vmatprep.subr.bf16.mxu0 0
    %1164 = vmatpush1.bf16.msra.mxu0 0
    %1165 = vmatprep.subr.bf16.mxu0 0
    %1166 = vmatpush1.bf16.msra.mxu0 0
    %1167 = vmatprep.subr.bf16.mxu0 0
    %1168 = vmatpush1.bf16.msra.mxu0 0
    %1169 = vmatprep.subr.bf16.mxu0 0
    %1170 = vmatpush1.bf16.msra.mxu0 0
    %1171 = vmatprep.mubr.bf16.mxu0 0
    %1172 = vmatmul.mubr.bf16.gmra.mrb[0].mxu0 %v934
    %v1173 = vpop.f32.mrb[0].mxu0
    %v1174 = vadd.f32 %v921, %v1173
    %v1175 = vpop.f32.mrb[0].mxu0
    %v1176 = vadd.f32 %v925, %v1175
    %v1177 = vpop.f32.mrb[0].mxu0
    %v1178 = vadd.f32 %v921, %v1177
    %v1179 = vpop.f32.mrb[0].mxu0
    %v1180 = vadd.f32 %v925, %v1179
    %1181 = vdwg.mxu0
    %v1182 = vmul.f32 %v1131, 0.5
    %v1183 = vmul.f32 %v1133, 0.5
    %v1184 = vmul.f32 %v1174, 0.5
    %v1185 = vmul.f32 %v1176, 0.5
    %v1186 = vmul.f32 %v1135, 0.5
    %v1187 = vmul.f32 %v1137, 0.5
    %v1188 = vmul.f32 %v1178, 0.5
    %v1189 = vmul.f32 %v1180, 0.5
    %v1190 = vtanh.pop %v1182
    %v1191 = vtanh.pop %v1183
    %v1192 = vtanh.pop %v1184
    %v1193 = vtanh.pop %v1185
    %v1194 = vtanh.pop %v1186
    %v1195 = vtanh.pop %v1187
    %v1196 = vtanh.pop %v1188
    %v1197 = vtanh.pop %v1189
    %v1198 = vmul.f32 %v1190, 0.5
    %v1199 = vmul.f32 %v1191, 0.5
    %v1200 = vmul.f32 %v1192, 0.5
    %v1201 = vmul.f32 %v1193, 0.5
    %v1202 = vmul.f32 %v1194, 0.5
    %v1203 = vmul.f32 %v1195, 0.5
    %v1204 = vmul.f32 %v1196, 0.5
    %v1205 = vmul.f32 %v1197, 0.5
    %v1206 = vadd.f32 %v1198, 0.5
    %v1207 = vadd.f32 %v1199, 0.5
    %v1208 = vadd.f32 %v1200, 0.5
    %v1209 = vadd.f32 %v1201, 0.5
    %v1210 = vadd.f32 %v1202, 0.5
    %v1211 = vadd.f32 %v1203, 0.5
    %v1212 = vadd.f32 %v1204, 0.5
    %v1213 = vadd.f32 %v1205, 0.5
    %v1214 = vpack.c.bf16 %v1210, %v1206
    %v1215 = vpack.c.bf16 %v1211, %v1207
    %v1216 = vpack.c.bf16 %v1212, %v1208
    %v1217 = vpack.c.bf16 %v1213, %v1209
    %v1220 = vlaneseq
    %v1221 = vshrl.u32 %v1220, 7
    %v1222 = vsub.s32 0, %v1221
    %v1223 = vrot.slane %v904, %v1222
    %v1224 = vlaneseq
    %v1225 = vshrl.u32 %v1224, 7
    %v1226 = vsub.s32 1, %v1225
    %v1227 = vrot.slane %v904, %v1226
    %v1228 = vlaneseq
    %v1229 = vshrl.u32 %v1228, 7
    %v1230 = vsub.s32 2, %v1229
    %v1231 = vrot.slane %v904, %v1230
    %v1232 = vlaneseq
    %v1233 = vshrl.u32 %v1232, 7
    %v1234 = vsub.s32 3, %v1233
    %v1235 = vrot.slane %v904, %v1234
    %v1236 = vlaneseq
    %v1237 = vshrl.u32 %v1236, 7
    %v1238 = vsub.s32 4, %v1237
    %v1239 = vrot.slane %v904, %v1238
    %v1240 = vlaneseq
    %v1241 = vshrl.u32 %v1240, 7
    %v1242 = vsub.s32 5, %v1241
    %v1243 = vrot.slane %v904, %v1242
    %v1244 = vlaneseq
    %v1245 = vshrl.u32 %v1244, 7
    %v1246 = vsub.s32 6, %v1245
    %v1247 = vrot.slane %v904, %v1246
    %v1248 = vlaneseq
    %v1249 = vshrl.u32 %v1248, 7
    %v1250 = vsub.s32 7, %v1249
    %v1251 = vrot.slane %v904, %v1250
    %v1252 = vlaneseq
    %v1253 = vshrl.u32 %v1252, 7
    %v1254 = vsub.s32 0, %v1253
    %v1255 = vrot.slane %v905, %v1254
    %v1256 = vlaneseq
    %v1257 = vshrl.u32 %v1256, 7
    %v1258 = vsub.s32 1, %v1257
    %v1259 = vrot.slane %v905, %v1258
    %v1260 = vlaneseq
    %v1261 = vshrl.u32 %v1260, 7
    %v1262 = vsub.s32 2, %v1261
    %v1263 = vrot.slane %v905, %v1262
    %v1264 = vlaneseq
    %v1265 = vshrl.u32 %v1264, 7
    %v1266 = vsub.s32 3, %v1265
    %v1267 = vrot.slane %v905, %v1266
    %v1268 = vlaneseq
    %v1269 = vshrl.u32 %v1268, 7
    %v1270 = vsub.s32 4, %v1269
    %v1271 = vrot.slane %v905, %v1270
    %v1272 = vlaneseq
    %v1273 = vshrl.u32 %v1272, 7
    %v1274 = vsub.s32 5, %v1273
    %v1275 = vrot.slane %v905, %v1274
    %v1276 = vlaneseq
    %v1277 = vshrl.u32 %v1276, 7
    %v1278 = vsub.s32 6, %v1277
    %v1279 = vrot.slane %v905, %v1278
    %v1280 = vlaneseq
    %v1281 = vshrl.u32 %v1280, 7
    %v1282 = vsub.s32 7, %v1281
    %v1283 = vrot.slane %v905, %v1282
    %v1812 = vunpack.c.l.b16 %v135
    %v1813 = vunpack.c.h.b16 %v135
    %v1814 = vunpack.c.l.b16 %v136
    %v1815 = vunpack.c.h.b16 %v136
    %v1816 = vunpack.c.l.b16 %v137
    %v1817 = vunpack.c.h.b16 %v137
    %v1818 = vunpack.c.l.b16 %v138
    %v1819 = vunpack.c.h.b16 %v138
    %v1820 = vunpack.c.l.b16 %v139
    %v1821 = vunpack.c.h.b16 %v139
    %v1822 = vunpack.c.l.b16 %v140
    %v1823 = vunpack.c.h.b16 %v140
    %v1824 = vunpack.c.l.b16 %v141
    %v1825 = vunpack.c.h.b16 %v141
    %v1826 = vunpack.c.l.b16 %v142
    %v1827 = vunpack.c.h.b16 %v142
    %v1828 = vunpack.c.l.b16 %v143
    %v1829 = vunpack.c.h.b16 %v143
    %v1830 = vunpack.c.l.b16 %v144
    %v1831 = vunpack.c.h.b16 %v144
    %v1832 = vunpack.c.l.b16 %v145
    %v1833 = vunpack.c.h.b16 %v145
    %v1834 = vunpack.c.l.b16 %v146
    %v1835 = vunpack.c.h.b16 %v146
    %v1836 = vunpack.c.l.b16 %v147
    %v1837 = vunpack.c.h.b16 %v147
    %v1838 = vunpack.c.l.b16 %v148
    %v1839 = vunpack.c.h.b16 %v148
    %v1840 = vunpack.c.l.b16 %v149
    %v1841 = vunpack.c.h.b16 %v149
    %v1842 = vunpack.c.l.b16 %v150
    %v1843 = vunpack.c.h.b16 %v150
    %v1844 = vunpack.c.l.b16 %v151
    %v1845 = vunpack.c.h.b16 %v151
    %v1846 = vunpack.c.l.b16 %v152
    %v1847 = vunpack.c.h.b16 %v152
    %v1848 = vunpack.c.l.b16 %v153
    %v1849 = vunpack.c.h.b16 %v153
    %v1850 = vunpack.c.l.b16 %v154
    %v1851 = vunpack.c.h.b16 %v154
    %v1852 = vunpack.c.l.b16 %v155
    %v1853 = vunpack.c.h.b16 %v155
    %v1854 = vunpack.c.l.b16 %v156
    %v1855 = vunpack.c.h.b16 %v156
    %v1856 = vunpack.c.l.b16 %v157
    %v1857 = vunpack.c.h.b16 %v157
    %v1858 = vunpack.c.l.b16 %v158
    %v1859 = vunpack.c.h.b16 %v158
    %v1860 = vunpack.c.l.b16 %v159
    %v1861 = vunpack.c.h.b16 %v159
    %v1862 = vunpack.c.l.b16 %v160
    %v1863 = vunpack.c.h.b16 %v160
    %v1864 = vunpack.c.l.b16 %v161
    %v1865 = vunpack.c.h.b16 %v161
    %v1866 = vunpack.c.l.b16 %v162
    %v1867 = vunpack.c.h.b16 %v162
    %v1868 = vunpack.c.l.b16 %v163
    %v1869 = vunpack.c.h.b16 %v163
    %v1870 = vunpack.c.l.b16 %v164
    %v1871 = vunpack.c.h.b16 %v164
    %v1872 = vunpack.c.l.b16 %v165
    %v1873 = vunpack.c.h.b16 %v165
    %v1874 = vunpack.c.l.b16 %v166
    %v1875 = vunpack.c.h.b16 %v166
    %v1876 = vunpack.c.l.b16 %v167
    %v1877 = vunpack.c.h.b16 %v167
    %v1878 = vunpack.c.l.b16 %v168
    %v1879 = vunpack.c.h.b16 %v168
    %v1880 = vunpack.c.l.b16 %v169
    %v1881 = vunpack.c.h.b16 %v169
    %v1882 = vunpack.c.l.b16 %v170
    %v1883 = vunpack.c.h.b16 %v170
    %v1884 = vunpack.c.l.b16 %v171
    %v1885 = vunpack.c.h.b16 %v171
    %v1886 = vunpack.c.l.b16 %v172
    %v1887 = vunpack.c.h.b16 %v172
    %v1888 = vunpack.c.l.b16 %v173
    %v1889 = vunpack.c.h.b16 %v173
    %v1890 = vunpack.c.l.b16 %v174
    %v1891 = vunpack.c.h.b16 %v174
    %v1892 = vunpack.c.l.b16 %v175
    %v1893 = vunpack.c.h.b16 %v175
    %v1894 = vunpack.c.l.b16 %v176
    %v1895 = vunpack.c.h.b16 %v176
    %v1896 = vunpack.c.l.b16 %v177
    %v1897 = vunpack.c.h.b16 %v177
    %v1898 = vunpack.c.l.b16 %v178
    %v1899 = vunpack.c.h.b16 %v178
    %v1900 = vunpack.c.l.b16 %v179
    %v1901 = vunpack.c.h.b16 %v179
    %v1902 = vunpack.c.l.b16 %v180
    %v1903 = vunpack.c.h.b16 %v180
    %v1904 = vunpack.c.l.b16 %v181
    %v1905 = vunpack.c.h.b16 %v181
    %v1906 = vunpack.c.l.b16 %v182
    %v1907 = vunpack.c.h.b16 %v182
    %v1908 = vunpack.c.l.b16 %v183
    %v1909 = vunpack.c.h.b16 %v183
    %v1910 = vunpack.c.l.b16 %v184
    %v1911 = vunpack.c.h.b16 %v184
    %v1912 = vunpack.c.l.b16 %v185
    %v1913 = vunpack.c.h.b16 %v185
    %v1914 = vunpack.c.l.b16 %v186
    %v1915 = vunpack.c.h.b16 %v186
    %v1916 = vunpack.c.l.b16 %v187
    %v1917 = vunpack.c.h.b16 %v187
    %v1918 = vunpack.c.l.b16 %v188
    %v1919 = vunpack.c.h.b16 %v188
    %v1920 = vunpack.c.l.b16 %v189
    %v1921 = vunpack.c.h.b16 %v189
    %v1922 = vunpack.c.l.b16 %v190
    %v1923 = vunpack.c.h.b16 %v190
    %v1924 = vunpack.c.l.b16 %v191
    %v1925 = vunpack.c.h.b16 %v191
    %v1926 = vunpack.c.l.b16 %v192
    %v1927 = vunpack.c.h.b16 %v192
    %v1928 = vunpack.c.l.b16 %v193
    %v1929 = vunpack.c.h.b16 %v193
    %v1930 = vunpack.c.l.b16 %v194
    %v1931 = vunpack.c.h.b16 %v194
    %v1932 = vunpack.c.l.b16 %v195
    %v1933 = vunpack.c.h.b16 %v195
    %v1934 = vunpack.c.l.b16 %v196
    %v1935 = vunpack.c.h.b16 %v196
    %v1936 = vunpack.c.l.b16 %v197
    %v1937 = vunpack.c.h.b16 %v197
    %v1938 = vunpack.c.l.b16 %v198
    %v1939 = vunpack.c.h.b16 %v198
    %v1940 = vunpack.c.l.b16 %v199
    %v1941 = vunpack.c.h.b16 %v199
    %v1942 = vunpack.c.l.b16 %v200
    %v1943 = vunpack.c.h.b16 %v200
    %v1944 = vunpack.c.l.b16 %v201
    %v1945 = vunpack.c.h.b16 %v201
    %v1946 = vunpack.c.l.b16 %v202
    %v1947 = vunpack.c.h.b16 %v202
    %v1948 = vunpack.c.l.b16 %v203
    %v1949 = vunpack.c.h.b16 %v203
    %v1950 = vunpack.c.l.b16 %v204
    %v1951 = vunpack.c.h.b16 %v204
    %v1952 = vunpack.c.l.b16 %v205
    %v1953 = vunpack.c.h.b16 %v205
    %v1954 = vunpack.c.l.b16 %v206
    %v1955 = vunpack.c.h.b16 %v206
    %v1956 = vunpack.c.l.b16 %v207
    %v1957 = vunpack.c.h.b16 %v207
    %v1958 = vunpack.c.l.b16 %v208
    %v1959 = vunpack.c.h.b16 %v208
    %v1960 = vunpack.c.l.b16 %v209
    %v1961 = vunpack.c.h.b16 %v209
    %v1962 = vunpack.c.l.b16 %v210
    %v1963 = vunpack.c.h.b16 %v210
    %v1964 = vunpack.c.l.b16 %v211
    %v1965 = vunpack.c.h.b16 %v211
    %v1966 = vunpack.c.l.b16 %v212
    %v1967 = vunpack.c.h.b16 %v212
    %v1968 = vunpack.c.l.b16 %v213
    %v1969 = vunpack.c.h.b16 %v213
    %v1970 = vunpack.c.l.b16 %v214
    %v1971 = vunpack.c.h.b16 %v214
    %v1972 = vunpack.c.l.b16 %v215
    %v1973 = vunpack.c.h.b16 %v215
    %v1974 = vunpack.c.l.b16 %v216
    %v1975 = vunpack.c.h.b16 %v216
    %v1976 = vunpack.c.l.b16 %v217
    %v1977 = vunpack.c.h.b16 %v217
    %v1978 = vunpack.c.l.b16 %v218
    %v1979 = vunpack.c.h.b16 %v218
    %v1980 = vunpack.c.l.b16 %v219
    %v1981 = vunpack.c.h.b16 %v219
    %v1982 = vunpack.c.l.b16 %v220
    %v1983 = vunpack.c.h.b16 %v220
    %v1984 = vunpack.c.l.b16 %v221
    %v1985 = vunpack.c.h.b16 %v221
    %v1986 = vunpack.c.l.b16 %v222
    %v1987 = vunpack.c.h.b16 %v222
    %v1988 = vunpack.c.l.b16 %v223
    %v1989 = vunpack.c.h.b16 %v223
    %v1990 = vunpack.c.l.b16 %v224
    %v1991 = vunpack.c.h.b16 %v224
    %v1992 = vunpack.c.l.b16 %v225
    %v1993 = vunpack.c.h.b16 %v225
    %v1994 = vunpack.c.l.b16 %v226
    %v1995 = vunpack.c.h.b16 %v226
    %v1996 = vunpack.c.l.b16 %v227
    %v1997 = vunpack.c.h.b16 %v227
    %v1998 = vunpack.c.l.b16 %v228
    %v1999 = vunpack.c.h.b16 %v228
    %v2000 = vunpack.c.l.b16 %v229
    %v2001 = vunpack.c.h.b16 %v229
    %v2002 = vunpack.c.l.b16 %v230
    %v2003 = vunpack.c.h.b16 %v230
    %v2004 = vunpack.c.l.b16 %v231
    %v2005 = vunpack.c.h.b16 %v231
    %v2006 = vunpack.c.l.b16 %v232
    %v2007 = vunpack.c.h.b16 %v232
    %v2008 = vunpack.c.l.b16 %v233
    %v2009 = vunpack.c.h.b16 %v233
    %v2010 = vunpack.c.l.b16 %v234
    %v2011 = vunpack.c.h.b16 %v234
    %v2012 = vunpack.c.l.b16 %v235
    %v2013 = vunpack.c.h.b16 %v235
    %v2014 = vunpack.c.l.b16 %v236
    %v2015 = vunpack.c.h.b16 %v236
    %v2016 = vunpack.c.l.b16 %v237
    %v2017 = vunpack.c.h.b16 %v237
    %v2018 = vunpack.c.l.b16 %v238
    %v2019 = vunpack.c.h.b16 %v238
    %v2020 = vunpack.c.l.b16 %v239
    %v2021 = vunpack.c.h.b16 %v239
    %v2022 = vunpack.c.l.b16 %v240
    %v2023 = vunpack.c.h.b16 %v240
    %v2024 = vunpack.c.l.b16 %v241
    %v2025 = vunpack.c.h.b16 %v241
    %v2026 = vunpack.c.l.b16 %v242
    %v2027 = vunpack.c.h.b16 %v242
    %v2028 = vunpack.c.l.b16 %v243
    %v2029 = vunpack.c.h.b16 %v243
    %v2030 = vunpack.c.l.b16 %v244
    %v2031 = vunpack.c.h.b16 %v244
    %v2032 = vunpack.c.l.b16 %v245
    %v2033 = vunpack.c.h.b16 %v245
    %v2034 = vunpack.c.l.b16 %v246
    %v2035 = vunpack.c.h.b16 %v246
    %v2036 = vunpack.c.l.b16 %v247
    %v2037 = vunpack.c.h.b16 %v247
    %v2038 = vunpack.c.l.b16 %v248
    %v2039 = vunpack.c.h.b16 %v248
    %v2040 = vunpack.c.l.b16 %v249
    %v2041 = vunpack.c.h.b16 %v249
    %v2042 = vunpack.c.l.b16 %v250
    %v2043 = vunpack.c.h.b16 %v250
    %v2044 = vunpack.c.l.b16 %v251
    %v2045 = vunpack.c.h.b16 %v251
    %v2046 = vunpack.c.l.b16 %v252
    %v2047 = vunpack.c.h.b16 %v252
    %v2048 = vunpack.c.l.b16 %v253
    %v2049 = vunpack.c.h.b16 %v253
    %v2050 = vunpack.c.l.b16 %v254
    %v2051 = vunpack.c.h.b16 %v254
    %v2052 = vunpack.c.l.b16 %v255
    %v2053 = vunpack.c.h.b16 %v255
    %v2054 = vunpack.c.l.b16 %v256
    %v2055 = vunpack.c.h.b16 %v256
    %v2056 = vunpack.c.l.b16 %v257
    %v2057 = vunpack.c.h.b16 %v257
    %v2058 = vunpack.c.l.b16 %v258
    %v2059 = vunpack.c.h.b16 %v258
    %v2060 = vunpack.c.l.b16 %v259
    %v2061 = vunpack.c.h.b16 %v259
    %v2062 = vunpack.c.l.b16 %v260
    %v2063 = vunpack.c.h.b16 %v260
    %v2064 = vunpack.c.l.b16 %v261
    %v2065 = vunpack.c.h.b16 %v261
    %v2066 = vunpack.c.l.b16 %v262
    %v2067 = vunpack.c.h.b16 %v262
    %v2068 = vunpack.c.l.b16 %v263
    %v2069 = vunpack.c.h.b16 %v263
    %v2070 = vunpack.c.l.b16 %v264
    %v2071 = vunpack.c.h.b16 %v264
    %v2072 = vunpack.c.l.b16 %v265
    %v2073 = vunpack.c.h.b16 %v265
    %v2074 = vunpack.c.l.b16 %v266
    %v2075 = vunpack.c.h.b16 %v266
    %v2076 = vunpack.c.l.b16 %v267
    %v2077 = vunpack.c.h.b16 %v267
    %v2078 = vunpack.c.l.b16 %v268
    %v2079 = vunpack.c.h.b16 %v268
    %v2080 = vunpack.c.l.b16 %v269
    %v2081 = vunpack.c.h.b16 %v269
    %v2082 = vunpack.c.l.b16 %v270
    %v2083 = vunpack.c.h.b16 %v270
    %v2084 = vunpack.c.l.b16 %v271
    %v2085 = vunpack.c.h.b16 %v271
    %v2086 = vunpack.c.l.b16 %v272
    %v2087 = vunpack.c.h.b16 %v272
    %v2088 = vunpack.c.l.b16 %v273
    %v2089 = vunpack.c.h.b16 %v273
    %v2090 = vunpack.c.l.b16 %v274
    %v2091 = vunpack.c.h.b16 %v274
    %v2092 = vunpack.c.l.b16 %v275
    %v2093 = vunpack.c.h.b16 %v275
    %v2094 = vunpack.c.l.b16 %v276
    %v2095 = vunpack.c.h.b16 %v276
    %v2096 = vunpack.c.l.b16 %v277
    %v2097 = vunpack.c.h.b16 %v277
    %v2098 = vunpack.c.l.b16 %v278
    %v2099 = vunpack.c.h.b16 %v278
    %v2100 = vunpack.c.l.b16 %v279
    %v2101 = vunpack.c.h.b16 %v279
    %v2102 = vunpack.c.l.b16 %v280
    %v2103 = vunpack.c.h.b16 %v280
    %v2104 = vunpack.c.l.b16 %v281
    %v2105 = vunpack.c.h.b16 %v281
    %v2106 = vunpack.c.l.b16 %v282
    %v2107 = vunpack.c.h.b16 %v282
    %v2108 = vunpack.c.l.b16 %v283
    %v2109 = vunpack.c.h.b16 %v283
    %v2110 = vunpack.c.l.b16 %v284
    %v2111 = vunpack.c.h.b16 %v284
    %v2112 = vunpack.c.l.b16 %v285
    %v2113 = vunpack.c.h.b16 %v285
    %v2114 = vunpack.c.l.b16 %v286
    %v2115 = vunpack.c.h.b16 %v286
    %v2116 = vunpack.c.l.b16 %v287
    %v2117 = vunpack.c.h.b16 %v287
    %v2118 = vunpack.c.l.b16 %v288
    %v2119 = vunpack.c.h.b16 %v288
    %v2120 = vunpack.c.l.b16 %v289
    %v2121 = vunpack.c.h.b16 %v289
    %v2122 = vunpack.c.l.b16 %v290
    %v2123 = vunpack.c.h.b16 %v290
    %v2124 = vunpack.c.l.b16 %v291
    %v2125 = vunpack.c.h.b16 %v291
    %v2126 = vunpack.c.l.b16 %v292
    %v2127 = vunpack.c.h.b16 %v292
    %v2128 = vunpack.c.l.b16 %v293
    %v2129 = vunpack.c.h.b16 %v293
    %v2130 = vunpack.c.l.b16 %v294
    %v2131 = vunpack.c.h.b16 %v294
    %v2132 = vunpack.c.l.b16 %v295
    %v2133 = vunpack.c.h.b16 %v295
    %v2134 = vunpack.c.l.b16 %v296
    %v2135 = vunpack.c.h.b16 %v296
    %v2136 = vunpack.c.l.b16 %v297
    %v2137 = vunpack.c.h.b16 %v297
    %v2138 = vunpack.c.l.b16 %v298
    %v2139 = vunpack.c.h.b16 %v298
    %v2140 = vunpack.c.l.b16 %v299
    %v2141 = vunpack.c.h.b16 %v299
    %v2142 = vunpack.c.l.b16 %v300
    %v2143 = vunpack.c.h.b16 %v300
    %v2144 = vunpack.c.l.b16 %v301
    %v2145 = vunpack.c.h.b16 %v301
    %v2146 = vunpack.c.l.b16 %v302
    %v2147 = vunpack.c.h.b16 %v302
    %v2148 = vunpack.c.l.b16 %v303
    %v2149 = vunpack.c.h.b16 %v303
    %v2150 = vunpack.c.l.b16 %v304
    %v2151 = vunpack.c.h.b16 %v304
    %v2152 = vunpack.c.l.b16 %v305
    %v2153 = vunpack.c.h.b16 %v305
    %v2154 = vunpack.c.l.b16 %v306
    %v2155 = vunpack.c.h.b16 %v306
    %v2156 = vunpack.c.l.b16 %v307
    %v2157 = vunpack.c.h.b16 %v307
    %v2158 = vunpack.c.l.b16 %v308
    %v2159 = vunpack.c.h.b16 %v308
    %v2160 = vunpack.c.l.b16 %v309
    %v2161 = vunpack.c.h.b16 %v309
    %v2162 = vunpack.c.l.b16 %v310
    %v2163 = vunpack.c.h.b16 %v310
    %v2164 = vunpack.c.l.b16 %v311
    %v2165 = vunpack.c.h.b16 %v311
    %v2166 = vunpack.c.l.b16 %v312
    %v2167 = vunpack.c.h.b16 %v312
    %v2168 = vunpack.c.l.b16 %v313
    %v2169 = vunpack.c.h.b16 %v313
    %v2170 = vunpack.c.l.b16 %v314
    %v2171 = vunpack.c.h.b16 %v314
    %v2172 = vunpack.c.l.b16 %v315
    %v2173 = vunpack.c.h.b16 %v315
    %v2174 = vunpack.c.l.b16 %v316
    %v2175 = vunpack.c.h.b16 %v316
    %v2176 = vunpack.c.l.b16 %v317
    %v2177 = vunpack.c.h.b16 %v317
    %v2178 = vunpack.c.l.b16 %v318
    %v2179 = vunpack.c.h.b16 %v318
    %v2180 = vunpack.c.l.b16 %v319
    %v2181 = vunpack.c.h.b16 %v319
    %v2182 = vunpack.c.l.b16 %v320
    %v2183 = vunpack.c.h.b16 %v320
    %v2184 = vunpack.c.l.b16 %v321
    %v2185 = vunpack.c.h.b16 %v321
    %v2186 = vunpack.c.l.b16 %v322
    %v2187 = vunpack.c.h.b16 %v322
    %v2188 = vunpack.c.l.b16 %v323
    %v2189 = vunpack.c.h.b16 %v323
    %v2190 = vunpack.c.l.b16 %v324
    %v2191 = vunpack.c.h.b16 %v324
    %v2192 = vunpack.c.l.b16 %v325
    %v2193 = vunpack.c.h.b16 %v325
    %v2194 = vunpack.c.l.b16 %v326
    %v2195 = vunpack.c.h.b16 %v326
    %v2196 = vunpack.c.l.b16 %v327
    %v2197 = vunpack.c.h.b16 %v327
    %v2198 = vunpack.c.l.b16 %v328
    %v2199 = vunpack.c.h.b16 %v328
    %v2200 = vunpack.c.l.b16 %v329
    %v2201 = vunpack.c.h.b16 %v329
    %v2202 = vunpack.c.l.b16 %v330
    %v2203 = vunpack.c.h.b16 %v330
    %v2204 = vunpack.c.l.b16 %v331
    %v2205 = vunpack.c.h.b16 %v331
    %v2206 = vunpack.c.l.b16 %v332
    %v2207 = vunpack.c.h.b16 %v332
    %v2208 = vunpack.c.l.b16 %v333
    %v2209 = vunpack.c.h.b16 %v333
    %v2210 = vunpack.c.l.b16 %v334
    %v2211 = vunpack.c.h.b16 %v334
    %v2212 = vunpack.c.l.b16 %v335
    %v2213 = vunpack.c.h.b16 %v335
    %v2214 = vunpack.c.l.b16 %v336
    %v2215 = vunpack.c.h.b16 %v336
    %v2216 = vunpack.c.l.b16 %v337
    %v2217 = vunpack.c.h.b16 %v337
    %v2218 = vunpack.c.l.b16 %v338
    %v2219 = vunpack.c.h.b16 %v338
    %v2220 = vunpack.c.l.b16 %v339
    %v2221 = vunpack.c.h.b16 %v339
    %v2222 = vunpack.c.l.b16 %v340
    %v2223 = vunpack.c.h.b16 %v340
    %v2224 = vunpack.c.l.b16 %v341
    %v2225 = vunpack.c.h.b16 %v341
    %v2226 = vunpack.c.l.b16 %v342
    %v2227 = vunpack.c.h.b16 %v342
    %v2228 = vunpack.c.l.b16 %v343
    %v2229 = vunpack.c.h.b16 %v343
    %v2230 = vunpack.c.l.b16 %v344
    %v2231 = vunpack.c.h.b16 %v344
    %v2232 = vunpack.c.l.b16 %v345
    %v2233 = vunpack.c.h.b16 %v345
    %v2234 = vunpack.c.l.b16 %v346
    %v2235 = vunpack.c.h.b16 %v346
    %v2236 = vunpack.c.l.b16 %v347
    %v2237 = vunpack.c.h.b16 %v347
    %v2238 = vunpack.c.l.b16 %v348
    %v2239 = vunpack.c.h.b16 %v348
    %v2240 = vunpack.c.l.b16 %v349
    %v2241 = vunpack.c.h.b16 %v349
    %v2242 = vunpack.c.l.b16 %v350
    %v2243 = vunpack.c.h.b16 %v350
    %v2244 = vunpack.c.l.b16 %v351
    %v2245 = vunpack.c.h.b16 %v351
    %v2246 = vunpack.c.l.b16 %v352
    %v2247 = vunpack.c.h.b16 %v352
    %v2248 = vunpack.c.l.b16 %v353
    %v2249 = vunpack.c.h.b16 %v353
    %v2250 = vunpack.c.l.b16 %v354
    %v2251 = vunpack.c.h.b16 %v354
    %v2252 = vunpack.c.l.b16 %v355
    %v2253 = vunpack.c.h.b16 %v355
    %v2254 = vunpack.c.l.b16 %v356
    %v2255 = vunpack.c.h.b16 %v356
    %v2256 = vunpack.c.l.b16 %v357
    %v2257 = vunpack.c.h.b16 %v357
    %v2258 = vunpack.c.l.b16 %v358
    %v2259 = vunpack.c.h.b16 %v358
    %v2260 = vunpack.c.l.b16 %v359
    %v2261 = vunpack.c.h.b16 %v359
    %v2262 = vunpack.c.l.b16 %v360
    %v2263 = vunpack.c.h.b16 %v360
    %v2264 = vunpack.c.l.b16 %v361
    %v2265 = vunpack.c.h.b16 %v361
    %v2266 = vunpack.c.l.b16 %v362
    %v2267 = vunpack.c.h.b16 %v362
    %v2268 = vunpack.c.l.b16 %v363
    %v2269 = vunpack.c.h.b16 %v363
    %v2270 = vunpack.c.l.b16 %v364
    %v2271 = vunpack.c.h.b16 %v364
    %v2272 = vunpack.c.l.b16 %v365
    %v2273 = vunpack.c.h.b16 %v365
    %v2274 = vunpack.c.l.b16 %v366
    %v2275 = vunpack.c.h.b16 %v366
    %v2276 = vunpack.c.l.b16 %v367
    %v2277 = vunpack.c.h.b16 %v367
    %v2278 = vunpack.c.l.b16 %v368
    %v2279 = vunpack.c.h.b16 %v368
    %v2280 = vunpack.c.l.b16 %v369
    %v2281 = vunpack.c.h.b16 %v369
    %v2282 = vunpack.c.l.b16 %v370
    %v2283 = vunpack.c.h.b16 %v370
    %v2284 = vunpack.c.l.b16 %v371
    %v2285 = vunpack.c.h.b16 %v371
    %v2286 = vunpack.c.l.b16 %v372
    %v2287 = vunpack.c.h.b16 %v372
    %v2288 = vunpack.c.l.b16 %v373
    %v2289 = vunpack.c.h.b16 %v373
    %v2290 = vunpack.c.l.b16 %v374
    %v2291 = vunpack.c.h.b16 %v374
    %v2292 = vunpack.c.l.b16 %v375
    %v2293 = vunpack.c.h.b16 %v375
    %v2294 = vunpack.c.l.b16 %v376
    %v2295 = vunpack.c.h.b16 %v376
    %v2296 = vunpack.c.l.b16 %v377
    %v2297 = vunpack.c.h.b16 %v377
    %v2298 = vunpack.c.l.b16 %v378
    %v2299 = vunpack.c.h.b16 %v378
    %v2300 = vunpack.c.l.b16 %v379
    %v2301 = vunpack.c.h.b16 %v379
    %v2302 = vunpack.c.l.b16 %v380
    %v2303 = vunpack.c.h.b16 %v380
    %v2304 = vunpack.c.l.b16 %v381
    %v2305 = vunpack.c.h.b16 %v381
    %v2306 = vunpack.c.l.b16 %v382
    %v2307 = vunpack.c.h.b16 %v382
    %v2308 = vunpack.c.l.b16 %v383
    %v2309 = vunpack.c.h.b16 %v383
    %v2310 = vunpack.c.l.b16 %v384
    %v2311 = vunpack.c.h.b16 %v384
    %v2312 = vunpack.c.l.b16 %v385
    %v2313 = vunpack.c.h.b16 %v385
    %v2314 = vunpack.c.l.b16 %v386
    %v2315 = vunpack.c.h.b16 %v386
    %v2316 = vunpack.c.l.b16 %v387
    %v2317 = vunpack.c.h.b16 %v387
    %v2318 = vunpack.c.l.b16 %v388
    %v2319 = vunpack.c.h.b16 %v388
    %v2320 = vunpack.c.l.b16 %v389
    %v2321 = vunpack.c.h.b16 %v389
    %v2322 = vunpack.c.l.b16 %v390
    %v2323 = vunpack.c.h.b16 %v390
    %v2324 = vunpack.c.l.b16 %v391
    %v2325 = vunpack.c.h.b16 %v391
    %v2326 = vunpack.c.l.b16 %v392
    %v2327 = vunpack.c.h.b16 %v392
    %v2328 = vunpack.c.l.b16 %v393
    %v2329 = vunpack.c.h.b16 %v393
    %v2330 = vunpack.c.l.b16 %v394
    %v2331 = vunpack.c.h.b16 %v394
    %v2332 = vunpack.c.l.b16 %v395
    %v2333 = vunpack.c.h.b16 %v395
    %v2334 = vunpack.c.l.b16 %v396
    %v2335 = vunpack.c.h.b16 %v396
    %v2336 = vunpack.c.l.b16 %v397
    %v2337 = vunpack.c.h.b16 %v397
    %v2338 = vunpack.c.l.b16 %v398
    %v2339 = vunpack.c.h.b16 %v398
    %v2340 = vunpack.c.l.b16 %v399
    %v2341 = vunpack.c.h.b16 %v399
    %v2342 = vunpack.c.l.b16 %v400
    %v2343 = vunpack.c.h.b16 %v400
    %v2344 = vunpack.c.l.b16 %v401
    %v2345 = vunpack.c.h.b16 %v401
    %v2346 = vunpack.c.l.b16 %v402
    %v2347 = vunpack.c.h.b16 %v402
    %v2348 = vunpack.c.l.b16 %v403
    %v2349 = vunpack.c.h.b16 %v403
    %v2350 = vunpack.c.l.b16 %v404
    %v2351 = vunpack.c.h.b16 %v404
    %v2352 = vunpack.c.l.b16 %v405
    %v2353 = vunpack.c.h.b16 %v405
    %v2354 = vunpack.c.l.b16 %v406
    %v2355 = vunpack.c.h.b16 %v406
    %v2356 = vunpack.c.l.b16 %v407
    %v2357 = vunpack.c.h.b16 %v407
    %v2358 = vunpack.c.l.b16 %v408
    %v2359 = vunpack.c.h.b16 %v408
    %v2360 = vunpack.c.l.b16 %v409
    %v2361 = vunpack.c.h.b16 %v409
    %v2362 = vunpack.c.l.b16 %v410
    %v2363 = vunpack.c.h.b16 %v410
    %v2364 = vunpack.c.l.b16 %v411
    %v2365 = vunpack.c.h.b16 %v411
    %v2366 = vunpack.c.l.b16 %v412
    %v2367 = vunpack.c.h.b16 %v412
    %v2368 = vunpack.c.l.b16 %v413
    %v2369 = vunpack.c.h.b16 %v413
    %v2370 = vunpack.c.l.b16 %v414
    %v2371 = vunpack.c.h.b16 %v414
    %v2372 = vunpack.c.l.b16 %v415
    %v2373 = vunpack.c.h.b16 %v415
    %v2374 = vunpack.c.l.b16 %v416
    %v2375 = vunpack.c.h.b16 %v416
    %v2376 = vunpack.c.l.b16 %v417
    %v2377 = vunpack.c.h.b16 %v417
    %v2378 = vunpack.c.l.b16 %v418
    %v2379 = vunpack.c.h.b16 %v418
    %v2380 = vunpack.c.l.b16 %v419
    %v2381 = vunpack.c.h.b16 %v419
    %v2382 = vunpack.c.l.b16 %v420
    %v2383 = vunpack.c.h.b16 %v420
    %v2384 = vunpack.c.l.b16 %v421
    %v2385 = vunpack.c.h.b16 %v421
    %v2386 = vunpack.c.l.b16 %v422
    %v2387 = vunpack.c.h.b16 %v422
    %v2388 = vunpack.c.l.b16 %v423
    %v2389 = vunpack.c.h.b16 %v423
    %v2390 = vunpack.c.l.b16 %v424
    %v2391 = vunpack.c.h.b16 %v424
    %v2392 = vunpack.c.l.b16 %v425
    %v2393 = vunpack.c.h.b16 %v425
    %v2394 = vunpack.c.l.b16 %v426
    %v2395 = vunpack.c.h.b16 %v426
    %v2396 = vunpack.c.l.b16 %v427
    %v2397 = vunpack.c.h.b16 %v427
    %v2398 = vunpack.c.l.b16 %v428
    %v2399 = vunpack.c.h.b16 %v428
    %v2400 = vunpack.c.l.b16 %v429
    %v2401 = vunpack.c.h.b16 %v429
    %v2402 = vunpack.c.l.b16 %v430
    %v2403 = vunpack.c.h.b16 %v430
    %v2404 = vunpack.c.l.b16 %v431
    %v2405 = vunpack.c.h.b16 %v431
    %v2406 = vunpack.c.l.b16 %v432
    %v2407 = vunpack.c.h.b16 %v432
    %v2408 = vunpack.c.l.b16 %v433
    %v2409 = vunpack.c.h.b16 %v433
    %v2410 = vunpack.c.l.b16 %v434
    %v2411 = vunpack.c.h.b16 %v434
    %v2412 = vunpack.c.l.b16 %v435
    %v2413 = vunpack.c.h.b16 %v435
    %v2414 = vunpack.c.l.b16 %v436
    %v2415 = vunpack.c.h.b16 %v436
    %v2416 = vunpack.c.l.b16 %v437
    %v2417 = vunpack.c.h.b16 %v437
    %v2418 = vunpack.c.l.b16 %v438
    %v2419 = vunpack.c.h.b16 %v438
    %v2420 = vunpack.c.l.b16 %v439
    %v2421 = vunpack.c.h.b16 %v439
    %v2422 = vunpack.c.l.b16 %v440
    %v2423 = vunpack.c.h.b16 %v440
    %v2424 = vunpack.c.l.b16 %v441
    %v2425 = vunpack.c.h.b16 %v441
    %v2426 = vunpack.c.l.b16 %v442
    %v2427 = vunpack.c.h.b16 %v442
    %v2428 = vunpack.c.l.b16 %v443
    %v2429 = vunpack.c.h.b16 %v443
    %v2430 = vunpack.c.l.b16 %v444
    %v2431 = vunpack.c.h.b16 %v444
    %v2432 = vunpack.c.l.b16 %v445
    %v2433 = vunpack.c.h.b16 %v445
    %v2434 = vunpack.c.l.b16 %v446
    %v2435 = vunpack.c.h.b16 %v446
    %v2436 = vunpack.c.l.b16 %v447
    %v2437 = vunpack.c.h.b16 %v447
    %v2438 = vunpack.c.l.b16 %v448
    %v2439 = vunpack.c.h.b16 %v448
    %v2440 = vunpack.c.l.b16 %v449
    %v2441 = vunpack.c.h.b16 %v449
    %v2442 = vunpack.c.l.b16 %v450
    %v2443 = vunpack.c.h.b16 %v450
    %v2444 = vunpack.c.l.b16 %v451
    %v2445 = vunpack.c.h.b16 %v451
    %v2446 = vunpack.c.l.b16 %v452
    %v2447 = vunpack.c.h.b16 %v452
    %v2448 = vunpack.c.l.b16 %v453
    %v2449 = vunpack.c.h.b16 %v453
    %v2450 = vunpack.c.l.b16 %v454
    %v2451 = vunpack.c.h.b16 %v454
    %v2452 = vunpack.c.l.b16 %v455
    %v2453 = vunpack.c.h.b16 %v455
    %v2454 = vunpack.c.l.b16 %v456
    %v2455 = vunpack.c.h.b16 %v456
    %v2456 = vunpack.c.l.b16 %v457
    %v2457 = vunpack.c.h.b16 %v457
    %v2458 = vunpack.c.l.b16 %v458
    %v2459 = vunpack.c.h.b16 %v458
    %v2460 = vunpack.c.l.b16 %v459
    %v2461 = vunpack.c.h.b16 %v459
    %v2462 = vunpack.c.l.b16 %v460
    %v2463 = vunpack.c.h.b16 %v460
    %v2464 = vunpack.c.l.b16 %v461
    %v2465 = vunpack.c.h.b16 %v461
    %v2466 = vunpack.c.l.b16 %v462
    %v2467 = vunpack.c.h.b16 %v462
    %v2468 = vunpack.c.l.b16 %v463
    %v2469 = vunpack.c.h.b16 %v463
    %v2470 = vunpack.c.l.b16 %v464
    %v2471 = vunpack.c.h.b16 %v464
    %v2472 = vunpack.c.l.b16 %v465
    %v2473 = vunpack.c.h.b16 %v465
    %v2474 = vunpack.c.l.b16 %v466
    %v2475 = vunpack.c.h.b16 %v466
    %v2476 = vunpack.c.l.b16 %v467
    %v2477 = vunpack.c.h.b16 %v467
    %v2478 = vunpack.c.l.b16 %v468
    %v2479 = vunpack.c.h.b16 %v468
    %v2480 = vunpack.c.l.b16 %v469
    %v2481 = vunpack.c.h.b16 %v469
    %v2482 = vunpack.c.l.b16 %v470
    %v2483 = vunpack.c.h.b16 %v470
    %v2484 = vunpack.c.l.b16 %v471
    %v2485 = vunpack.c.h.b16 %v471
    %v2486 = vunpack.c.l.b16 %v472
    %v2487 = vunpack.c.h.b16 %v472
    %v2488 = vunpack.c.l.b16 %v473
    %v2489 = vunpack.c.h.b16 %v473
    %v2490 = vunpack.c.l.b16 %v474
    %v2491 = vunpack.c.h.b16 %v474
    %v2492 = vunpack.c.l.b16 %v475
    %v2493 = vunpack.c.h.b16 %v475
    %v2494 = vunpack.c.l.b16 %v476
    %v2495 = vunpack.c.h.b16 %v476
    %v2496 = vunpack.c.l.b16 %v477
    %v2497 = vunpack.c.h.b16 %v477
    %v2498 = vunpack.c.l.b16 %v478
    %v2499 = vunpack.c.h.b16 %v478
    %v2500 = vunpack.c.l.b16 %v479
    %v2501 = vunpack.c.h.b16 %v479
    %v2502 = vunpack.c.l.b16 %v480
    %v2503 = vunpack.c.h.b16 %v480
    %v2504 = vunpack.c.l.b16 %v481
    %v2505 = vunpack.c.h.b16 %v481
    %v2506 = vunpack.c.l.b16 %v482
    %v2507 = vunpack.c.h.b16 %v482
    %v2508 = vunpack.c.l.b16 %v483
    %v2509 = vunpack.c.h.b16 %v483
    %v2510 = vunpack.c.l.b16 %v484
    %v2511 = vunpack.c.h.b16 %v484
    %v2512 = vunpack.c.l.b16 %v485
    %v2513 = vunpack.c.h.b16 %v485
    %v2514 = vunpack.c.l.b16 %v486
    %v2515 = vunpack.c.h.b16 %v486
    %v2516 = vunpack.c.l.b16 %v487
    %v2517 = vunpack.c.h.b16 %v487
    %v2518 = vunpack.c.l.b16 %v488
    %v2519 = vunpack.c.h.b16 %v488
    %v2520 = vunpack.c.l.b16 %v489
    %v2521 = vunpack.c.h.b16 %v489
    %v2522 = vunpack.c.l.b16 %v490
    %v2523 = vunpack.c.h.b16 %v490
    %v2524 = vunpack.c.l.b16 %v491
    %v2525 = vunpack.c.h.b16 %v491
    %v2526 = vunpack.c.l.b16 %v492
    %v2527 = vunpack.c.h.b16 %v492
    %v2528 = vunpack.c.l.b16 %v493
    %v2529 = vunpack.c.h.b16 %v493
    %v2530 = vunpack.c.l.b16 %v494
    %v2531 = vunpack.c.h.b16 %v494
    %v2532 = vunpack.c.l.b16 %v495
    %v2533 = vunpack.c.h.b16 %v495
    %v2534 = vunpack.c.l.b16 %v496
    %v2535 = vunpack.c.h.b16 %v496
    %v2536 = vunpack.c.l.b16 %v497
    %v2537 = vunpack.c.h.b16 %v497
    %v2538 = vunpack.c.l.b16 %v498
    %v2539 = vunpack.c.h.b16 %v498
    %v2540 = vunpack.c.l.b16 %v499
    %v2541 = vunpack.c.h.b16 %v499
    %v2542 = vunpack.c.l.b16 %v500
    %v2543 = vunpack.c.h.b16 %v500
    %v2544 = vunpack.c.l.b16 %v501
    %v2545 = vunpack.c.h.b16 %v501
    %v2546 = vunpack.c.l.b16 %v502
    %v2547 = vunpack.c.h.b16 %v502
    %v2548 = vunpack.c.l.b16 %v503
    %v2549 = vunpack.c.h.b16 %v503
    %v2550 = vunpack.c.l.b16 %v504
    %v2551 = vunpack.c.h.b16 %v504
    %v2552 = vunpack.c.l.b16 %v505
    %v2553 = vunpack.c.h.b16 %v505
    %v2554 = vunpack.c.l.b16 %v506
    %v2555 = vunpack.c.h.b16 %v506
    %v2556 = vunpack.c.l.b16 %v507
    %v2557 = vunpack.c.h.b16 %v507
    %v2558 = vunpack.c.l.b16 %v508
    %v2559 = vunpack.c.h.b16 %v508
    %v2560 = vunpack.c.l.b16 %v509
    %v2561 = vunpack.c.h.b16 %v509
    %v2562 = vunpack.c.l.b16 %v510
    %v2563 = vunpack.c.h.b16 %v510
    %v2564 = vunpack.c.l.b16 %v511
    %v2565 = vunpack.c.h.b16 %v511
    %v2566 = vunpack.c.l.b16 %v512
    %v2567 = vunpack.c.h.b16 %v512
    %v2568 = vunpack.c.l.b16 %v513
    %v2569 = vunpack.c.h.b16 %v513
    %v2570 = vunpack.c.l.b16 %v514
    %v2571 = vunpack.c.h.b16 %v514
    %v2572 = vunpack.c.l.b16 %v515
    %v2573 = vunpack.c.h.b16 %v515
    %v2574 = vunpack.c.l.b16 %v516
    %v2575 = vunpack.c.h.b16 %v516
    %v2576 = vunpack.c.l.b16 %v517
    %v2577 = vunpack.c.h.b16 %v517
    %v2578 = vunpack.c.l.b16 %v518
    %v2579 = vunpack.c.h.b16 %v518
    %v2580 = vunpack.c.l.b16 %v519
    %v2581 = vunpack.c.h.b16 %v519
    %v2582 = vunpack.c.l.b16 %v520
    %v2583 = vunpack.c.h.b16 %v520
    %v2584 = vunpack.c.l.b16 %v521
    %v2585 = vunpack.c.h.b16 %v521
    %v2586 = vunpack.c.l.b16 %v522
    %v2587 = vunpack.c.h.b16 %v522
    %v2588 = vunpack.c.l.b16 %v523
    %v2589 = vunpack.c.h.b16 %v523
    %v2590 = vunpack.c.l.b16 %v524
    %v2591 = vunpack.c.h.b16 %v524
    %v2592 = vunpack.c.l.b16 %v525
    %v2593 = vunpack.c.h.b16 %v525
    %v2594 = vunpack.c.l.b16 %v526
    %v2595 = vunpack.c.h.b16 %v526
    %v2596 = vunpack.c.l.b16 %v527
    %v2597 = vunpack.c.h.b16 %v527
    %v2598 = vunpack.c.l.b16 %v528
    %v2599 = vunpack.c.h.b16 %v528
    %v2600 = vunpack.c.l.b16 %v529
    %v2601 = vunpack.c.h.b16 %v529
    %v2602 = vunpack.c.l.b16 %v530
    %v2603 = vunpack.c.h.b16 %v530
    %v2604 = vunpack.c.l.b16 %v531
    %v2605 = vunpack.c.h.b16 %v531
    %v2606 = vunpack.c.l.b16 %v532
    %v2607 = vunpack.c.h.b16 %v532
    %v2608 = vunpack.c.l.b16 %v533
    %v2609 = vunpack.c.h.b16 %v533
    %v2610 = vunpack.c.l.b16 %v534
    %v2611 = vunpack.c.h.b16 %v534
    %v2612 = vunpack.c.l.b16 %v535
    %v2613 = vunpack.c.h.b16 %v535
    %v2614 = vunpack.c.l.b16 %v536
    %v2615 = vunpack.c.h.b16 %v536
    %v2616 = vunpack.c.l.b16 %v537
    %v2617 = vunpack.c.h.b16 %v537
    %v2618 = vunpack.c.l.b16 %v538
    %v2619 = vunpack.c.h.b16 %v538
    %v2620 = vunpack.c.l.b16 %v539
    %v2621 = vunpack.c.h.b16 %v539
    %v2622 = vunpack.c.l.b16 %v540
    %v2623 = vunpack.c.h.b16 %v540
    %v2624 = vunpack.c.l.b16 %v541
    %v2625 = vunpack.c.h.b16 %v541
    %v2626 = vunpack.c.l.b16 %v542
    %v2627 = vunpack.c.h.b16 %v542
    %v2628 = vunpack.c.l.b16 %v543
    %v2629 = vunpack.c.h.b16 %v543
    %v2630 = vunpack.c.l.b16 %v544
    %v2631 = vunpack.c.h.b16 %v544
    %v2632 = vunpack.c.l.b16 %v545
    %v2633 = vunpack.c.h.b16 %v545
    %v2634 = vunpack.c.l.b16 %v546
    %v2635 = vunpack.c.h.b16 %v546
    %v2636 = vunpack.c.l.b16 %v547
    %v2637 = vunpack.c.h.b16 %v547
    %v2638 = vunpack.c.l.b16 %v548
    %v2639 = vunpack.c.h.b16 %v548
    %v2640 = vunpack.c.l.b16 %v549
    %v2641 = vunpack.c.h.b16 %v549
    %v2642 = vunpack.c.l.b16 %v550
    %v2643 = vunpack.c.h.b16 %v550
    %v2644 = vunpack.c.l.b16 %v551
    %v2645 = vunpack.c.h.b16 %v551
    %v2646 = vunpack.c.l.b16 %v552
    %v2647 = vunpack.c.h.b16 %v552
    %v2648 = vunpack.c.l.b16 %v553
    %v2649 = vunpack.c.h.b16 %v553
    %v2650 = vunpack.c.l.b16 %v554
    %v2651 = vunpack.c.h.b16 %v554
    %v2652 = vunpack.c.l.b16 %v555
    %v2653 = vunpack.c.h.b16 %v555
    %v2654 = vunpack.c.l.b16 %v556
    %v2655 = vunpack.c.h.b16 %v556
    %v2656 = vunpack.c.l.b16 %v557
    %v2657 = vunpack.c.h.b16 %v557
    %v2658 = vunpack.c.l.b16 %v558
    %v2659 = vunpack.c.h.b16 %v558
    %v2660 = vunpack.c.l.b16 %v559
    %v2661 = vunpack.c.h.b16 %v559
    %v2662 = vunpack.c.l.b16 %v560
    %v2663 = vunpack.c.h.b16 %v560
    %v2664 = vunpack.c.l.b16 %v561
    %v2665 = vunpack.c.h.b16 %v561
    %v2666 = vunpack.c.l.b16 %v562
    %v2667 = vunpack.c.h.b16 %v562
    %v2668 = vunpack.c.l.b16 %v563
    %v2669 = vunpack.c.h.b16 %v563
    %v2670 = vunpack.c.l.b16 %v564
    %v2671 = vunpack.c.h.b16 %v564
    %v2672 = vunpack.c.l.b16 %v565
    %v2673 = vunpack.c.h.b16 %v565
    %v2674 = vunpack.c.l.b16 %v566
    %v2675 = vunpack.c.h.b16 %v566
    %v2676 = vunpack.c.l.b16 %v567
    %v2677 = vunpack.c.h.b16 %v567
    %v2678 = vunpack.c.l.b16 %v568
    %v2679 = vunpack.c.h.b16 %v568
    %v2680 = vunpack.c.l.b16 %v569
    %v2681 = vunpack.c.h.b16 %v569
    %v2682 = vunpack.c.l.b16 %v570
    %v2683 = vunpack.c.h.b16 %v570
    %v2684 = vunpack.c.l.b16 %v571
    %v2685 = vunpack.c.h.b16 %v571
    %v2686 = vunpack.c.l.b16 %v572
    %v2687 = vunpack.c.h.b16 %v572
    %v2688 = vunpack.c.l.b16 %v573
    %v2689 = vunpack.c.h.b16 %v573
    %v2690 = vunpack.c.l.b16 %v574
    %v2691 = vunpack.c.h.b16 %v574
    %v2692 = vunpack.c.l.b16 %v575
    %v2693 = vunpack.c.h.b16 %v575
    %v2694 = vunpack.c.l.b16 %v576
    %v2695 = vunpack.c.h.b16 %v576
    %v2696 = vunpack.c.l.b16 %v577
    %v2697 = vunpack.c.h.b16 %v577
    %v2698 = vunpack.c.l.b16 %v578
    %v2699 = vunpack.c.h.b16 %v578
    %v2700 = vunpack.c.l.b16 %v579
    %v2701 = vunpack.c.h.b16 %v579
    %v2702 = vunpack.c.l.b16 %v580
    %v2703 = vunpack.c.h.b16 %v580
    %v2704 = vunpack.c.l.b16 %v581
    %v2705 = vunpack.c.h.b16 %v581
    %v2706 = vunpack.c.l.b16 %v582
    %v2707 = vunpack.c.h.b16 %v582
    %v2708 = vunpack.c.l.b16 %v583
    %v2709 = vunpack.c.h.b16 %v583
    %v2710 = vunpack.c.l.b16 %v584
    %v2711 = vunpack.c.h.b16 %v584
    %v2712 = vunpack.c.l.b16 %v585
    %v2713 = vunpack.c.h.b16 %v585
    %v2714 = vunpack.c.l.b16 %v586
    %v2715 = vunpack.c.h.b16 %v586
    %v2716 = vunpack.c.l.b16 %v587
    %v2717 = vunpack.c.h.b16 %v587
    %v2718 = vunpack.c.l.b16 %v588
    %v2719 = vunpack.c.h.b16 %v588
    %v2720 = vunpack.c.l.b16 %v589
    %v2721 = vunpack.c.h.b16 %v589
    %v2722 = vunpack.c.l.b16 %v590
    %v2723 = vunpack.c.h.b16 %v590
    %v2724 = vunpack.c.l.b16 %v591
    %v2725 = vunpack.c.h.b16 %v591
    %v2726 = vunpack.c.l.b16 %v592
    %v2727 = vunpack.c.h.b16 %v592
    %v2728 = vunpack.c.l.b16 %v593
    %v2729 = vunpack.c.h.b16 %v593
    %v2730 = vunpack.c.l.b16 %v594
    %v2731 = vunpack.c.h.b16 %v594
    %v2732 = vunpack.c.l.b16 %v595
    %v2733 = vunpack.c.h.b16 %v595
    %v2734 = vunpack.c.l.b16 %v596
    %v2735 = vunpack.c.h.b16 %v596
    %v2736 = vunpack.c.l.b16 %v597
    %v2737 = vunpack.c.h.b16 %v597
    %v2738 = vunpack.c.l.b16 %v598
    %v2739 = vunpack.c.h.b16 %v598
    %v2740 = vunpack.c.l.b16 %v599
    %v2741 = vunpack.c.h.b16 %v599
    %v2742 = vunpack.c.l.b16 %v600
    %v2743 = vunpack.c.h.b16 %v600
    %v2744 = vunpack.c.l.b16 %v601
    %v2745 = vunpack.c.h.b16 %v601
    %v2746 = vunpack.c.l.b16 %v602
    %v2747 = vunpack.c.h.b16 %v602
    %v2748 = vunpack.c.l.b16 %v603
    %v2749 = vunpack.c.h.b16 %v603
    %v2750 = vunpack.c.l.b16 %v604
    %v2751 = vunpack.c.h.b16 %v604
    %v2752 = vunpack.c.l.b16 %v605
    %v2753 = vunpack.c.h.b16 %v605
    %v2754 = vunpack.c.l.b16 %v606
    %v2755 = vunpack.c.h.b16 %v606
    %v2756 = vunpack.c.l.b16 %v607
    %v2757 = vunpack.c.h.b16 %v607
    %v2758 = vunpack.c.l.b16 %v608
    %v2759 = vunpack.c.h.b16 %v608
    %v2760 = vunpack.c.l.b16 %v609
    %v2761 = vunpack.c.h.b16 %v609
    %v2762 = vunpack.c.l.b16 %v610
    %v2763 = vunpack.c.h.b16 %v610
    %v2764 = vunpack.c.l.b16 %v611
    %v2765 = vunpack.c.h.b16 %v611
    %v2766 = vunpack.c.l.b16 %v612
    %v2767 = vunpack.c.h.b16 %v612
    %v2768 = vunpack.c.l.b16 %v613
    %v2769 = vunpack.c.h.b16 %v613
    %v2770 = vunpack.c.l.b16 %v614
    %v2771 = vunpack.c.h.b16 %v614
    %v2772 = vunpack.c.l.b16 %v615
    %v2773 = vunpack.c.h.b16 %v615
    %v2774 = vunpack.c.l.b16 %v616
    %v2775 = vunpack.c.h.b16 %v616
    %v2776 = vunpack.c.l.b16 %v617
    %v2777 = vunpack.c.h.b16 %v617
    %v2778 = vunpack.c.l.b16 %v618
    %v2779 = vunpack.c.h.b16 %v618
    %v2780 = vunpack.c.l.b16 %v619
    %v2781 = vunpack.c.h.b16 %v619
    %v2782 = vunpack.c.l.b16 %v620
    %v2783 = vunpack.c.h.b16 %v620
    %v2784 = vunpack.c.l.b16 %v621
    %v2785 = vunpack.c.h.b16 %v621
    %v2786 = vunpack.c.l.b16 %v622
    %v2787 = vunpack.c.h.b16 %v622
    %v2788 = vunpack.c.l.b16 %v623
    %v2789 = vunpack.c.h.b16 %v623
    %v2790 = vunpack.c.l.b16 %v624
    %v2791 = vunpack.c.h.b16 %v624
    %v2792 = vunpack.c.l.b16 %v625
    %v2793 = vunpack.c.h.b16 %v625
    %v2794 = vunpack.c.l.b16 %v626
    %v2795 = vunpack.c.h.b16 %v626
    %v2796 = vunpack.c.l.b16 %v627
    %v2797 = vunpack.c.h.b16 %v627
    %v2798 = vunpack.c.l.b16 %v628
    %v2799 = vunpack.c.h.b16 %v628
    %v2800 = vunpack.c.l.b16 %v629
    %v2801 = vunpack.c.h.b16 %v629
    %v2802 = vunpack.c.l.b16 %v630
    %v2803 = vunpack.c.h.b16 %v630
    %v2804 = vunpack.c.l.b16 %v631
    %v2805 = vunpack.c.h.b16 %v631
    %v2806 = vunpack.c.l.b16 %v632
    %v2807 = vunpack.c.h.b16 %v632
    %v2808 = vunpack.c.l.b16 %v633
    %v2809 = vunpack.c.h.b16 %v633
    %v2810 = vunpack.c.l.b16 %v634
    %v2811 = vunpack.c.h.b16 %v634
    %v2812 = vunpack.c.l.b16 %v635
    %v2813 = vunpack.c.h.b16 %v635
    %v2814 = vunpack.c.l.b16 %v636
    %v2815 = vunpack.c.h.b16 %v636
    %v2816 = vunpack.c.l.b16 %v637
    %v2817 = vunpack.c.h.b16 %v637
    %v2818 = vunpack.c.l.b16 %v638
    %v2819 = vunpack.c.h.b16 %v638
    %v2820 = vunpack.c.l.b16 %v639
    %v2821 = vunpack.c.h.b16 %v639
    %v2822 = vunpack.c.l.b16 %v640
    %v2823 = vunpack.c.h.b16 %v640
    %v2824 = vunpack.c.l.b16 %v641
    %v2825 = vunpack.c.h.b16 %v641
    %v2826 = vunpack.c.l.b16 %v642
    %v2827 = vunpack.c.h.b16 %v642
    %v2828 = vunpack.c.l.b16 %v643
    %v2829 = vunpack.c.h.b16 %v643
    %v2830 = vunpack.c.l.b16 %v644
    %v2831 = vunpack.c.h.b16 %v644
    %v2832 = vunpack.c.l.b16 %v645
    %v2833 = vunpack.c.h.b16 %v645
    %v2834 = vunpack.c.l.b16 %v646
    %v2835 = vunpack.c.h.b16 %v646
    %v2836 = vpack.c.b16 %v1828, %v1812
    %v2837 = vpack.c.b16 %v1829, %v1813
    %v2838 = vpack.c.b16 %v1830, %v1814
    %v2839 = vpack.c.b16 %v1831, %v1815
    %v2840 = vpack.c.b16 %v1832, %v1816
    %v2841 = vpack.c.b16 %v1833, %v1817
    %v2842 = vpack.c.b16 %v1834, %v1818
    %v2843 = vpack.c.b16 %v1835, %v1819
    %v2844 = vpack.c.b16 %v1836, %v1820
    %v2845 = vpack.c.b16 %v1837, %v1821
    %v2846 = vpack.c.b16 %v1838, %v1822
    %v2847 = vpack.c.b16 %v1839, %v1823
    %v2848 = vpack.c.b16 %v1840, %v1824
    %v2849 = vpack.c.b16 %v1841, %v1825
    %v2850 = vpack.c.b16 %v1842, %v1826
    %v2851 = vpack.c.b16 %v1843, %v1827
    %v2852 = vpack.c.b16 %v1860, %v1844
    %v2853 = vpack.c.b16 %v1861, %v1845
    %v2854 = vpack.c.b16 %v1862, %v1846
    %v2855 = vpack.c.b16 %v1863, %v1847
    %v2856 = vpack.c.b16 %v1864, %v1848
    %v2857 = vpack.c.b16 %v1865, %v1849
    %v2858 = vpack.c.b16 %v1866, %v1850
    %v2859 = vpack.c.b16 %v1867, %v1851
    %v2860 = vpack.c.b16 %v1868, %v1852
    %v2861 = vpack.c.b16 %v1869, %v1853
    %v2862 = vpack.c.b16 %v1870, %v1854
    %v2863 = vpack.c.b16 %v1871, %v1855
    %v2864 = vpack.c.b16 %v1872, %v1856
    %v2865 = vpack.c.b16 %v1873, %v1857
    %v2866 = vpack.c.b16 %v1874, %v1858
    %v2867 = vpack.c.b16 %v1875, %v1859
    %v2868 = vpack.c.b16 %v1892, %v1876
    %v2869 = vpack.c.b16 %v1893, %v1877
    %v2870 = vpack.c.b16 %v1894, %v1878
    %v2871 = vpack.c.b16 %v1895, %v1879
    %v2872 = vpack.c.b16 %v1896, %v1880
    %v2873 = vpack.c.b16 %v1897, %v1881
    %v2874 = vpack.c.b16 %v1898, %v1882
    %v2875 = vpack.c.b16 %v1899, %v1883
    %v2876 = vpack.c.b16 %v1900, %v1884
    %v2877 = vpack.c.b16 %v1901, %v1885
    %v2878 = vpack.c.b16 %v1902, %v1886
    %v2879 = vpack.c.b16 %v1903, %v1887
    %v2880 = vpack.c.b16 %v1904, %v1888
    %v2881 = vpack.c.b16 %v1905, %v1889
    %v2882 = vpack.c.b16 %v1906, %v1890
    %v2883 = vpack.c.b16 %v1907, %v1891
    %v2884 = vpack.c.b16 %v1924, %v1908
    %v2885 = vpack.c.b16 %v1925, %v1909
    %v2886 = vpack.c.b16 %v1926, %v1910
    %v2887 = vpack.c.b16 %v1927, %v1911
    %v2888 = vpack.c.b16 %v1928, %v1912
    %v2889 = vpack.c.b16 %v1929, %v1913
    %v2890 = vpack.c.b16 %v1930, %v1914
    %v2891 = vpack.c.b16 %v1931, %v1915
    %v2892 = vpack.c.b16 %v1932, %v1916
    %v2893 = vpack.c.b16 %v1933, %v1917
    %v2894 = vpack.c.b16 %v1934, %v1918
    %v2895 = vpack.c.b16 %v1935, %v1919
    %v2896 = vpack.c.b16 %v1936, %v1920
    %v2897 = vpack.c.b16 %v1937, %v1921
    %v2898 = vpack.c.b16 %v1938, %v1922
    %v2899 = vpack.c.b16 %v1939, %v1923
    %v2900 = vpack.c.b16 %v1956, %v1940
    %v2901 = vpack.c.b16 %v1957, %v1941
    %v2902 = vpack.c.b16 %v1958, %v1942
    %v2903 = vpack.c.b16 %v1959, %v1943
    %v2904 = vpack.c.b16 %v1960, %v1944
    %v2905 = vpack.c.b16 %v1961, %v1945
    %v2906 = vpack.c.b16 %v1962, %v1946
    %v2907 = vpack.c.b16 %v1963, %v1947
    %v2908 = vpack.c.b16 %v1964, %v1948
    %v2909 = vpack.c.b16 %v1965, %v1949
    %v2910 = vpack.c.b16 %v1966, %v1950
    %v2911 = vpack.c.b16 %v1967, %v1951
    %v2912 = vpack.c.b16 %v1968, %v1952
    %v2913 = vpack.c.b16 %v1969, %v1953
    %v2914 = vpack.c.b16 %v1970, %v1954
    %v2915 = vpack.c.b16 %v1971, %v1955
    %v2916 = vpack.c.b16 %v1988, %v1972
    %v2917 = vpack.c.b16 %v1989, %v1973
    %v2918 = vpack.c.b16 %v1990, %v1974
    %v2919 = vpack.c.b16 %v1991, %v1975
    %v2920 = vpack.c.b16 %v1992, %v1976
    %v2921 = vpack.c.b16 %v1993, %v1977
    %v2922 = vpack.c.b16 %v1994, %v1978
    %v2923 = vpack.c.b16 %v1995, %v1979
    %v2924 = vpack.c.b16 %v1996, %v1980
    %v2925 = vpack.c.b16 %v1997, %v1981
    %v2926 = vpack.c.b16 %v1998, %v1982
    %v2927 = vpack.c.b16 %v1999, %v1983
    %v2928 = vpack.c.b16 %v2000, %v1984
    %v2929 = vpack.c.b16 %v2001, %v1985
    %v2930 = vpack.c.b16 %v2002, %v1986
    %v2931 = vpack.c.b16 %v2003, %v1987
    %v2932 = vpack.c.b16 %v2020, %v2004
    %v2933 = vpack.c.b16 %v2021, %v2005
    %v2934 = vpack.c.b16 %v2022, %v2006
    %v2935 = vpack.c.b16 %v2023, %v2007
    %v2936 = vpack.c.b16 %v2024, %v2008
    %v2937 = vpack.c.b16 %v2025, %v2009
    %v2938 = vpack.c.b16 %v2026, %v2010
    %v2939 = vpack.c.b16 %v2027, %v2011
    %v2940 = vpack.c.b16 %v2028, %v2012
    %v2941 = vpack.c.b16 %v2029, %v2013
    %v2942 = vpack.c.b16 %v2030, %v2014
    %v2943 = vpack.c.b16 %v2031, %v2015
    %v2944 = vpack.c.b16 %v2032, %v2016
    %v2945 = vpack.c.b16 %v2033, %v2017
    %v2946 = vpack.c.b16 %v2034, %v2018
    %v2947 = vpack.c.b16 %v2035, %v2019
    %v2948 = vpack.c.b16 %v2052, %v2036
    %v2949 = vpack.c.b16 %v2053, %v2037
    %v2950 = vpack.c.b16 %v2054, %v2038
    %v2951 = vpack.c.b16 %v2055, %v2039
    %v2952 = vpack.c.b16 %v2056, %v2040
    %v2953 = vpack.c.b16 %v2057, %v2041
    %v2954 = vpack.c.b16 %v2058, %v2042
    %v2955 = vpack.c.b16 %v2059, %v2043
    %v2956 = vpack.c.b16 %v2060, %v2044
    %v2957 = vpack.c.b16 %v2061, %v2045
    %v2958 = vpack.c.b16 %v2062, %v2046
    %v2959 = vpack.c.b16 %v2063, %v2047
    %v2960 = vpack.c.b16 %v2064, %v2048
    %v2961 = vpack.c.b16 %v2065, %v2049
    %v2962 = vpack.c.b16 %v2066, %v2050
    %v2963 = vpack.c.b16 %v2067, %v2051
    %v2964 = vpack.c.b16 %v2084, %v2068
    %v2965 = vpack.c.b16 %v2085, %v2069
    %v2966 = vpack.c.b16 %v2086, %v2070
    %v2967 = vpack.c.b16 %v2087, %v2071
    %v2968 = vpack.c.b16 %v2088, %v2072
    %v2969 = vpack.c.b16 %v2089, %v2073
    %v2970 = vpack.c.b16 %v2090, %v2074
    %v2971 = vpack.c.b16 %v2091, %v2075
    %v2972 = vpack.c.b16 %v2092, %v2076
    %v2973 = vpack.c.b16 %v2093, %v2077
    %v2974 = vpack.c.b16 %v2094, %v2078
    %v2975 = vpack.c.b16 %v2095, %v2079
    %v2976 = vpack.c.b16 %v2096, %v2080
    %v2977 = vpack.c.b16 %v2097, %v2081
    %v2978 = vpack.c.b16 %v2098, %v2082
    %v2979 = vpack.c.b16 %v2099, %v2083
    %v2980 = vpack.c.b16 %v2116, %v2100
    %v2981 = vpack.c.b16 %v2117, %v2101
    %v2982 = vpack.c.b16 %v2118, %v2102
    %v2983 = vpack.c.b16 %v2119, %v2103
    %v2984 = vpack.c.b16 %v2120, %v2104
    %v2985 = vpack.c.b16 %v2121, %v2105
    %v2986 = vpack.c.b16 %v2122, %v2106
    %v2987 = vpack.c.b16 %v2123, %v2107
    %v2988 = vpack.c.b16 %v2124, %v2108
    %v2989 = vpack.c.b16 %v2125, %v2109
    %v2990 = vpack.c.b16 %v2126, %v2110
    %v2991 = vpack.c.b16 %v2127, %v2111
    %v2992 = vpack.c.b16 %v2128, %v2112
    %v2993 = vpack.c.b16 %v2129, %v2113
    %v2994 = vpack.c.b16 %v2130, %v2114
    %v2995 = vpack.c.b16 %v2131, %v2115
    %v2996 = vpack.c.b16 %v2148, %v2132
    %v2997 = vpack.c.b16 %v2149, %v2133
    %v2998 = vpack.c.b16 %v2150, %v2134
    %v2999 = vpack.c.b16 %v2151, %v2135
    %v3000 = vpack.c.b16 %v2152, %v2136
    %v3001 = vpack.c.b16 %v2153, %v2137
    %v3002 = vpack.c.b16 %v2154, %v2138
    %v3003 = vpack.c.b16 %v2155, %v2139
    %v3004 = vpack.c.b16 %v2156, %v2140
    %v3005 = vpack.c.b16 %v2157, %v2141
    %v3006 = vpack.c.b16 %v2158, %v2142
    %v3007 = vpack.c.b16 %v2159, %v2143
    %v3008 = vpack.c.b16 %v2160, %v2144
    %v3009 = vpack.c.b16 %v2161, %v2145
    %v3010 = vpack.c.b16 %v2162, %v2146
    %v3011 = vpack.c.b16 %v2163, %v2147
    %v3012 = vpack.c.b16 %v2180, %v2164
    %v3013 = vpack.c.b16 %v2181, %v2165
    %v3014 = vpack.c.b16 %v2182, %v2166
    %v3015 = vpack.c.b16 %v2183, %v2167
    %v3016 = vpack.c.b16 %v2184, %v2168
    %v3017 = vpack.c.b16 %v2185, %v2169
    %v3018 = vpack.c.b16 %v2186, %v2170
    %v3019 = vpack.c.b16 %v2187, %v2171
    %v3020 = vpack.c.b16 %v2188, %v2172
    %v3021 = vpack.c.b16 %v2189, %v2173
    %v3022 = vpack.c.b16 %v2190, %v2174
    %v3023 = vpack.c.b16 %v2191, %v2175
    %v3024 = vpack.c.b16 %v2192, %v2176
    %v3025 = vpack.c.b16 %v2193, %v2177
    %v3026 = vpack.c.b16 %v2194, %v2178
    %v3027 = vpack.c.b16 %v2195, %v2179
    %v3028 = vpack.c.b16 %v2212, %v2196
    %v3029 = vpack.c.b16 %v2213, %v2197
    %v3030 = vpack.c.b16 %v2214, %v2198
    %v3031 = vpack.c.b16 %v2215, %v2199
    %v3032 = vpack.c.b16 %v2216, %v2200
    %v3033 = vpack.c.b16 %v2217, %v2201
    %v3034 = vpack.c.b16 %v2218, %v2202
    %v3035 = vpack.c.b16 %v2219, %v2203
    %v3036 = vpack.c.b16 %v2220, %v2204
    %v3037 = vpack.c.b16 %v2221, %v2205
    %v3038 = vpack.c.b16 %v2222, %v2206
    %v3039 = vpack.c.b16 %v2223, %v2207
    %v3040 = vpack.c.b16 %v2224, %v2208
    %v3041 = vpack.c.b16 %v2225, %v2209
    %v3042 = vpack.c.b16 %v2226, %v2210
    %v3043 = vpack.c.b16 %v2227, %v2211
    %v3044 = vpack.c.b16 %v2244, %v2228
    %v3045 = vpack.c.b16 %v2245, %v2229
    %v3046 = vpack.c.b16 %v2246, %v2230
    %v3047 = vpack.c.b16 %v2247, %v2231
    %v3048 = vpack.c.b16 %v2248, %v2232
    %v3049 = vpack.c.b16 %v2249, %v2233
    %v3050 = vpack.c.b16 %v2250, %v2234
    %v3051 = vpack.c.b16 %v2251, %v2235
    %v3052 = vpack.c.b16 %v2252, %v2236
    %v3053 = vpack.c.b16 %v2253, %v2237
    %v3054 = vpack.c.b16 %v2254, %v2238
    %v3055 = vpack.c.b16 %v2255, %v2239
    %v3056 = vpack.c.b16 %v2256, %v2240
    %v3057 = vpack.c.b16 %v2257, %v2241
    %v3058 = vpack.c.b16 %v2258, %v2242
    %v3059 = vpack.c.b16 %v2259, %v2243
    %v3060 = vpack.c.b16 %v2276, %v2260
    %v3061 = vpack.c.b16 %v2277, %v2261
    %v3062 = vpack.c.b16 %v2278, %v2262
    %v3063 = vpack.c.b16 %v2279, %v2263
    %v3064 = vpack.c.b16 %v2280, %v2264
    %v3065 = vpack.c.b16 %v2281, %v2265
    %v3066 = vpack.c.b16 %v2282, %v2266
    %v3067 = vpack.c.b16 %v2283, %v2267
    %v3068 = vpack.c.b16 %v2284, %v2268
    %v3069 = vpack.c.b16 %v2285, %v2269
    %v3070 = vpack.c.b16 %v2286, %v2270
    %v3071 = vpack.c.b16 %v2287, %v2271
    %v3072 = vpack.c.b16 %v2288, %v2272
    %v3073 = vpack.c.b16 %v2289, %v2273
    %v3074 = vpack.c.b16 %v2290, %v2274
    %v3075 = vpack.c.b16 %v2291, %v2275
    %v3076 = vpack.c.b16 %v2308, %v2292
    %v3077 = vpack.c.b16 %v2309, %v2293
    %v3078 = vpack.c.b16 %v2310, %v2294
    %v3079 = vpack.c.b16 %v2311, %v2295
    %v3080 = vpack.c.b16 %v2312, %v2296
    %v3081 = vpack.c.b16 %v2313, %v2297
    %v3082 = vpack.c.b16 %v2314, %v2298
    %v3083 = vpack.c.b16 %v2315, %v2299
    %v3084 = vpack.c.b16 %v2316, %v2300
    %v3085 = vpack.c.b16 %v2317, %v2301
    %v3086 = vpack.c.b16 %v2318, %v2302
    %v3087 = vpack.c.b16 %v2319, %v2303
    %v3088 = vpack.c.b16 %v2320, %v2304
    %v3089 = vpack.c.b16 %v2321, %v2305
    %v3090 = vpack.c.b16 %v2322, %v2306
    %v3091 = vpack.c.b16 %v2323, %v2307
    %v3092 = vpack.c.b16 %v2340, %v2324
    %v3093 = vpack.c.b16 %v2341, %v2325
    %v3094 = vpack.c.b16 %v2342, %v2326
    %v3095 = vpack.c.b16 %v2343, %v2327
    %v3096 = vpack.c.b16 %v2344, %v2328
    %v3097 = vpack.c.b16 %v2345, %v2329
    %v3098 = vpack.c.b16 %v2346, %v2330
    %v3099 = vpack.c.b16 %v2347, %v2331
    %v3100 = vpack.c.b16 %v2348, %v2332
    %v3101 = vpack.c.b16 %v2349, %v2333
    %v3102 = vpack.c.b16 %v2350, %v2334
    %v3103 = vpack.c.b16 %v2351, %v2335
    %v3104 = vpack.c.b16 %v2352, %v2336
    %v3105 = vpack.c.b16 %v2353, %v2337
    %v3106 = vpack.c.b16 %v2354, %v2338
    %v3107 = vpack.c.b16 %v2355, %v2339
    %v3108 = vpack.c.b16 %v2372, %v2356
    %v3109 = vpack.c.b16 %v2373, %v2357
    %v3110 = vpack.c.b16 %v2374, %v2358
    %v3111 = vpack.c.b16 %v2375, %v2359
    %v3112 = vpack.c.b16 %v2376, %v2360
    %v3113 = vpack.c.b16 %v2377, %v2361
    %v3114 = vpack.c.b16 %v2378, %v2362
    %v3115 = vpack.c.b16 %v2379, %v2363
    %v3116 = vpack.c.b16 %v2380, %v2364
    %v3117 = vpack.c.b16 %v2381, %v2365
    %v3118 = vpack.c.b16 %v2382, %v2366
    %v3119 = vpack.c.b16 %v2383, %v2367
    %v3120 = vpack.c.b16 %v2384, %v2368
    %v3121 = vpack.c.b16 %v2385, %v2369
    %v3122 = vpack.c.b16 %v2386, %v2370
    %v3123 = vpack.c.b16 %v2387, %v2371
    %v3124 = vpack.c.b16 %v2404, %v2388
    %v3125 = vpack.c.b16 %v2405, %v2389
    %v3126 = vpack.c.b16 %v2406, %v2390
    %v3127 = vpack.c.b16 %v2407, %v2391
    %v3128 = vpack.c.b16 %v2408, %v2392
    %v3129 = vpack.c.b16 %v2409, %v2393
    %v3130 = vpack.c.b16 %v2410, %v2394
    %v3131 = vpack.c.b16 %v2411, %v2395
    %v3132 = vpack.c.b16 %v2412, %v2396
    %v3133 = vpack.c.b16 %v2413, %v2397
    %v3134 = vpack.c.b16 %v2414, %v2398
    %v3135 = vpack.c.b16 %v2415, %v2399
    %v3136 = vpack.c.b16 %v2416, %v2400
    %v3137 = vpack.c.b16 %v2417, %v2401
    %v3138 = vpack.c.b16 %v2418, %v2402
    %v3139 = vpack.c.b16 %v2419, %v2403
    %v3140 = vpack.c.b16 %v2436, %v2420
    %v3141 = vpack.c.b16 %v2437, %v2421
    %v3142 = vpack.c.b16 %v2438, %v2422
    %v3143 = vpack.c.b16 %v2439, %v2423
    %v3144 = vpack.c.b16 %v2440, %v2424
    %v3145 = vpack.c.b16 %v2441, %v2425
    %v3146 = vpack.c.b16 %v2442, %v2426
    %v3147 = vpack.c.b16 %v2443, %v2427
    %v3148 = vpack.c.b16 %v2444, %v2428
    %v3149 = vpack.c.b16 %v2445, %v2429
    %v3150 = vpack.c.b16 %v2446, %v2430
    %v3151 = vpack.c.b16 %v2447, %v2431
    %v3152 = vpack.c.b16 %v2448, %v2432
    %v3153 = vpack.c.b16 %v2449, %v2433
    %v3154 = vpack.c.b16 %v2450, %v2434
    %v3155 = vpack.c.b16 %v2451, %v2435
    %v3156 = vpack.c.b16 %v2468, %v2452
    %v3157 = vpack.c.b16 %v2469, %v2453
    %v3158 = vpack.c.b16 %v2470, %v2454
    %v3159 = vpack.c.b16 %v2471, %v2455
    %v3160 = vpack.c.b16 %v2472, %v2456
    %v3161 = vpack.c.b16 %v2473, %v2457
    %v3162 = vpack.c.b16 %v2474, %v2458
    %v3163 = vpack.c.b16 %v2475, %v2459
    %v3164 = vpack.c.b16 %v2476, %v2460
    %v3165 = vpack.c.b16 %v2477, %v2461
    %v3166 = vpack.c.b16 %v2478, %v2462
    %v3167 = vpack.c.b16 %v2479, %v2463
    %v3168 = vpack.c.b16 %v2480, %v2464
    %v3169 = vpack.c.b16 %v2481, %v2465
    %v3170 = vpack.c.b16 %v2482, %v2466
    %v3171 = vpack.c.b16 %v2483, %v2467
    %v3172 = vpack.c.b16 %v2500, %v2484
    %v3173 = vpack.c.b16 %v2501, %v2485
    %v3174 = vpack.c.b16 %v2502, %v2486
    %v3175 = vpack.c.b16 %v2503, %v2487
    %v3176 = vpack.c.b16 %v2504, %v2488
    %v3177 = vpack.c.b16 %v2505, %v2489
    %v3178 = vpack.c.b16 %v2506, %v2490
    %v3179 = vpack.c.b16 %v2507, %v2491
    %v3180 = vpack.c.b16 %v2508, %v2492
    %v3181 = vpack.c.b16 %v2509, %v2493
    %v3182 = vpack.c.b16 %v2510, %v2494
    %v3183 = vpack.c.b16 %v2511, %v2495
    %v3184 = vpack.c.b16 %v2512, %v2496
    %v3185 = vpack.c.b16 %v2513, %v2497
    %v3186 = vpack.c.b16 %v2514, %v2498
    %v3187 = vpack.c.b16 %v2515, %v2499
    %v3188 = vpack.c.b16 %v2532, %v2516
    %v3189 = vpack.c.b16 %v2533, %v2517
    %v3190 = vpack.c.b16 %v2534, %v2518
    %v3191 = vpack.c.b16 %v2535, %v2519
    %v3192 = vpack.c.b16 %v2536, %v2520
    %v3193 = vpack.c.b16 %v2537, %v2521
    %v3194 = vpack.c.b16 %v2538, %v2522
    %v3195 = vpack.c.b16 %v2539, %v2523
    %v3196 = vpack.c.b16 %v2540, %v2524
    %v3197 = vpack.c.b16 %v2541, %v2525
    %v3198 = vpack.c.b16 %v2542, %v2526
    %v3199 = vpack.c.b16 %v2543, %v2527
    %v3200 = vpack.c.b16 %v2544, %v2528
    %v3201 = vpack.c.b16 %v2545, %v2529
    %v3202 = vpack.c.b16 %v2546, %v2530
    %v3203 = vpack.c.b16 %v2547, %v2531
    %v3204 = vpack.c.b16 %v2564, %v2548
    %v3205 = vpack.c.b16 %v2565, %v2549
    %v3206 = vpack.c.b16 %v2566, %v2550
    %v3207 = vpack.c.b16 %v2567, %v2551
    %v3208 = vpack.c.b16 %v2568, %v2552
    %v3209 = vpack.c.b16 %v2569, %v2553
    %v3210 = vpack.c.b16 %v2570, %v2554
    %v3211 = vpack.c.b16 %v2571, %v2555
    %v3212 = vpack.c.b16 %v2572, %v2556
    %v3213 = vpack.c.b16 %v2573, %v2557
    %v3214 = vpack.c.b16 %v2574, %v2558
    %v3215 = vpack.c.b16 %v2575, %v2559
    %v3216 = vpack.c.b16 %v2576, %v2560
    %v3217 = vpack.c.b16 %v2577, %v2561
    %v3218 = vpack.c.b16 %v2578, %v2562
    %v3219 = vpack.c.b16 %v2579, %v2563
    %v3220 = vpack.c.b16 %v2596, %v2580
    %v3221 = vpack.c.b16 %v2597, %v2581
    %v3222 = vpack.c.b16 %v2598, %v2582
    %v3223 = vpack.c.b16 %v2599, %v2583
    %v3224 = vpack.c.b16 %v2600, %v2584
    %v3225 = vpack.c.b16 %v2601, %v2585
    %v3226 = vpack.c.b16 %v2602, %v2586
    %v3227 = vpack.c.b16 %v2603, %v2587
    %v3228 = vpack.c.b16 %v2604, %v2588
    %v3229 = vpack.c.b16 %v2605, %v2589
    %v3230 = vpack.c.b16 %v2606, %v2590
    %v3231 = vpack.c.b16 %v2607, %v2591
    %v3232 = vpack.c.b16 %v2608, %v2592
    %v3233 = vpack.c.b16 %v2609, %v2593
    %v3234 = vpack.c.b16 %v2610, %v2594
    %v3235 = vpack.c.b16 %v2611, %v2595
    %v3236 = vpack.c.b16 %v2628, %v2612
    %v3237 = vpack.c.b16 %v2629, %v2613
    %v3238 = vpack.c.b16 %v2630, %v2614
    %v3239 = vpack.c.b16 %v2631, %v2615
    %v3240 = vpack.c.b16 %v2632, %v2616
    %v3241 = vpack.c.b16 %v2633, %v2617
    %v3242 = vpack.c.b16 %v2634, %v2618
    %v3243 = vpack.c.b16 %v2635, %v2619
    %v3244 = vpack.c.b16 %v2636, %v2620
    %v3245 = vpack.c.b16 %v2637, %v2621
    %v3246 = vpack.c.b16 %v2638, %v2622
    %v3247 = vpack.c.b16 %v2639, %v2623
    %v3248 = vpack.c.b16 %v2640, %v2624
    %v3249 = vpack.c.b16 %v2641, %v2625
    %v3250 = vpack.c.b16 %v2642, %v2626
    %v3251 = vpack.c.b16 %v2643, %v2627
    %v3252 = vpack.c.b16 %v2660, %v2644
    %v3253 = vpack.c.b16 %v2661, %v2645
    %v3254 = vpack.c.b16 %v2662, %v2646
    %v3255 = vpack.c.b16 %v2663, %v2647
    %v3256 = vpack.c.b16 %v2664, %v2648
    %v3257 = vpack.c.b16 %v2665, %v2649
    %v3258 = vpack.c.b16 %v2666, %v2650
    %v3259 = vpack.c.b16 %v2667, %v2651
    %v3260 = vpack.c.b16 %v2668, %v2652
    %v3261 = vpack.c.b16 %v2669, %v2653
    %v3262 = vpack.c.b16 %v2670, %v2654
    %v3263 = vpack.c.b16 %v2671, %v2655
    %v3264 = vpack.c.b16 %v2672, %v2656
    %v3265 = vpack.c.b16 %v2673, %v2657
    %v3266 = vpack.c.b16 %v2674, %v2658
    %v3267 = vpack.c.b16 %v2675, %v2659
    %v3268 = vpack.c.b16 %v2692, %v2676
    %v3269 = vpack.c.b16 %v2693, %v2677
    %v3270 = vpack.c.b16 %v2694, %v2678
    %v3271 = vpack.c.b16 %v2695, %v2679
    %v3272 = vpack.c.b16 %v2696, %v2680
    %v3273 = vpack.c.b16 %v2697, %v2681
    %v3274 = vpack.c.b16 %v2698, %v2682
    %v3275 = vpack.c.b16 %v2699, %v2683
    %v3276 = vpack.c.b16 %v2700, %v2684
    %v3277 = vpack.c.b16 %v2701, %v2685
    %v3278 = vpack.c.b16 %v2702, %v2686
    %v3279 = vpack.c.b16 %v2703, %v2687
    %v3280 = vpack.c.b16 %v2704, %v2688
    %v3281 = vpack.c.b16 %v2705, %v2689
    %v3282 = vpack.c.b16 %v2706, %v2690
    %v3283 = vpack.c.b16 %v2707, %v2691
    %v3284 = vpack.c.b16 %v2724, %v2708
    %v3285 = vpack.c.b16 %v2725, %v2709
    %v3286 = vpack.c.b16 %v2726, %v2710
    %v3287 = vpack.c.b16 %v2727, %v2711
    %v3288 = vpack.c.b16 %v2728, %v2712
    %v3289 = vpack.c.b16 %v2729, %v2713
    %v3290 = vpack.c.b16 %v2730, %v2714
    %v3291 = vpack.c.b16 %v2731, %v2715
    %v3292 = vpack.c.b16 %v2732, %v2716
    %v3293 = vpack.c.b16 %v2733, %v2717
    %v3294 = vpack.c.b16 %v2734, %v2718
    %v3295 = vpack.c.b16 %v2735, %v2719
    %v3296 = vpack.c.b16 %v2736, %v2720
    %v3297 = vpack.c.b16 %v2737, %v2721
    %v3298 = vpack.c.b16 %v2738, %v2722
    %v3299 = vpack.c.b16 %v2739, %v2723
    %v3300 = vpack.c.b16 %v2756, %v2740
    %v3301 = vpack.c.b16 %v2757, %v2741
    %v3302 = vpack.c.b16 %v2758, %v2742
    %v3303 = vpack.c.b16 %v2759, %v2743
    %v3304 = vpack.c.b16 %v2760, %v2744
    %v3305 = vpack.c.b16 %v2761, %v2745
    %v3306 = vpack.c.b16 %v2762, %v2746
    %v3307 = vpack.c.b16 %v2763, %v2747
    %v3308 = vpack.c.b16 %v2764, %v2748
    %v3309 = vpack.c.b16 %v2765, %v2749
    %v3310 = vpack.c.b16 %v2766, %v2750
    %v3311 = vpack.c.b16 %v2767, %v2751
    %v3312 = vpack.c.b16 %v2768, %v2752
    %v3313 = vpack.c.b16 %v2769, %v2753
    %v3314 = vpack.c.b16 %v2770, %v2754
    %v3315 = vpack.c.b16 %v2771, %v2755
    %v3316 = vpack.c.b16 %v2788, %v2772
    %v3317 = vpack.c.b16 %v2789, %v2773
    %v3318 = vpack.c.b16 %v2790, %v2774
    %v3319 = vpack.c.b16 %v2791, %v2775
    %v3320 = vpack.c.b16 %v2792, %v2776
    %v3321 = vpack.c.b16 %v2793, %v2777
    %v3322 = vpack.c.b16 %v2794, %v2778
    %v3323 = vpack.c.b16 %v2795, %v2779
    %v3324 = vpack.c.b16 %v2796, %v2780
    %v3325 = vpack.c.b16 %v2797, %v2781
    %v3326 = vpack.c.b16 %v2798, %v2782
    %v3327 = vpack.c.b16 %v2799, %v2783
    %v3328 = vpack.c.b16 %v2800, %v2784
    %v3329 = vpack.c.b16 %v2801, %v2785
    %v3330 = vpack.c.b16 %v2802, %v2786
    %v3331 = vpack.c.b16 %v2803, %v2787
    %v3332 = vpack.c.b16 %v2820, %v2804
    %v3333 = vpack.c.b16 %v2821, %v2805
    %v3334 = vpack.c.b16 %v2822, %v2806
    %v3335 = vpack.c.b16 %v2823, %v2807
    %v3336 = vpack.c.b16 %v2824, %v2808
    %v3337 = vpack.c.b16 %v2825, %v2809
    %v3338 = vpack.c.b16 %v2826, %v2810
    %v3339 = vpack.c.b16 %v2827, %v2811
    %v3340 = vpack.c.b16 %v2828, %v2812
    %v3341 = vpack.c.b16 %v2829, %v2813
    %v3342 = vpack.c.b16 %v2830, %v2814
    %v3343 = vpack.c.b16 %v2831, %v2815
    %v3344 = vpack.c.b16 %v2832, %v2816
    %v3345 = vpack.c.b16 %v2833, %v2817
    %v3346 = vpack.c.b16 %v2834, %v2818
    %v3347 = vpack.c.b16 %v2835, %v2819
    %3860 = vmatprep.subr.bf16.mxu0 %v2837
    %3861 = vmatpush1.bf16.msra.mxu0 %v2836
    %3862 = vmatprep.subr.bf16.mxu0 %v2853
    %3863 = vmatpush1.bf16.msra.mxu0 %v2852
    %3864 = vmatprep.subr.bf16.mxu0 %v2869
    %3865 = vmatpush1.bf16.msra.mxu0 %v2868
    %3866 = vmatprep.subr.bf16.mxu0 %v2885
    %3867 = vmatpush1.bf16.msra.mxu0 %v2884
    %3868 = vmatprep.subr.bf16.mxu0 %v2901
    %3869 = vmatpush1.bf16.msra.mxu0 %v2900
    %3870 = vmatprep.subr.bf16.mxu0 %v2917
    %3871 = vmatpush1.bf16.msra.mxu0 %v2916
    %3872 = vmatprep.subr.bf16.mxu0 %v2933
    %3873 = vmatpush1.bf16.msra.mxu0 %v2932
    %3874 = vmatprep.subr.bf16.mxu0 %v2949
    %3875 = vmatpush1.bf16.msra.mxu0 %v2948
    %3876 = vmatprep.subr.bf16.mxu0 %v2965
    %3877 = vmatpush1.bf16.msra.mxu0 %v2964
    %3878 = vmatprep.subr.bf16.mxu0 %v2981
    %3879 = vmatpush1.bf16.msra.mxu0 %v2980
    %3880 = vmatprep.subr.bf16.mxu0 %v2997
    %3881 = vmatpush1.bf16.msra.mxu0 %v2996
    %3882 = vmatprep.subr.bf16.mxu0 %v3013
    %3883 = vmatpush1.bf16.msra.mxu0 %v3012
    %3884 = vmatprep.subr.bf16.mxu0 %v3029
    %3885 = vmatpush1.bf16.msra.mxu0 %v3028
    %3886 = vmatprep.subr.bf16.mxu0 %v3045
    %3887 = vmatpush1.bf16.msra.mxu0 %v3044
    %3888 = vmatprep.subr.bf16.mxu0 %v3061
    %3889 = vmatpush1.bf16.msra.mxu0 %v3060
    %3890 = vmatprep.subr.bf16.mxu0 %v3077
    %3891 = vmatpush1.bf16.msra.mxu0 %v3076
    %3892 = vmatprep.mubr.bf16.mxu0 %v1215
    %3893 = vmatmul.mubr.bf16.gmra.mrb[0].mxu0 %v1214
    %v3894 = vpop.f32.mrb[0].mxu0
    %v3895 = vadd.f32 %v1223, %v3894
    %v3896 = vpop.f32.mrb[0].mxu0
    %v3897 = vadd.f32 %v1227, %v3896
    %v3898 = vpop.f32.mrb[0].mxu0
    %v3899 = vadd.f32 %v1223, %v3898
    %v3900 = vpop.f32.mrb[0].mxu0
    %v3901 = vadd.f32 %v1227, %v3900
    %3902 = vdwg.mxu0
    %3903 = vmatprep.subr.bf16.mxu0 %v3093
    %3904 = vmatpush1.bf16.msra.mxu0 %v3092
    %3905 = vmatprep.subr.bf16.mxu0 %v3109
    %3906 = vmatpush1.bf16.msra.mxu0 %v3108
    %3907 = vmatprep.subr.bf16.mxu0 %v3125
    %3908 = vmatpush1.bf16.msra.mxu0 %v3124
    %3909 = vmatprep.subr.bf16.mxu0 %v3141
    %3910 = vmatpush1.bf16.msra.mxu0 %v3140
    %3911 = vmatprep.subr.bf16.mxu0 %v3157
    %3912 = vmatpush1.bf16.msra.mxu0 %v3156
    %3913 = vmatprep.subr.bf16.mxu0 %v3173
    %3914 = vmatpush1.bf16.msra.mxu0 %v3172
    %3915 = vmatprep.subr.bf16.mxu0 %v3189
    %3916 = vmatpush1.bf16.msra.mxu0 %v3188
    %3917 = vmatprep.subr.bf16.mxu0 %v3205
    %3918 = vmatpush1.bf16.msra.mxu0 %v3204
    %3919 = vmatprep.subr.bf16.mxu0 %v3221
    %3920 = vmatpush1.bf16.msra.mxu0 %v3220
    %3921 = vmatprep.subr.bf16.mxu0 %v3237
    %3922 = vmatpush1.bf16.msra.mxu0 %v3236
    %3923 = vmatprep.subr.bf16.mxu0 %v3253
    %3924 = vmatpush1.bf16.msra.mxu0 %v3252
    %3925 = vmatprep.subr.bf16.mxu0 %v3269
    %3926 = vmatpush1.bf16.msra.mxu0 %v3268
    %3927 = vmatprep.subr.bf16.mxu0 %v3285
    %3928 = vmatpush1.bf16.msra.mxu0 %v3284
    %3929 = vmatprep.subr.bf16.mxu0 %v3301
    %3930 = vmatpush1.bf16.msra.mxu0 %v3300
    %3931 = vmatprep.subr.bf16.mxu0 %v3317
    %3932 = vmatpush1.bf16.msra.mxu0 %v3316
    %3933 = vmatprep.subr.bf16.mxu0 %v3333
    %3934 = vmatpush1.bf16.msra.mxu0 %v3332
    %3935 = vmatprep.mubr.bf16.mxu0 %v1217
    %3936 = vmatmul.mubr.bf16.gmra.mrb[0].mxu0 %v1216
    %v3937 = vpop.f32.mrb[0].mxu0
    %v3938 = vadd.f32 %v3895, %v3937
    %v3939 = vpop.f32.mrb[0].mxu0
    %v3940 = vadd.f32 %v3897, %v3939
    %v3941 = vpop.f32.mrb[0].mxu0
    %v3942 = vadd.f32 %v3899, %v3941
    %v3943 = vpop.f32.mrb[0].mxu0
    %v3944 = vadd.f32 %v3901, %v3943
    %3945 = vdwg.mxu0
    %3946 = vmatprep.subr.bf16.mxu0 %v2839
    %3947 = vmatpush1.bf16.msra.mxu0 %v2838
    %3948 = vmatprep.subr.bf16.mxu0 %v2855
    %3949 = vmatpush1.bf16.msra.mxu0 %v2854
    %3950 = vmatprep.subr.bf16.mxu0 %v2871
    %3951 = vmatpush1.bf16.msra.mxu0 %v2870
    %3952 = vmatprep.subr.bf16.mxu0 %v2887
    %3953 = vmatpush1.bf16.msra.mxu0 %v2886
    %3954 = vmatprep.subr.bf16.mxu0 %v2903
    %3955 = vmatpush1.bf16.msra.mxu0 %v2902
    %3956 = vmatprep.subr.bf16.mxu0 %v2919
    %3957 = vmatpush1.bf16.msra.mxu0 %v2918
    %3958 = vmatprep.subr.bf16.mxu0 %v2935
    %3959 = vmatpush1.bf16.msra.mxu0 %v2934
    %3960 = vmatprep.subr.bf16.mxu0 %v2951
    %3961 = vmatpush1.bf16.msra.mxu0 %v2950
    %3962 = vmatprep.subr.bf16.mxu0 %v2967
    %3963 = vmatpush1.bf16.msra.mxu0 %v2966
    %3964 = vmatprep.subr.bf16.mxu0 %v2983
    %3965 = vmatpush1.bf16.msra.mxu0 %v2982
    %3966 = vmatprep.subr.bf16.mxu0 %v2999
    %3967 = vmatpush1.bf16.msra.mxu0 %v2998
    %3968 = vmatprep.subr.bf16.mxu0 %v3015
    %3969 = vmatpush1.bf16.msra.mxu0 %v3014
    %3970 = vmatprep.subr.bf16.mxu0 %v3031
    %3971 = vmatpush1.bf16.msra.mxu0 %v3030
    %3972 = vmatprep.subr.bf16.mxu0 %v3047
    %3973 = vmatpush1.bf16.msra.mxu0 %v3046
    %3974 = vmatprep.subr.bf16.mxu0 %v3063
    %3975 = vmatpush1.bf16.msra.mxu0 %v3062
    %3976 = vmatprep.subr.bf16.mxu0 %v3079
    %3977 = vmatpush1.bf16.msra.mxu0 %v3078
    %3978 = vmatprep.mubr.bf16.mxu0 %v1215
    %3979 = vmatmul.mubr.bf16.gmra.mrb[0].mxu0 %v1214
    %v3980 = vpop.f32.mrb[0].mxu0
    %v3981 = vadd.f32 %v1231, %v3980
    %v3982 = vpop.f32.mrb[0].mxu0
    %v3983 = vadd.f32 %v1235, %v3982
    %v3984 = vpop.f32.mrb[0].mxu0
    %v3985 = vadd.f32 %v1231, %v3984
    %v3986 = vpop.f32.mrb[0].mxu0
    %v3987 = vadd.f32 %v1235, %v3986
    %3988 = vdwg.mxu0
    %3989 = vmatprep.subr.bf16.mxu0 %v3095
    %3990 = vmatpush1.bf16.msra.mxu0 %v3094
    %3991 = vmatprep.subr.bf16.mxu0 %v3111
    %3992 = vmatpush1.bf16.msra.mxu0 %v3110
    %3993 = vmatprep.subr.bf16.mxu0 %v3127
    %3994 = vmatpush1.bf16.msra.mxu0 %v3126
    %3995 = vmatprep.subr.bf16.mxu0 %v3143
    %3996 = vmatpush1.bf16.msra.mxu0 %v3142
    %3997 = vmatprep.subr.bf16.mxu0 %v3159
    %3998 = vmatpush1.bf16.msra.mxu0 %v3158
    %3999 = vmatprep.subr.bf16.mxu0 %v3175
    %4000 = vmatpush1.bf16.msra.mxu0 %v3174
    %4001 = vmatprep.subr.bf16.mxu0 %v3191
    %4002 = vmatpush1.bf16.msra.mxu0 %v3190
    %4003 = vmatprep.subr.bf16.mxu0 %v3207
    %4004 = vmatpush1.bf16.msra.mxu0 %v3206
    %4005 = vmatprep.subr.bf16.mxu0 %v3223
    %4006 = vmatpush1.bf16.msra.mxu0 %v3222
    %4007 = vmatprep.subr.bf16.mxu0 %v3239
    %4008 = vmatpush1.bf16.msra.mxu0 %v3238
    %4009 = vmatprep.subr.bf16.mxu0 %v3255
    %4010 = vmatpush1.bf16.msra.mxu0 %v3254
    %4011 = vmatprep.subr.bf16.mxu0 %v3271
    %4012 = vmatpush1.bf16.msra.mxu0 %v3270
    %4013 = vmatprep.subr.bf16.mxu0 %v3287
    %4014 = vmatpush1.bf16.msra.mxu0 %v3286
    %4015 = vmatprep.subr.bf16.mxu0 %v3303
    %4016 = vmatpush1.bf16.msra.mxu0 %v3302
    %4017 = vmatprep.subr.bf16.mxu0 %v3319
    %4018 = vmatpush1.bf16.msra.mxu0 %v3318
    %4019 = vmatprep.subr.bf16.mxu0 %v3335
    %4020 = vmatpush1.bf16.msra.mxu0 %v3334
    %4021 = vmatprep.mubr.bf16.mxu0 %v1217
    %4022 = vmatmul.mubr.bf16.gmra.mrb[0].mxu0 %v1216
    %v4023 = vpop.f32.mrb[0].mxu0
    %v4024 = vadd.f32 %v3981, %v4023
    %v4025 = vpop.f32.mrb[0].mxu0
    %v4026 = vadd.f32 %v3983, %v4025
    %v4027 = vpop.f32.mrb[0].mxu0
    %v4028 = vadd.f32 %v3985, %v4027
    %v4029 = vpop.f32.mrb[0].mxu0
    %v4030 = vadd.f32 %v3987, %v4029
    %4031 = vdwg.mxu0
    %4032 = vmatprep.subr.bf16.mxu0 %v2841
    %4033 = vmatpush1.bf16.msra.mxu0 %v2840
    %4034 = vmatprep.subr.bf16.mxu0 %v2857
    %4035 = vmatpush1.bf16.msra.mxu0 %v2856
    %4036 = vmatprep.subr.bf16.mxu0 %v2873
    %4037 = vmatpush1.bf16.msra.mxu0 %v2872
    %4038 = vmatprep.subr.bf16.mxu0 %v2889
    %4039 = vmatpush1.bf16.msra.mxu0 %v2888
    %4040 = vmatprep.subr.bf16.mxu0 %v2905
    %4041 = vmatpush1.bf16.msra.mxu0 %v2904
    %4042 = vmatprep.subr.bf16.mxu0 %v2921
    %4043 = vmatpush1.bf16.msra.mxu0 %v2920
    %4044 = vmatprep.subr.bf16.mxu0 %v2937
    %4045 = vmatpush1.bf16.msra.mxu0 %v2936
    %4046 = vmatprep.subr.bf16.mxu0 %v2953
    %4047 = vmatpush1.bf16.msra.mxu0 %v2952
    %4048 = vmatprep.subr.bf16.mxu0 %v2969
    %4049 = vmatpush1.bf16.msra.mxu0 %v2968
    %4050 = vmatprep.subr.bf16.mxu0 %v2985
    %4051 = vmatpush1.bf16.msra.mxu0 %v2984
    %4052 = vmatprep.subr.bf16.mxu0 %v3001
    %4053 = vmatpush1.bf16.msra.mxu0 %v3000
    %4054 = vmatprep.subr.bf16.mxu0 %v3017
    %4055 = vmatpush1.bf16.msra.mxu0 %v3016
    %4056 = vmatprep.subr.bf16.mxu0 %v3033
    %4057 = vmatpush1.bf16.msra.mxu0 %v3032
    %4058 = vmatprep.subr.bf16.mxu0 %v3049
    %4059 = vmatpush1.bf16.msra.mxu0 %v3048
    %4060 = vmatprep.subr.bf16.mxu0 %v3065
    %4061 = vmatpush1.bf16.msra.mxu0 %v3064
    %4062 = vmatprep.subr.bf16.mxu0 %v3081
    %4063 = vmatpush1.bf16.msra.mxu0 %v3080
    %4064 = vmatprep.mubr.bf16.mxu0 %v1215
    %4065 = vmatmul.mubr.bf16.gmra.mrb[0].mxu0 %v1214
    %v4066 = vpop.f32.mrb[0].mxu0
    %v4067 = vadd.f32 %v1239, %v4066
    %v4068 = vpop.f32.mrb[0].mxu0
    %v4069 = vadd.f32 %v1243, %v4068
    %v4070 = vpop.f32.mrb[0].mxu0
    %v4071 = vadd.f32 %v1239, %v4070
    %v4072 = vpop.f32.mrb[0].mxu0
    %v4073 = vadd.f32 %v1243, %v4072
    %4074 = vdwg.mxu0
    %4075 = vmatprep.subr.bf16.mxu0 %v3097
    %4076 = vmatpush1.bf16.msra.mxu0 %v3096
    %4077 = vmatprep.subr.bf16.mxu0 %v3113
    %4078 = vmatpush1.bf16.msra.mxu0 %v3112
    %4079 = vmatprep.subr.bf16.mxu0 %v3129
    %4080 = vmatpush1.bf16.msra.mxu0 %v3128
    %4081 = vmatprep.subr.bf16.mxu0 %v3145
    %4082 = vmatpush1.bf16.msra.mxu0 %v3144
    %4083 = vmatprep.subr.bf16.mxu0 %v3161
    %4084 = vmatpush1.bf16.msra.mxu0 %v3160
    %4085 = vmatprep.subr.bf16.mxu0 %v3177
    %4086 = vmatpush1.bf16.msra.mxu0 %v3176
    %4087 = vmatprep.subr.bf16.mxu0 %v3193
    %4088 = vmatpush1.bf16.msra.mxu0 %v3192
    %4089 = vmatprep.subr.bf16.mxu0 %v3209
    %4090 = vmatpush1.bf16.msra.mxu0 %v3208
    %4091 = vmatprep.subr.bf16.mxu0 %v3225
    %4092 = vmatpush1.bf16.msra.mxu0 %v3224
    %4093 = vmatprep.subr.bf16.mxu0 %v3241
    %4094 = vmatpush1.bf16.msra.mxu0 %v3240
    %4095 = vmatprep.subr.bf16.mxu0 %v3257
    %4096 = vmatpush1.bf16.msra.mxu0 %v3256
    %4097 = vmatprep.subr.bf16.mxu0 %v3273
    %4098 = vmatpush1.bf16.msra.mxu0 %v3272
    %4099 = vmatprep.subr.bf16.mxu0 %v3289
    %4100 = vmatpush1.bf16.msra.mxu0 %v3288
    %4101 = vmatprep.subr.bf16.mxu0 %v3305
    %4102 = vmatpush1.bf16.msra.mxu0 %v3304
    %4103 = vmatprep.subr.bf16.mxu0 %v3321
    %4104 = vmatpush1.bf16.msra.mxu0 %v3320
    %4105 = vmatprep.subr.bf16.mxu0 %v3337
    %4106 = vmatpush1.bf16.msra.mxu0 %v3336
    %4107 = vmatprep.mubr.bf16.mxu0 %v1217
    %4108 = vmatmul.mubr.bf16.gmra.mrb[0].mxu0 %v1216
    %v4109 = vpop.f32.mrb[0].mxu0
    %v4110 = vadd.f32 %v4067, %v4109
    %v4111 = vpop.f32.mrb[0].mxu0
    %v4112 = vadd.f32 %v4069, %v4111
    %v4113 = vpop.f32.mrb[0].mxu0
    %v4114 = vadd.f32 %v4071, %v4113
    %v4115 = vpop.f32.mrb[0].mxu0
    %v4116 = vadd.f32 %v4073, %v4115
    %4117 = vdwg.mxu0
    %4118 = vmatprep.subr.bf16.mxu0 %v2843
    %4119 = vmatpush1.bf16.msra.mxu0 %v2842
    %4120 = vmatprep.subr.bf16.mxu0 %v2859
    %4121 = vmatpush1.bf16.msra.mxu0 %v2858
    %4122 = vmatprep.subr.bf16.mxu0 %v2875
    %4123 = vmatpush1.bf16.msra.mxu0 %v2874
    %4124 = vmatprep.subr.bf16.mxu0 %v2891
    %4125 = vmatpush1.bf16.msra.mxu0 %v2890
    %4126 = vmatprep.subr.bf16.mxu0 %v2907
    %4127 = vmatpush1.bf16.msra.mxu0 %v2906
    %4128 = vmatprep.subr.bf16.mxu0 %v2923
    %4129 = vmatpush1.bf16.msra.mxu0 %v2922
    %4130 = vmatprep.subr.bf16.mxu0 %v2939
    %4131 = vmatpush1.bf16.msra.mxu0 %v2938
    %4132 = vmatprep.subr.bf16.mxu0 %v2955
    %4133 = vmatpush1.bf16.msra.mxu0 %v2954
    %4134 = vmatprep.subr.bf16.mxu0 %v2971
    %4135 = vmatpush1.bf16.msra.mxu0 %v2970
    %4136 = vmatprep.subr.bf16.mxu0 %v2987
    %4137 = vmatpush1.bf16.msra.mxu0 %v2986
    %4138 = vmatprep.subr.bf16.mxu0 %v3003
    %4139 = vmatpush1.bf16.msra.mxu0 %v3002
    %4140 = vmatprep.subr.bf16.mxu0 %v3019
    %4141 = vmatpush1.bf16.msra.mxu0 %v3018
    %4142 = vmatprep.subr.bf16.mxu0 %v3035
    %4143 = vmatpush1.bf16.msra.mxu0 %v3034
    %4144 = vmatprep.subr.bf16.mxu0 %v3051
    %4145 = vmatpush1.bf16.msra.mxu0 %v3050
    %4146 = vmatprep.subr.bf16.mxu0 %v3067
    %4147 = vmatpush1.bf16.msra.mxu0 %v3066
    %4148 = vmatprep.subr.bf16.mxu0 %v3083
    %4149 = vmatpush1.bf16.msra.mxu0 %v3082
    %4150 = vmatprep.mubr.bf16.mxu0 %v1215
    %4151 = vmatmul.mubr.bf16.gmra.mrb[0].mxu0 %v1214
    %v4152 = vpop.f32.mrb[0].mxu0
    %v4153 = vadd.f32 %v1247, %v4152
    %v4154 = vpop.f32.mrb[0].mxu0
    %v4155 = vadd.f32 %v1251, %v4154
    %v4156 = vpop.f32.mrb[0].mxu0
    %v4157 = vadd.f32 %v1247, %v4156
    %v4158 = vpop.f32.mrb[0].mxu0
    %v4159 = vadd.f32 %v1251, %v4158
    %4160 = vdwg.mxu0
    %4161 = vmatprep.subr.bf16.mxu0 %v3099
    %4162 = vmatpush1.bf16.msra.mxu0 %v3098
    %4163 = vmatprep.subr.bf16.mxu0 %v3115
    %4164 = vmatpush1.bf16.msra.mxu0 %v3114
    %4165 = vmatprep.subr.bf16.mxu0 %v3131
    %4166 = vmatpush1.bf16.msra.mxu0 %v3130
    %4167 = vmatprep.subr.bf16.mxu0 %v3147
    %4168 = vmatpush1.bf16.msra.mxu0 %v3146
    %4169 = vmatprep.subr.bf16.mxu0 %v3163
    %4170 = vmatpush1.bf16.msra.mxu0 %v3162
    %4171 = vmatprep.subr.bf16.mxu0 %v3179
    %4172 = vmatpush1.bf16.msra.mxu0 %v3178
    %4173 = vmatprep.subr.bf16.mxu0 %v3195
    %4174 = vmatpush1.bf16.msra.mxu0 %v3194
    %4175 = vmatprep.subr.bf16.mxu0 %v3211
    %4176 = vmatpush1.bf16.msra.mxu0 %v3210
    %4177 = vmatprep.subr.bf16.mxu0 %v3227
    %4178 = vmatpush1.bf16.msra.mxu0 %v3226
    %4179 = vmatprep.subr.bf16.mxu0 %v3243
    %4180 = vmatpush1.bf16.msra.mxu0 %v3242
    %4181 = vmatprep.subr.bf16.mxu0 %v3259
    %4182 = vmatpush1.bf16.msra.mxu0 %v3258
    %4183 = vmatprep.subr.bf16.mxu0 %v3275
    %4184 = vmatpush1.bf16.msra.mxu0 %v3274
    %4185 = vmatprep.subr.bf16.mxu0 %v3291
    %4186 = vmatpush1.bf16.msra.mxu0 %v3290
    %4187 = vmatprep.subr.bf16.mxu0 %v3307
    %4188 = vmatpush1.bf16.msra.mxu0 %v3306
    %4189 = vmatprep.subr.bf16.mxu0 %v3323
    %4190 = vmatpush1.bf16.msra.mxu0 %v3322
    %4191 = vmatprep.subr.bf16.mxu0 %v3339
    %4192 = vmatpush1.bf16.msra.mxu0 %v3338
    %4193 = vmatprep.mubr.bf16.mxu0 %v1217
    %4194 = vmatmul.mubr.bf16.gmra.mrb[0].mxu0 %v1216
    %v4195 = vpop.f32.mrb[0].mxu0
    %v4196 = vadd.f32 %v4153, %v4195
    %v4197 = vpop.f32.mrb[0].mxu0
    %v4198 = vadd.f32 %v4155, %v4197
    %v4199 = vpop.f32.mrb[0].mxu0
    %v4200 = vadd.f32 %v4157, %v4199
    %v4201 = vpop.f32.mrb[0].mxu0
    %v4202 = vadd.f32 %v4159, %v4201
    %4203 = vdwg.mxu0
    %4204 = vmatprep.subr.bf16.mxu0 %v2845
    %4205 = vmatpush1.bf16.msra.mxu0 %v2844
    %4206 = vmatprep.subr.bf16.mxu0 %v2861
    %4207 = vmatpush1.bf16.msra.mxu0 %v2860
    %4208 = vmatprep.subr.bf16.mxu0 %v2877
    %4209 = vmatpush1.bf16.msra.mxu0 %v2876
    %4210 = vmatprep.subr.bf16.mxu0 %v2893
    %4211 = vmatpush1.bf16.msra.mxu0 %v2892
    %4212 = vmatprep.subr.bf16.mxu0 %v2909
    %4213 = vmatpush1.bf16.msra.mxu0 %v2908
    %4214 = vmatprep.subr.bf16.mxu0 %v2925
    %4215 = vmatpush1.bf16.msra.mxu0 %v2924
    %4216 = vmatprep.subr.bf16.mxu0 %v2941
    %4217 = vmatpush1.bf16.msra.mxu0 %v2940
    %4218 = vmatprep.subr.bf16.mxu0 %v2957
    %4219 = vmatpush1.bf16.msra.mxu0 %v2956
    %4220 = vmatprep.subr.bf16.mxu0 %v2973
    %4221 = vmatpush1.bf16.msra.mxu0 %v2972
    %4222 = vmatprep.subr.bf16.mxu0 %v2989
    %4223 = vmatpush1.bf16.msra.mxu0 %v2988
    %4224 = vmatprep.subr.bf16.mxu0 %v3005
    %4225 = vmatpush1.bf16.msra.mxu0 %v3004
    %4226 = vmatprep.subr.bf16.mxu0 %v3021
    %4227 = vmatpush1.bf16.msra.mxu0 %v3020
    %4228 = vmatprep.subr.bf16.mxu0 %v3037
    %4229 = vmatpush1.bf16.msra.mxu0 %v3036
    %4230 = vmatprep.subr.bf16.mxu0 %v3053
    %4231 = vmatpush1.bf16.msra.mxu0 %v3052
    %4232 = vmatprep.subr.bf16.mxu0 %v3069
    %4233 = vmatpush1.bf16.msra.mxu0 %v3068
    %4234 = vmatprep.subr.bf16.mxu0 %v3085
    %4235 = vmatpush1.bf16.msra.mxu0 %v3084
    %4236 = vmatprep.mubr.bf16.mxu0 %v1215
    %4237 = vmatmul.mubr.bf16.gmra.mrb[0].mxu0 %v1214
    %v4238 = vpop.f32.mrb[0].mxu0
    %v4239 = vadd.f32 %v1255, %v4238
    %v4240 = vpop.f32.mrb[0].mxu0
    %v4241 = vadd.f32 %v1259, %v4240
    %v4242 = vpop.f32.mrb[0].mxu0
    %v4243 = vadd.f32 %v1255, %v4242
    %v4244 = vpop.f32.mrb[0].mxu0
    %v4245 = vadd.f32 %v1259, %v4244
    %4246 = vdwg.mxu0
    %4247 = vmatprep.subr.bf16.mxu0 %v3101
    %4248 = vmatpush1.bf16.msra.mxu0 %v3100
    %4249 = vmatprep.subr.bf16.mxu0 %v3117
    %4250 = vmatpush1.bf16.msra.mxu0 %v3116
    %4251 = vmatprep.subr.bf16.mxu0 %v3133
    %4252 = vmatpush1.bf16.msra.mxu0 %v3132
    %4253 = vmatprep.subr.bf16.mxu0 %v3149
    %4254 = vmatpush1.bf16.msra.mxu0 %v3148
    %4255 = vmatprep.subr.bf16.mxu0 %v3165
    %4256 = vmatpush1.bf16.msra.mxu0 %v3164
    %4257 = vmatprep.subr.bf16.mxu0 %v3181
    %4258 = vmatpush1.bf16.msra.mxu0 %v3180
    %4259 = vmatprep.subr.bf16.mxu0 %v3197
    %4260 = vmatpush1.bf16.msra.mxu0 %v3196
    %4261 = vmatprep.subr.bf16.mxu0 %v3213
    %4262 = vmatpush1.bf16.msra.mxu0 %v3212
    %4263 = vmatprep.subr.bf16.mxu0 %v3229
    %4264 = vmatpush1.bf16.msra.mxu0 %v3228
    %4265 = vmatprep.subr.bf16.mxu0 %v3245
    %4266 = vmatpush1.bf16.msra.mxu0 %v3244
    %4267 = vmatprep.subr.bf16.mxu0 %v3261
    %4268 = vmatpush1.bf16.msra.mxu0 %v3260
    %4269 = vmatprep.subr.bf16.mxu0 %v3277
    %4270 = vmatpush1.bf16.msra.mxu0 %v3276
    %4271 = vmatprep.subr.bf16.mxu0 %v3293
    %4272 = vmatpush1.bf16.msra.mxu0 %v3292
    %4273 = vmatprep.subr.bf16.mxu0 %v3309
    %4274 = vmatpush1.bf16.msra.mxu0 %v3308
    %4275 = vmatprep.subr.bf16.mxu0 %v3325
    %4276 = vmatpush1.bf16.msra.mxu0 %v3324
    %4277 = vmatprep.subr.bf16.mxu0 %v3341
    %4278 = vmatpush1.bf16.msra.mxu0 %v3340
    %4279 = vmatprep.mubr.bf16.mxu0 %v1217
    %4280 = vmatmul.mubr.bf16.gmra.mrb[0].mxu0 %v1216
    %v4281 = vpop.f32.mrb[0].mxu0
    %v4282 = vadd.f32 %v4239, %v4281
    %v4283 = vpop.f32.mrb[0].mxu0
    %v4284 = vadd.f32 %v4241, %v4283
    %v4285 = vpop.f32.mrb[0].mxu0
    %v4286 = vadd.f32 %v4243, %v4285
    %v4287 = vpop.f32.mrb[0].mxu0
    %v4288 = vadd.f32 %v4245, %v4287
    %4289 = vdwg.mxu0
    %4290 = vmatprep.subr.bf16.mxu0 %v2847
    %4291 = vmatpush1.bf16.msra.mxu0 %v2846
    %4292 = vmatprep.subr.bf16.mxu0 %v2863
    %4293 = vmatpush1.bf16.msra.mxu0 %v2862
    %4294 = vmatprep.subr.bf16.mxu0 %v2879
    %4295 = vmatpush1.bf16.msra.mxu0 %v2878
    %4296 = vmatprep.subr.bf16.mxu0 %v2895
    %4297 = vmatpush1.bf16.msra.mxu0 %v2894
    %4298 = vmatprep.subr.bf16.mxu0 %v2911
    %4299 = vmatpush1.bf16.msra.mxu0 %v2910
    %4300 = vmatprep.subr.bf16.mxu0 %v2927
    %4301 = vmatpush1.bf16.msra.mxu0 %v2926
    %4302 = vmatprep.subr.bf16.mxu0 %v2943
    %4303 = vmatpush1.bf16.msra.mxu0 %v2942
    %4304 = vmatprep.subr.bf16.mxu0 %v2959
    %4305 = vmatpush1.bf16.msra.mxu0 %v2958
    %4306 = vmatprep.subr.bf16.mxu0 %v2975
    %4307 = vmatpush1.bf16.msra.mxu0 %v2974
    %4308 = vmatprep.subr.bf16.mxu0 %v2991
    %4309 = vmatpush1.bf16.msra.mxu0 %v2990
    %4310 = vmatprep.subr.bf16.mxu0 %v3007
    %4311 = vmatpush1.bf16.msra.mxu0 %v3006
    %4312 = vmatprep.subr.bf16.mxu0 %v3023
    %4313 = vmatpush1.bf16.msra.mxu0 %v3022
    %4314 = vmatprep.subr.bf16.mxu0 %v3039
    %4315 = vmatpush1.bf16.msra.mxu0 %v3038
    %4316 = vmatprep.subr.bf16.mxu0 %v3055
    %4317 = vmatpush1.bf16.msra.mxu0 %v3054
    %4318 = vmatprep.subr.bf16.mxu0 %v3071
    %4319 = vmatpush1.bf16.msra.mxu0 %v3070
    %4320 = vmatprep.subr.bf16.mxu0 %v3087
    %4321 = vmatpush1.bf16.msra.mxu0 %v3086
    %4322 = vmatprep.mubr.bf16.mxu0 %v1215
    %4323 = vmatmul.mubr.bf16.gmra.mrb[0].mxu0 %v1214
    %v4324 = vpop.f32.mrb[0].mxu0
    %v4325 = vadd.f32 %v1263, %v4324
    %v4326 = vpop.f32.mrb[0].mxu0
    %v4327 = vadd.f32 %v1267, %v4326
    %v4328 = vpop.f32.mrb[0].mxu0
    %v4329 = vadd.f32 %v1263, %v4328
    %v4330 = vpop.f32.mrb[0].mxu0
    %v4331 = vadd.f32 %v1267, %v4330
    %4332 = vdwg.mxu0
    %4333 = vmatprep.subr.bf16.mxu0 %v3103
    %4334 = vmatpush1.bf16.msra.mxu0 %v3102
    %4335 = vmatprep.subr.bf16.mxu0 %v3119
    %4336 = vmatpush1.bf16.msra.mxu0 %v3118
    %4337 = vmatprep.subr.bf16.mxu0 %v3135
    %4338 = vmatpush1.bf16.msra.mxu0 %v3134
    %4339 = vmatprep.subr.bf16.mxu0 %v3151
    %4340 = vmatpush1.bf16.msra.mxu0 %v3150
    %4341 = vmatprep.subr.bf16.mxu0 %v3167
    %4342 = vmatpush1.bf16.msra.mxu0 %v3166
    %4343 = vmatprep.subr.bf16.mxu0 %v3183
    %4344 = vmatpush1.bf16.msra.mxu0 %v3182
    %4345 = vmatprep.subr.bf16.mxu0 %v3199
    %4346 = vmatpush1.bf16.msra.mxu0 %v3198
    %4347 = vmatprep.subr.bf16.mxu0 %v3215
    %4348 = vmatpush1.bf16.msra.mxu0 %v3214
    %4349 = vmatprep.subr.bf16.mxu0 %v3231
    %4350 = vmatpush1.bf16.msra.mxu0 %v3230
    %4351 = vmatprep.subr.bf16.mxu0 %v3247
    %4352 = vmatpush1.bf16.msra.mxu0 %v3246
    %4353 = vmatprep.subr.bf16.mxu0 %v3263
    %4354 = vmatpush1.bf16.msra.mxu0 %v3262
    %4355 = vmatprep.subr.bf16.mxu0 %v3279
    %4356 = vmatpush1.bf16.msra.mxu0 %v3278
    %4357 = vmatprep.subr.bf16.mxu0 %v3295
    %4358 = vmatpush1.bf16.msra.mxu0 %v3294
    %4359 = vmatprep.subr.bf16.mxu0 %v3311
    %4360 = vmatpush1.bf16.msra.mxu0 %v3310
    %4361 = vmatprep.subr.bf16.mxu0 %v3327
    %4362 = vmatpush1.bf16.msra.mxu0 %v3326
    %4363 = vmatprep.subr.bf16.mxu0 %v3343
    %4364 = vmatpush1.bf16.msra.mxu0 %v3342
    %4365 = vmatprep.mubr.bf16.mxu0 %v1217
    %4366 = vmatmul.mubr.bf16.gmra.mrb[0].mxu0 %v1216
    %v4367 = vpop.f32.mrb[0].mxu0
    %v4368 = vadd.f32 %v4325, %v4367
    %v4369 = vpop.f32.mrb[0].mxu0
    %v4370 = vadd.f32 %v4327, %v4369
    %v4371 = vpop.f32.mrb[0].mxu0
    %v4372 = vadd.f32 %v4329, %v4371
    %v4373 = vpop.f32.mrb[0].mxu0
    %v4374 = vadd.f32 %v4331, %v4373
    %4375 = vdwg.mxu0
    %4376 = vmatprep.subr.bf16.mxu0 %v2849
    %4377 = vmatpush1.bf16.msra.mxu0 %v2848
    %4378 = vmatprep.subr.bf16.mxu0 %v2865
    %4379 = vmatpush1.bf16.msra.mxu0 %v2864
    %4380 = vmatprep.subr.bf16.mxu0 %v2881
    %4381 = vmatpush1.bf16.msra.mxu0 %v2880
    %4382 = vmatprep.subr.bf16.mxu0 %v2897
    %4383 = vmatpush1.bf16.msra.mxu0 %v2896
    %4384 = vmatprep.subr.bf16.mxu0 %v2913
    %4385 = vmatpush1.bf16.msra.mxu0 %v2912
    %4386 = vmatprep.subr.bf16.mxu0 %v2929
    %4387 = vmatpush1.bf16.msra.mxu0 %v2928
    %4388 = vmatprep.subr.bf16.mxu0 %v2945
    %4389 = vmatpush1.bf16.msra.mxu0 %v2944
    %4390 = vmatprep.subr.bf16.mxu0 %v2961
    %4391 = vmatpush1.bf16.msra.mxu0 %v2960
    %4392 = vmatprep.subr.bf16.mxu0 %v2977
    %4393 = vmatpush1.bf16.msra.mxu0 %v2976
    %4394 = vmatprep.subr.bf16.mxu0 %v2993
    %4395 = vmatpush1.bf16.msra.mxu0 %v2992
    %4396 = vmatprep.subr.bf16.mxu0 %v3009
    %4397 = vmatpush1.bf16.msra.mxu0 %v3008
    %4398 = vmatprep.subr.bf16.mxu0 %v3025
    %4399 = vmatpush1.bf16.msra.mxu0 %v3024
    %4400 = vmatprep.subr.bf16.mxu0 %v3041
    %4401 = vmatpush1.bf16.msra.mxu0 %v3040
    %4402 = vmatprep.subr.bf16.mxu0 %v3057
    %4403 = vmatpush1.bf16.msra.mxu0 %v3056
    %4404 = vmatprep.subr.bf16.mxu0 %v3073
    %4405 = vmatpush1.bf16.msra.mxu0 %v3072
    %4406 = vmatprep.subr.bf16.mxu0 %v3089
    %4407 = vmatpush1.bf16.msra.mxu0 %v3088
    %4408 = vmatprep.mubr.bf16.mxu0 %v1215
    %4409 = vmatmul.mubr.bf16.gmra.mrb[0].mxu0 %v1214
    %v4410 = vpop.f32.mrb[0].mxu0
    %v4411 = vadd.f32 %v1271, %v4410
    %v4412 = vpop.f32.mrb[0].mxu0
    %v4413 = vadd.f32 %v1275, %v4412
    %v4414 = vpop.f32.mrb[0].mxu0
    %v4415 = vadd.f32 %v1271, %v4414
    %v4416 = vpop.f32.mrb[0].mxu0
    %v4417 = vadd.f32 %v1275, %v4416
    %4418 = vdwg.mxu0
    %4419 = vmatprep.subr.bf16.mxu0 %v3105
    %4420 = vmatpush1.bf16.msra.mxu0 %v3104
    %4421 = vmatprep.subr.bf16.mxu0 %v3121
    %4422 = vmatpush1.bf16.msra.mxu0 %v3120
    %4423 = vmatprep.subr.bf16.mxu0 %v3137
    %4424 = vmatpush1.bf16.msra.mxu0 %v3136
    %4425 = vmatprep.subr.bf16.mxu0 %v3153
    %4426 = vmatpush1.bf16.msra.mxu0 %v3152
    %4427 = vmatprep.subr.bf16.mxu0 %v3169
    %4428 = vmatpush1.bf16.msra.mxu0 %v3168
    %4429 = vmatprep.subr.bf16.mxu0 %v3185
    %4430 = vmatpush1.bf16.msra.mxu0 %v3184
    %4431 = vmatprep.subr.bf16.mxu0 %v3201
    %4432 = vmatpush1.bf16.msra.mxu0 %v3200
    %4433 = vmatprep.subr.bf16.mxu0 %v3217
    %4434 = vmatpush1.bf16.msra.mxu0 %v3216
    %4435 = vmatprep.subr.bf16.mxu0 %v3233
    %4436 = vmatpush1.bf16.msra.mxu0 %v3232
    %4437 = vmatprep.subr.bf16.mxu0 %v3249
    %4438 = vmatpush1.bf16.msra.mxu0 %v3248
    %4439 = vmatprep.subr.bf16.mxu0 %v3265
    %4440 = vmatpush1.bf16.msra.mxu0 %v3264
    %4441 = vmatprep.subr.bf16.mxu0 %v3281
    %4442 = vmatpush1.bf16.msra.mxu0 %v3280
    %4443 = vmatprep.subr.bf16.mxu0 %v3297
    %4444 = vmatpush1.bf16.msra.mxu0 %v3296
    %4445 = vmatprep.subr.bf16.mxu0 %v3313
    %4446 = vmatpush1.bf16.msra.mxu0 %v3312
    %4447 = vmatprep.subr.bf16.mxu0 %v3329
    %4448 = vmatpush1.bf16.msra.mxu0 %v3328
    %4449 = vmatprep.subr.bf16.mxu0 %v3345
    %4450 = vmatpush1.bf16.msra.mxu0 %v3344
    %4451 = vmatprep.mubr.bf16.mxu0 %v1217
    %4452 = vmatmul.mubr.bf16.gmra.mrb[0].mxu0 %v1216
    %v4453 = vpop.f32.mrb[0].mxu0
    %v4454 = vadd.f32 %v4411, %v4453
    %v4455 = vpop.f32.mrb[0].mxu0
    %v4456 = vadd.f32 %v4413, %v4455
    %v4457 = vpop.f32.mrb[0].mxu0
    %v4458 = vadd.f32 %v4415, %v4457
    %v4459 = vpop.f32.mrb[0].mxu0
    %v4460 = vadd.f32 %v4417, %v4459
    %4461 = vdwg.mxu0
    %4462 = vmatprep.subr.bf16.mxu0 %v2851
    %4463 = vmatpush1.bf16.msra.mxu0 %v2850
    %4464 = vmatprep.subr.bf16.mxu0 %v2867
    %4465 = vmatpush1.bf16.msra.mxu0 %v2866
    %4466 = vmatprep.subr.bf16.mxu0 %v2883
    %4467 = vmatpush1.bf16.msra.mxu0 %v2882
    %4468 = vmatprep.subr.bf16.mxu0 %v2899
    %4469 = vmatpush1.bf16.msra.mxu0 %v2898
    %4470 = vmatprep.subr.bf16.mxu0 %v2915
    %4471 = vmatpush1.bf16.msra.mxu0 %v2914
    %4472 = vmatprep.subr.bf16.mxu0 %v2931
    %4473 = vmatpush1.bf16.msra.mxu0 %v2930
    %4474 = vmatprep.subr.bf16.mxu0 %v2947
    %4475 = vmatpush1.bf16.msra.mxu0 %v2946
    %4476 = vmatprep.subr.bf16.mxu0 %v2963
    %4477 = vmatpush1.bf16.msra.mxu0 %v2962
    %4478 = vmatprep.subr.bf16.mxu0 %v2979
    %4479 = vmatpush1.bf16.msra.mxu0 %v2978
    %4480 = vmatprep.subr.bf16.mxu0 %v2995
    %4481 = vmatpush1.bf16.msra.mxu0 %v2994
    %4482 = vmatprep.subr.bf16.mxu0 %v3011
    %4483 = vmatpush1.bf16.msra.mxu0 %v3010
    %4484 = vmatprep.subr.bf16.mxu0 %v3027
    %4485 = vmatpush1.bf16.msra.mxu0 %v3026
    %4486 = vmatprep.subr.bf16.mxu0 %v3043
    %4487 = vmatpush1.bf16.msra.mxu0 %v3042
    %4488 = vmatprep.subr.bf16.mxu0 %v3059
    %4489 = vmatpush1.bf16.msra.mxu0 %v3058
    %4490 = vmatprep.subr.bf16.mxu0 %v3075
    %4491 = vmatpush1.bf16.msra.mxu0 %v3074
    %4492 = vmatprep.subr.bf16.mxu0 %v3091
    %4493 = vmatpush1.bf16.msra.mxu0 %v3090
    %4494 = vmatprep.mubr.bf16.mxu0 %v1215
    %4495 = vmatmul.mubr.bf16.gmra.mrb[0].mxu0 %v1214
    %v4496 = vpop.f32.mrb[0].mxu0
    %v4497 = vadd.f32 %v1279, %v4496
    %v4498 = vpop.f32.mrb[0].mxu0
    %v4499 = vadd.f32 %v1283, %v4498
    %v4500 = vpop.f32.mrb[0].mxu0
    %v4501 = vadd.f32 %v1279, %v4500
    %v4502 = vpop.f32.mrb[0].mxu0
    %v4503 = vadd.f32 %v1283, %v4502
    %4504 = vdwg.mxu0
    %4505 = vmatprep.subr.bf16.mxu0 %v3107
    %4506 = vmatpush1.bf16.msra.mxu0 %v3106
    %4507 = vmatprep.subr.bf16.mxu0 %v3123
    %4508 = vmatpush1.bf16.msra.mxu0 %v3122
    %4509 = vmatprep.subr.bf16.mxu0 %v3139
    %4510 = vmatpush1.bf16.msra.mxu0 %v3138
    %4511 = vmatprep.subr.bf16.mxu0 %v3155
    %4512 = vmatpush1.bf16.msra.mxu0 %v3154
    %4513 = vmatprep.subr.bf16.mxu0 %v3171
    %4514 = vmatpush1.bf16.msra.mxu0 %v3170
    %4515 = vmatprep.subr.bf16.mxu0 %v3187
    %4516 = vmatpush1.bf16.msra.mxu0 %v3186
    %4517 = vmatprep.subr.bf16.mxu0 %v3203
    %4518 = vmatpush1.bf16.msra.mxu0 %v3202
    %4519 = vmatprep.subr.bf16.mxu0 %v3219
    %4520 = vmatpush1.bf16.msra.mxu0 %v3218
    %4521 = vmatprep.subr.bf16.mxu0 %v3235
    %4522 = vmatpush1.bf16.msra.mxu0 %v3234
    %4523 = vmatprep.subr.bf16.mxu0 %v3251
    %4524 = vmatpush1.bf16.msra.mxu0 %v3250
    %4525 = vmatprep.subr.bf16.mxu0 %v3267
    %4526 = vmatpush1.bf16.msra.mxu0 %v3266
    %4527 = vmatprep.subr.bf16.mxu0 %v3283
    %4528 = vmatpush1.bf16.msra.mxu0 %v3282
    %4529 = vmatprep.subr.bf16.mxu0 %v3299
    %4530 = vmatpush1.bf16.msra.mxu0 %v3298
    %4531 = vmatprep.subr.bf16.mxu0 %v3315
    %4532 = vmatpush1.bf16.msra.mxu0 %v3314
    %4533 = vmatprep.subr.bf16.mxu0 %v3331
    %4534 = vmatpush1.bf16.msra.mxu0 %v3330
    %4535 = vmatprep.subr.bf16.mxu0 %v3347
    %4536 = vmatpush1.bf16.msra.mxu0 %v3346
    %4537 = vmatprep.mubr.bf16.mxu0 %v1217
    %4538 = vmatmul.mubr.bf16.gmra.mrb[0].mxu0 %v1216
    %v4539 = vpop.f32.mrb[0].mxu0
    %v4540 = vadd.f32 %v4497, %v4539
    %v4541 = vpop.f32.mrb[0].mxu0
    %v4542 = vadd.f32 %v4499, %v4541
    %v4543 = vpop.f32.mrb[0].mxu0
    %v4544 = vadd.f32 %v4501, %v4543
    %v4545 = vpop.f32.mrb[0].mxu0
    %v4546 = vadd.f32 %v4503, %v4545
    %4547 = vdwg.mxu0
    %v4548 = vmul.f32 %v3938, 0.5
    %v4549 = vmul.f32 %v3940, 0.5
    %v4550 = vmul.f32 %v4024, 0.5
    %v4551 = vmul.f32 %v4026, 0.5
    %v4552 = vmul.f32 %v4110, 0.5
    %v4553 = vmul.f32 %v4112, 0.5
    %v4554 = vmul.f32 %v4196, 0.5
    %v4555 = vmul.f32 %v4198, 0.5
    %v4556 = vmul.f32 %v4282, 0.5
    %v4557 = vmul.f32 %v4284, 0.5
    %v4558 = vmul.f32 %v4368, 0.5
    %v4559 = vmul.f32 %v4370, 0.5
    %v4560 = vmul.f32 %v4454, 0.5
    %v4561 = vmul.f32 %v4456, 0.5
    %v4562 = vmul.f32 %v4540, 0.5
    %v4563 = vmul.f32 %v4542, 0.5
    %v4564 = vmul.f32 %v3942, 0.5
    %v4565 = vmul.f32 %v3944, 0.5
    %v4566 = vmul.f32 %v4028, 0.5
    %v4567 = vmul.f32 %v4030, 0.5
    %v4568 = vmul.f32 %v4114, 0.5
    %v4569 = vmul.f32 %v4116, 0.5
    %v4570 = vmul.f32 %v4200, 0.5
    %v4571 = vmul.f32 %v4202, 0.5
    %v4572 = vmul.f32 %v4286, 0.5
    %v4573 = vmul.f32 %v4288, 0.5
    %v4574 = vmul.f32 %v4372, 0.5
    %v4575 = vmul.f32 %v4374, 0.5
    %v4576 = vmul.f32 %v4458, 0.5
    %v4577 = vmul.f32 %v4460, 0.5
    %v4578 = vmul.f32 %v4544, 0.5
    %v4579 = vmul.f32 %v4546, 0.5
    %v4580 = vtanh.pop %v4548
    %v4581 = vtanh.pop %v4549
    %v4582 = vtanh.pop %v4550
    %v4583 = vtanh.pop %v4551
    %v4584 = vtanh.pop %v4552
    %v4585 = vtanh.pop %v4553
    %v4586 = vtanh.pop %v4554
    %v4587 = vtanh.pop %v4555
    %v4588 = vtanh.pop %v4556
    %v4589 = vtanh.pop %v4557
    %v4590 = vtanh.pop %v4558
    %v4591 = vtanh.pop %v4559
    %v4592 = vtanh.pop %v4560
    %v4593 = vtanh.pop %v4561
    %v4594 = vtanh.pop %v4562
    %v4595 = vtanh.pop %v4563
    %v4596 = vtanh.pop %v4564
    %v4597 = vtanh.pop %v4565
    %v4598 = vtanh.pop %v4566
    %v4599 = vtanh.pop %v4567
    %v4600 = vtanh.pop %v4568
    %v4601 = vtanh.pop %v4569
    %v4602 = vtanh.pop %v4570
    %v4603 = vtanh.pop %v4571
    %v4604 = vtanh.pop %v4572
    %v4605 = vtanh.pop %v4573
    %v4606 = vtanh.pop %v4574
    %v4607 = vtanh.pop %v4575
    %v4608 = vtanh.pop %v4576
    %v4609 = vtanh.pop %v4577
    %v4610 = vtanh.pop %v4578
    %v4611 = vtanh.pop %v4579
    %v4612 = vmul.f32 %v4580, 0.5
    %v4613 = vmul.f32 %v4581, 0.5
    %v4614 = vmul.f32 %v4582, 0.5
    %v4615 = vmul.f32 %v4583, 0.5
    %v4616 = vmul.f32 %v4584, 0.5
    %v4617 = vmul.f32 %v4585, 0.5
    %v4618 = vmul.f32 %v4586, 0.5
    %v4619 = vmul.f32 %v4587, 0.5
    %v4620 = vmul.f32 %v4588, 0.5
    %v4621 = vmul.f32 %v4589, 0.5
    %v4622 = vmul.f32 %v4590, 0.5
    %v4623 = vmul.f32 %v4591, 0.5
    %v4624 = vmul.f32 %v4592, 0.5
    %v4625 = vmul.f32 %v4593, 0.5
    %v4626 = vmul.f32 %v4594, 0.5
    %v4627 = vmul.f32 %v4595, 0.5
    %v4628 = vmul.f32 %v4596, 0.5
    %v4629 = vmul.f32 %v4597, 0.5
    %v4630 = vmul.f32 %v4598, 0.5
    %v4631 = vmul.f32 %v4599, 0.5
    %v4632 = vmul.f32 %v4600, 0.5
    %v4633 = vmul.f32 %v4601, 0.5
    %v4634 = vmul.f32 %v4602, 0.5
    %v4635 = vmul.f32 %v4603, 0.5
    %v4636 = vmul.f32 %v4604, 0.5
    %v4637 = vmul.f32 %v4605, 0.5
    %v4638 = vmul.f32 %v4606, 0.5
    %v4639 = vmul.f32 %v4607, 0.5
    %v4640 = vmul.f32 %v4608, 0.5
    %v4641 = vmul.f32 %v4609, 0.5
    %v4642 = vmul.f32 %v4610, 0.5
    %v4643 = vmul.f32 %v4611, 0.5
    %v4644 = vadd.f32 %v4612, 0.5
    %v4645 = vadd.f32 %v4613, 0.5
    %v4646 = vadd.f32 %v4614, 0.5
    %v4647 = vadd.f32 %v4615, 0.5
    %v4648 = vadd.f32 %v4616, 0.5
    %v4649 = vadd.f32 %v4617, 0.5
    %v4650 = vadd.f32 %v4618, 0.5
    %v4651 = vadd.f32 %v4619, 0.5
    %v4652 = vadd.f32 %v4620, 0.5
    %v4653 = vadd.f32 %v4621, 0.5
    %v4654 = vadd.f32 %v4622, 0.5
    %v4655 = vadd.f32 %v4623, 0.5
    %v4656 = vadd.f32 %v4624, 0.5
    %v4657 = vadd.f32 %v4625, 0.5
    %v4658 = vadd.f32 %v4626, 0.5
    %v4659 = vadd.f32 %v4627, 0.5
    %v4660 = vadd.f32 %v4628, 0.5
    %v4661 = vadd.f32 %v4629, 0.5
    %v4662 = vadd.f32 %v4630, 0.5
    %v4663 = vadd.f32 %v4631, 0.5
    %v4664 = vadd.f32 %v4632, 0.5
    %v4665 = vadd.f32 %v4633, 0.5
    %v4666 = vadd.f32 %v4634, 0.5
    %v4667 = vadd.f32 %v4635, 0.5
    %v4668 = vadd.f32 %v4636, 0.5
    %v4669 = vadd.f32 %v4637, 0.5
    %v4670 = vadd.f32 %v4638, 0.5
    %v4671 = vadd.f32 %v4639, 0.5
    %v4672 = vadd.f32 %v4640, 0.5
    %v4673 = vadd.f32 %v4641, 0.5
    %v4674 = vadd.f32 %v4642, 0.5
    %v4675 = vadd.f32 %v4643, 0.5
    %v4676 = vpack.c.bf16 %v4660, %v4644
    %v4677 = vpack.c.bf16 %v4661, %v4645
    %v4678 = vpack.c.bf16 %v4662, %v4646
    %v4679 = vpack.c.bf16 %v4663, %v4647
    %v4680 = vpack.c.bf16 %v4664, %v4648
    %v4681 = vpack.c.bf16 %v4665, %v4649
    %v4682 = vpack.c.bf16 %v4666, %v4650
    %v4683 = vpack.c.bf16 %v4667, %v4651
    %v4684 = vpack.c.bf16 %v4668, %v4652
    %v4685 = vpack.c.bf16 %v4669, %v4653
    %v4686 = vpack.c.bf16 %v4670, %v4654
    %v4687 = vpack.c.bf16 %v4671, %v4655
    %v4688 = vpack.c.bf16 %v4672, %v4656
    %v4689 = vpack.c.bf16 %v4673, %v4657
    %v4690 = vpack.c.bf16 %v4674, %v4658
    %v4691 = vpack.c.bf16 %v4675, %v4659
    %v4693 = vlaneseq
    %v4694 = vshrl.u32 %v4693, 7
    %v4695 = vsub.s32 0, %v4694
    %v4696 = vrot.slane %v906, %v4695
    %v4954 = vunpack.c.l.b16 %v647
    %v4955 = vunpack.c.l.b16 %v648
    %v4956 = vunpack.c.l.b16 %v649
    %v4957 = vunpack.c.l.b16 %v650
    %v4958 = vunpack.c.l.b16 %v651
    %v4959 = vunpack.c.l.b16 %v652
    %v4960 = vunpack.c.l.b16 %v653
    %v4961 = vunpack.c.l.b16 %v654
    %v4962 = vunpack.c.l.b16 %v655
    %v4963 = vunpack.c.l.b16 %v656
    %v4964 = vunpack.c.l.b16 %v657
    %v4965 = vunpack.c.l.b16 %v658
    %v4966 = vunpack.c.l.b16 %v659
    %v4967 = vunpack.c.l.b16 %v660
    %v4968 = vunpack.c.l.b16 %v661
    %v4969 = vunpack.c.l.b16 %v662
    %v4970 = vunpack.c.l.b16 %v663
    %v4971 = vunpack.c.l.b16 %v664
    %v4972 = vunpack.c.l.b16 %v665
    %v4973 = vunpack.c.l.b16 %v666
    %v4974 = vunpack.c.l.b16 %v667
    %v4975 = vunpack.c.l.b16 %v668
    %v4976 = vunpack.c.l.b16 %v669
    %v4977 = vunpack.c.l.b16 %v670
    %v4978 = vunpack.c.l.b16 %v671
    %v4979 = vunpack.c.l.b16 %v672
    %v4980 = vunpack.c.l.b16 %v673
    %v4981 = vunpack.c.l.b16 %v674
    %v4982 = vunpack.c.l.b16 %v675
    %v4983 = vunpack.c.l.b16 %v676
    %v4984 = vunpack.c.l.b16 %v677
    %v4985 = vunpack.c.l.b16 %v678
    %v4986 = vunpack.c.l.b16 %v679
    %v4987 = vunpack.c.l.b16 %v680
    %v4988 = vunpack.c.l.b16 %v681
    %v4989 = vunpack.c.l.b16 %v682
    %v4990 = vunpack.c.l.b16 %v683
    %v4991 = vunpack.c.l.b16 %v684
    %v4992 = vunpack.c.l.b16 %v685
    %v4993 = vunpack.c.l.b16 %v686
    %v4994 = vunpack.c.l.b16 %v687
    %v4995 = vunpack.c.l.b16 %v688
    %v4996 = vunpack.c.l.b16 %v689
    %v4997 = vunpack.c.l.b16 %v690
    %v4998 = vunpack.c.l.b16 %v691
    %v4999 = vunpack.c.l.b16 %v692
    %v5000 = vunpack.c.l.b16 %v693
    %v5001 = vunpack.c.l.b16 %v694
    %v5002 = vunpack.c.l.b16 %v695
    %v5003 = vunpack.c.l.b16 %v696
    %v5004 = vunpack.c.l.b16 %v697
    %v5005 = vunpack.c.l.b16 %v698
    %v5006 = vunpack.c.l.b16 %v699
    %v5007 = vunpack.c.l.b16 %v700
    %v5008 = vunpack.c.l.b16 %v701
    %v5009 = vunpack.c.l.b16 %v702
    %v5010 = vunpack.c.l.b16 %v703
    %v5011 = vunpack.c.l.b16 %v704
    %v5012 = vunpack.c.l.b16 %v705
    %v5013 = vunpack.c.l.b16 %v706
    %v5014 = vunpack.c.l.b16 %v707
    %v5015 = vunpack.c.l.b16 %v708
    %v5016 = vunpack.c.l.b16 %v709
    %v5017 = vunpack.c.l.b16 %v710
    %v5018 = vunpack.c.l.b16 %v711
    %v5019 = vunpack.c.l.b16 %v712
    %v5020 = vunpack.c.l.b16 %v713
    %v5021 = vunpack.c.l.b16 %v714
    %v5022 = vunpack.c.l.b16 %v715
    %v5023 = vunpack.c.l.b16 %v716
    %v5024 = vunpack.c.l.b16 %v717
    %v5025 = vunpack.c.l.b16 %v718
    %v5026 = vunpack.c.l.b16 %v719
    %v5027 = vunpack.c.l.b16 %v720
    %v5028 = vunpack.c.l.b16 %v721
    %v5029 = vunpack.c.l.b16 %v722
    %v5030 = vunpack.c.l.b16 %v723
    %v5031 = vunpack.c.l.b16 %v724
    %v5032 = vunpack.c.l.b16 %v725
    %v5033 = vunpack.c.l.b16 %v726
    %v5034 = vunpack.c.l.b16 %v727
    %v5035 = vunpack.c.l.b16 %v728
    %v5036 = vunpack.c.l.b16 %v729
    %v5037 = vunpack.c.l.b16 %v730
    %v5038 = vunpack.c.l.b16 %v731
    %v5039 = vunpack.c.l.b16 %v732
    %v5040 = vunpack.c.l.b16 %v733
    %v5041 = vunpack.c.l.b16 %v734
    %v5042 = vunpack.c.l.b16 %v735
    %v5043 = vunpack.c.l.b16 %v736
    %v5044 = vunpack.c.l.b16 %v737
    %v5045 = vunpack.c.l.b16 %v738
    %v5046 = vunpack.c.l.b16 %v739
    %v5047 = vunpack.c.l.b16 %v740
    %v5048 = vunpack.c.l.b16 %v741
    %v5049 = vunpack.c.l.b16 %v742
    %v5050 = vunpack.c.l.b16 %v743
    %v5051 = vunpack.c.l.b16 %v744
    %v5052 = vunpack.c.l.b16 %v745
    %v5053 = vunpack.c.l.b16 %v746
    %v5054 = vunpack.c.l.b16 %v747
    %v5055 = vunpack.c.l.b16 %v748
    %v5056 = vunpack.c.l.b16 %v749
    %v5057 = vunpack.c.l.b16 %v750
    %v5058 = vunpack.c.l.b16 %v751
    %v5059 = vunpack.c.l.b16 %v752
    %v5060 = vunpack.c.l.b16 %v753
    %v5061 = vunpack.c.l.b16 %v754
    %v5062 = vunpack.c.l.b16 %v755
    %v5063 = vunpack.c.l.b16 %v756
    %v5064 = vunpack.c.l.b16 %v757
    %v5065 = vunpack.c.l.b16 %v758
    %v5066 = vunpack.c.l.b16 %v759
    %v5067 = vunpack.c.l.b16 %v760
    %v5068 = vunpack.c.l.b16 %v761
    %v5069 = vunpack.c.l.b16 %v762
    %v5070 = vunpack.c.l.b16 %v763
    %v5071 = vunpack.c.l.b16 %v764
    %v5072 = vunpack.c.l.b16 %v765
    %v5073 = vunpack.c.l.b16 %v766
    %v5074 = vunpack.c.l.b16 %v767
    %v5075 = vunpack.c.l.b16 %v768
    %v5076 = vunpack.c.l.b16 %v769
    %v5077 = vunpack.c.l.b16 %v770
    %v5078 = vunpack.c.l.b16 %v771
    %v5079 = vunpack.c.l.b16 %v772
    %v5080 = vunpack.c.l.b16 %v773
    %v5081 = vunpack.c.l.b16 %v774
    %v5082 = vunpack.c.l.b16 %v775
    %v5083 = vunpack.c.l.b16 %v776
    %v5084 = vunpack.c.l.b16 %v777
    %v5085 = vunpack.c.l.b16 %v778
    %v5086 = vunpack.c.l.b16 %v779
    %v5087 = vunpack.c.l.b16 %v780
    %v5088 = vunpack.c.l.b16 %v781
    %v5089 = vunpack.c.l.b16 %v782
    %v5090 = vunpack.c.l.b16 %v783
    %v5091 = vunpack.c.l.b16 %v784
    %v5092 = vunpack.c.l.b16 %v785
    %v5093 = vunpack.c.l.b16 %v786
    %v5094 = vunpack.c.l.b16 %v787
    %v5095 = vunpack.c.l.b16 %v788
    %v5096 = vunpack.c.l.b16 %v789
    %v5097 = vunpack.c.l.b16 %v790
    %v5098 = vunpack.c.l.b16 %v791
    %v5099 = vunpack.c.l.b16 %v792
    %v5100 = vunpack.c.l.b16 %v793
    %v5101 = vunpack.c.l.b16 %v794
    %v5102 = vunpack.c.l.b16 %v795
    %v5103 = vunpack.c.l.b16 %v796
    %v5104 = vunpack.c.l.b16 %v797
    %v5105 = vunpack.c.l.b16 %v798
    %v5106 = vunpack.c.l.b16 %v799
    %v5107 = vunpack.c.l.b16 %v800
    %v5108 = vunpack.c.l.b16 %v801
    %v5109 = vunpack.c.l.b16 %v802
    %v5110 = vunpack.c.l.b16 %v803
    %v5111 = vunpack.c.l.b16 %v804
    %v5112 = vunpack.c.l.b16 %v805
    %v5113 = vunpack.c.l.b16 %v806
    %v5114 = vunpack.c.l.b16 %v807
    %v5115 = vunpack.c.l.b16 %v808
    %v5116 = vunpack.c.l.b16 %v809
    %v5117 = vunpack.c.l.b16 %v810
    %v5118 = vunpack.c.l.b16 %v811
    %v5119 = vunpack.c.l.b16 %v812
    %v5120 = vunpack.c.l.b16 %v813
    %v5121 = vunpack.c.l.b16 %v814
    %v5122 = vunpack.c.l.b16 %v815
    %v5123 = vunpack.c.l.b16 %v816
    %v5124 = vunpack.c.l.b16 %v817
    %v5125 = vunpack.c.l.b16 %v818
    %v5126 = vunpack.c.l.b16 %v819
    %v5127 = vunpack.c.l.b16 %v820
    %v5128 = vunpack.c.l.b16 %v821
    %v5129 = vunpack.c.l.b16 %v822
    %v5130 = vunpack.c.l.b16 %v823
    %v5131 = vunpack.c.l.b16 %v824
    %v5132 = vunpack.c.l.b16 %v825
    %v5133 = vunpack.c.l.b16 %v826
    %v5134 = vunpack.c.l.b16 %v827
    %v5135 = vunpack.c.l.b16 %v828
    %v5136 = vunpack.c.l.b16 %v829
    %v5137 = vunpack.c.l.b16 %v830
    %v5138 = vunpack.c.l.b16 %v831
    %v5139 = vunpack.c.l.b16 %v832
    %v5140 = vunpack.c.l.b16 %v833
    %v5141 = vunpack.c.l.b16 %v834
    %v5142 = vunpack.c.l.b16 %v835
    %v5143 = vunpack.c.l.b16 %v836
    %v5144 = vunpack.c.l.b16 %v837
    %v5145 = vunpack.c.l.b16 %v838
    %v5146 = vunpack.c.l.b16 %v839
    %v5147 = vunpack.c.l.b16 %v840
    %v5148 = vunpack.c.l.b16 %v841
    %v5149 = vunpack.c.l.b16 %v842
    %v5150 = vunpack.c.l.b16 %v843
    %v5151 = vunpack.c.l.b16 %v844
    %v5152 = vunpack.c.l.b16 %v845
    %v5153 = vunpack.c.l.b16 %v846
    %v5154 = vunpack.c.l.b16 %v847
    %v5155 = vunpack.c.l.b16 %v848
    %v5156 = vunpack.c.l.b16 %v849
    %v5157 = vunpack.c.l.b16 %v850
    %v5158 = vunpack.c.l.b16 %v851
    %v5159 = vunpack.c.l.b16 %v852
    %v5160 = vunpack.c.l.b16 %v853
    %v5161 = vunpack.c.l.b16 %v854
    %v5162 = vunpack.c.l.b16 %v855
    %v5163 = vunpack.c.l.b16 %v856
    %v5164 = vunpack.c.l.b16 %v857
    %v5165 = vunpack.c.l.b16 %v858
    %v5166 = vunpack.c.l.b16 %v859
    %v5167 = vunpack.c.l.b16 %v860
    %v5168 = vunpack.c.l.b16 %v861
    %v5169 = vunpack.c.l.b16 %v862
    %v5170 = vunpack.c.l.b16 %v863
    %v5171 = vunpack.c.l.b16 %v864
    %v5172 = vunpack.c.l.b16 %v865
    %v5173 = vunpack.c.l.b16 %v866
    %v5174 = vunpack.c.l.b16 %v867
    %v5175 = vunpack.c.l.b16 %v868
    %v5176 = vunpack.c.l.b16 %v869
    %v5177 = vunpack.c.l.b16 %v870
    %v5178 = vunpack.c.l.b16 %v871
    %v5179 = vunpack.c.l.b16 %v872
    %v5180 = vunpack.c.l.b16 %v873
    %v5181 = vunpack.c.l.b16 %v874
    %v5182 = vunpack.c.l.b16 %v875
    %v5183 = vunpack.c.l.b16 %v876
    %v5184 = vunpack.c.l.b16 %v877
    %v5185 = vunpack.c.l.b16 %v878
    %v5186 = vunpack.c.l.b16 %v879
    %v5187 = vunpack.c.l.b16 %v880
    %v5188 = vunpack.c.l.b16 %v881
    %v5189 = vunpack.c.l.b16 %v882
    %v5190 = vunpack.c.l.b16 %v883
    %v5191 = vunpack.c.l.b16 %v884
    %v5192 = vunpack.c.l.b16 %v885
    %v5193 = vunpack.c.l.b16 %v886
    %v5194 = vunpack.c.l.b16 %v887
    %v5195 = vunpack.c.l.b16 %v888
    %v5196 = vunpack.c.l.b16 %v889
    %v5197 = vunpack.c.l.b16 %v890
    %v5198 = vunpack.c.l.b16 %v891
    %v5199 = vunpack.c.l.b16 %v892
    %v5200 = vunpack.c.l.b16 %v893
    %v5201 = vunpack.c.l.b16 %v894
    %v5202 = vunpack.c.l.b16 %v895
    %v5203 = vunpack.c.l.b16 %v896
    %v5204 = vunpack.c.l.b16 %v897
    %v5205 = vunpack.c.l.b16 %v898
    %v5206 = vunpack.c.l.b16 %v899
    %v5207 = vunpack.c.l.b16 %v900
    %v5208 = vunpack.c.l.b16 %v901
    %v5209 = vunpack.c.l.b16 %v902
    %v5210 = vpack.c.b16 %v4955, %v4954
    %v5211 = vpack.c.b16 %v4957, %v4956
    %v5212 = vpack.c.b16 %v4959, %v4958
    %v5213 = vpack.c.b16 %v4961, %v4960
    %v5214 = vpack.c.b16 %v4963, %v4962
    %v5215 = vpack.c.b16 %v4965, %v4964
    %v5216 = vpack.c.b16 %v4967, %v4966
    %v5217 = vpack.c.b16 %v4969, %v4968
    %v5218 = vpack.c.b16 %v4971, %v4970
    %v5219 = vpack.c.b16 %v4973, %v4972
    %v5220 = vpack.c.b16 %v4975, %v4974
    %v5221 = vpack.c.b16 %v4977, %v4976
    %v5222 = vpack.c.b16 %v4979, %v4978
    %v5223 = vpack.c.b16 %v4981, %v4980
    %v5224 = vpack.c.b16 %v4983, %v4982
    %v5225 = vpack.c.b16 %v4985, %v4984
    %v5226 = vpack.c.b16 %v4987, %v4986
    %v5227 = vpack.c.b16 %v4989, %v4988
    %v5228 = vpack.c.b16 %v4991, %v4990
    %v5229 = vpack.c.b16 %v4993, %v4992
    %v5230 = vpack.c.b16 %v4995, %v4994
    %v5231 = vpack.c.b16 %v4997, %v4996
    %v5232 = vpack.c.b16 %v4999, %v4998
    %v5233 = vpack.c.b16 %v5001, %v5000
    %v5234 = vpack.c.b16 %v5003, %v5002
    %v5235 = vpack.c.b16 %v5005, %v5004
    %v5236 = vpack.c.b16 %v5007, %v5006
    %v5237 = vpack.c.b16 %v5009, %v5008
    %v5238 = vpack.c.b16 %v5011, %v5010
    %v5239 = vpack.c.b16 %v5013, %v5012
    %v5240 = vpack.c.b16 %v5015, %v5014
    %v5241 = vpack.c.b16 %v5017, %v5016
    %v5242 = vpack.c.b16 %v5019, %v5018
    %v5243 = vpack.c.b16 %v5021, %v5020
    %v5244 = vpack.c.b16 %v5023, %v5022
    %v5245 = vpack.c.b16 %v5025, %v5024
    %v5246 = vpack.c.b16 %v5027, %v5026
    %v5247 = vpack.c.b16 %v5029, %v5028
    %v5248 = vpack.c.b16 %v5031, %v5030
    %v5249 = vpack.c.b16 %v5033, %v5032
    %v5250 = vpack.c.b16 %v5035, %v5034
    %v5251 = vpack.c.b16 %v5037, %v5036
    %v5252 = vpack.c.b16 %v5039, %v5038
    %v5253 = vpack.c.b16 %v5041, %v5040
    %v5254 = vpack.c.b16 %v5043, %v5042
    %v5255 = vpack.c.b16 %v5045, %v5044
    %v5256 = vpack.c.b16 %v5047, %v5046
    %v5257 = vpack.c.b16 %v5049, %v5048
    %v5258 = vpack.c.b16 %v5051, %v5050
    %v5259 = vpack.c.b16 %v5053, %v5052
    %v5260 = vpack.c.b16 %v5055, %v5054
    %v5261 = vpack.c.b16 %v5057, %v5056
    %v5262 = vpack.c.b16 %v5059, %v5058
    %v5263 = vpack.c.b16 %v5061, %v5060
    %v5264 = vpack.c.b16 %v5063, %v5062
    %v5265 = vpack.c.b16 %v5065, %v5064
    %v5266 = vpack.c.b16 %v5067, %v5066
    %v5267 = vpack.c.b16 %v5069, %v5068
    %v5268 = vpack.c.b16 %v5071, %v5070
    %v5269 = vpack.c.b16 %v5073, %v5072
    %v5270 = vpack.c.b16 %v5075, %v5074
    %v5271 = vpack.c.b16 %v5077, %v5076
    %v5272 = vpack.c.b16 %v5079, %v5078
    %v5273 = vpack.c.b16 %v5081, %v5080
    %v5274 = vpack.c.b16 %v5083, %v5082
    %v5275 = vpack.c.b16 %v5085, %v5084
    %v5276 = vpack.c.b16 %v5087, %v5086
    %v5277 = vpack.c.b16 %v5089, %v5088
    %v5278 = vpack.c.b16 %v5091, %v5090
    %v5279 = vpack.c.b16 %v5093, %v5092
    %v5280 = vpack.c.b16 %v5095, %v5094
    %v5281 = vpack.c.b16 %v5097, %v5096
    %v5282 = vpack.c.b16 %v5099, %v5098
    %v5283 = vpack.c.b16 %v5101, %v5100
    %v5284 = vpack.c.b16 %v5103, %v5102
    %v5285 = vpack.c.b16 %v5105, %v5104
    %v5286 = vpack.c.b16 %v5107, %v5106
    %v5287 = vpack.c.b16 %v5109, %v5108
    %v5288 = vpack.c.b16 %v5111, %v5110
    %v5289 = vpack.c.b16 %v5113, %v5112
    %v5290 = vpack.c.b16 %v5115, %v5114
    %v5291 = vpack.c.b16 %v5117, %v5116
    %v5292 = vpack.c.b16 %v5119, %v5118
    %v5293 = vpack.c.b16 %v5121, %v5120
    %v5294 = vpack.c.b16 %v5123, %v5122
    %v5295 = vpack.c.b16 %v5125, %v5124
    %v5296 = vpack.c.b16 %v5127, %v5126
    %v5297 = vpack.c.b16 %v5129, %v5128
    %v5298 = vpack.c.b16 %v5131, %v5130
    %v5299 = vpack.c.b16 %v5133, %v5132
    %v5300 = vpack.c.b16 %v5135, %v5134
    %v5301 = vpack.c.b16 %v5137, %v5136
    %v5302 = vpack.c.b16 %v5139, %v5138
    %v5303 = vpack.c.b16 %v5141, %v5140
    %v5304 = vpack.c.b16 %v5143, %v5142
    %v5305 = vpack.c.b16 %v5145, %v5144
    %v5306 = vpack.c.b16 %v5147, %v5146
    %v5307 = vpack.c.b16 %v5149, %v5148
    %v5308 = vpack.c.b16 %v5151, %v5150
    %v5309 = vpack.c.b16 %v5153, %v5152
    %v5310 = vpack.c.b16 %v5155, %v5154
    %v5311 = vpack.c.b16 %v5157, %v5156
    %v5312 = vpack.c.b16 %v5159, %v5158
    %v5313 = vpack.c.b16 %v5161, %v5160
    %v5314 = vpack.c.b16 %v5163, %v5162
    %v5315 = vpack.c.b16 %v5165, %v5164
    %v5316 = vpack.c.b16 %v5167, %v5166
    %v5317 = vpack.c.b16 %v5169, %v5168
    %v5318 = vpack.c.b16 %v5171, %v5170
    %v5319 = vpack.c.b16 %v5173, %v5172
    %v5320 = vpack.c.b16 %v5175, %v5174
    %v5321 = vpack.c.b16 %v5177, %v5176
    %v5322 = vpack.c.b16 %v5179, %v5178
    %v5323 = vpack.c.b16 %v5181, %v5180
    %v5324 = vpack.c.b16 %v5183, %v5182
    %v5325 = vpack.c.b16 %v5185, %v5184
    %v5326 = vpack.c.b16 %v5187, %v5186
    %v5327 = vpack.c.b16 %v5189, %v5188
    %v5328 = vpack.c.b16 %v5191, %v5190
    %v5329 = vpack.c.b16 %v5193, %v5192
    %v5330 = vpack.c.b16 %v5195, %v5194
    %v5331 = vpack.c.b16 %v5197, %v5196
    %v5332 = vpack.c.b16 %v5199, %v5198
    %v5333 = vpack.c.b16 %v5201, %v5200
    %v5334 = vpack.c.b16 %v5203, %v5202
    %v5335 = vpack.c.b16 %v5205, %v5204
    %v5336 = vpack.c.b16 %v5207, %v5206
    %v5337 = vpack.c.b16 %v5209, %v5208
    %5466 = vmatprep.subr.bf16.mxu0 0
    %5467 = vmatpush1.bf16.msra.mxu0 %v5210
    %5468 = vmatprep.subr.bf16.mxu0 0
    %5469 = vmatpush1.bf16.msra.mxu0 %v5211
    %5470 = vmatprep.subr.bf16.mxu0 0
    %5471 = vmatpush1.bf16.msra.mxu0 %v5212
    %5472 = vmatprep.subr.bf16.mxu0 0
    %5473 = vmatpush1.bf16.msra.mxu0 %v5213
    %5474 = vmatprep.subr.bf16.mxu0 0
    %5475 = vmatpush1.bf16.msra.mxu0 %v5214
    %5476 = vmatprep.subr.bf16.mxu0 0
    %5477 = vmatpush1.bf16.msra.mxu0 %v5215
    %5478 = vmatprep.subr.bf16.mxu0 0
    %5479 = vmatpush1.bf16.msra.mxu0 %v5216
    %5480 = vmatprep.subr.bf16.mxu0 0
    %5481 = vmatpush1.bf16.msra.mxu0 %v5217
    %5482 = vmatprep.subr.bf16.mxu0 0
    %5483 = vmatpush1.bf16.msra.mxu0 %v5218
    %5484 = vmatprep.subr.bf16.mxu0 0
    %5485 = vmatpush1.bf16.msra.mxu0 %v5219
    %5486 = vmatprep.subr.bf16.mxu0 0
    %5487 = vmatpush1.bf16.msra.mxu0 %v5220
    %5488 = vmatprep.subr.bf16.mxu0 0
    %5489 = vmatpush1.bf16.msra.mxu0 %v5221
    %5490 = vmatprep.subr.bf16.mxu0 0
    %5491 = vmatpush1.bf16.msra.mxu0 %v5222
    %5492 = vmatprep.subr.bf16.mxu0 0
    %5493 = vmatpush1.bf16.msra.mxu0 %v5223
    %5494 = vmatprep.subr.bf16.mxu0 0
    %5495 = vmatpush1.bf16.msra.mxu0 %v5224
    %5496 = vmatprep.subr.bf16.mxu0 0
    %5497 = vmatpush1.bf16.msra.mxu0 %v5225
    %5498 = vmatprep.mubr.bf16.mxu0 %v4677
    %5499 = vmatmul.mubr.bf16.gmra.mrb[0].mxu0 %v4676
    %v5500 = vpop.f32.mrb[0].mxu0
    %v5501 = vadd.f32 %v4696, %v5500
    %v5502 = vpop.f32.mrb[0].mxu0
    %v5503 = vpop.f32.mrb[0].mxu0
    %v5504 = vadd.f32 %v4696, %v5503
    %v5505 = vpop.f32.mrb[0].mxu0
    %5506 = vdwg.mxu0
    %5507 = vmatprep.subr.bf16.mxu0 0
    %5508 = vmatpush1.bf16.msra.mxu0 %v5226
    %5509 = vmatprep.subr.bf16.mxu0 0
    %5510 = vmatpush1.bf16.msra.mxu0 %v5227
    %5511 = vmatprep.subr.bf16.mxu0 0
    %5512 = vmatpush1.bf16.msra.mxu0 %v5228
    %5513 = vmatprep.subr.bf16.mxu0 0
    %5514 = vmatpush1.bf16.msra.mxu0 %v5229
    %5515 = vmatprep.subr.bf16.mxu0 0
    %5516 = vmatpush1.bf16.msra.mxu0 %v5230
    %5517 = vmatprep.subr.bf16.mxu0 0
    %5518 = vmatpush1.bf16.msra.mxu0 %v5231
    %5519 = vmatprep.subr.bf16.mxu0 0
    %5520 = vmatpush1.bf16.msra.mxu0 %v5232
    %5521 = vmatprep.subr.bf16.mxu0 0
    %5522 = vmatpush1.bf16.msra.mxu0 %v5233
    %5523 = vmatprep.subr.bf16.mxu0 0
    %5524 = vmatpush1.bf16.msra.mxu0 %v5234
    %5525 = vmatprep.subr.bf16.mxu0 0
    %5526 = vmatpush1.bf16.msra.mxu0 %v5235
    %5527 = vmatprep.subr.bf16.mxu0 0
    %5528 = vmatpush1.bf16.msra.mxu0 %v5236
    %5529 = vmatprep.subr.bf16.mxu0 0
    %5530 = vmatpush1.bf16.msra.mxu0 %v5237
    %5531 = vmatprep.subr.bf16.mxu0 0
    %5532 = vmatpush1.bf16.msra.mxu0 %v5238
    %5533 = vmatprep.subr.bf16.mxu0 0
    %5534 = vmatpush1.bf16.msra.mxu0 %v5239
    %5535 = vmatprep.subr.bf16.mxu0 0
    %5536 = vmatpush1.bf16.msra.mxu0 %v5240
    %5537 = vmatprep.subr.bf16.mxu0 0
    %5538 = vmatpush1.bf16.msra.mxu0 %v5241
    %5539 = vmatprep.mubr.bf16.mxu0 %v4679
    %5540 = vmatmul.mubr.bf16.gmra.mrb[0].mxu0 %v4678
    %v5541 = vpop.f32.mrb[0].mxu0
    %v5542 = vadd.f32 %v5501, %v5541
    %v5543 = vpop.f32.mrb[0].mxu0
    %v5544 = vpop.f32.mrb[0].mxu0
    %v5545 = vadd.f32 %v5504, %v5544
    %v5546 = vpop.f32.mrb[0].mxu0
    %5547 = vdwg.mxu0
    %5548 = vmatprep.subr.bf16.mxu0 0
    %5549 = vmatpush1.bf16.msra.mxu0 %v5242
    %5550 = vmatprep.subr.bf16.mxu0 0
    %5551 = vmatpush1.bf16.msra.mxu0 %v5243
    %5552 = vmatprep.subr.bf16.mxu0 0
    %5553 = vmatpush1.bf16.msra.mxu0 %v5244
    %5554 = vmatprep.subr.bf16.mxu0 0
    %5555 = vmatpush1.bf16.msra.mxu0 %v5245
    %5556 = vmatprep.subr.bf16.mxu0 0
    %5557 = vmatpush1.bf16.msra.mxu0 %v5246
    %5558 = vmatprep.subr.bf16.mxu0 0
    %5559 = vmatpush1.bf16.msra.mxu0 %v5247
    %5560 = vmatprep.subr.bf16.mxu0 0
    %5561 = vmatpush1.bf16.msra.mxu0 %v5248
    %5562 = vmatprep.subr.bf16.mxu0 0
    %5563 = vmatpush1.bf16.msra.mxu0 %v5249
    %5564 = vmatprep.subr.bf16.mxu0 0
    %5565 = vmatpush1.bf16.msra.mxu0 %v5250
    %5566 = vmatprep.subr.bf16.mxu0 0
    %5567 = vmatpush1.bf16.msra.mxu0 %v5251
    %5568 = vmatprep.subr.bf16.mxu0 0
    %5569 = vmatpush1.bf16.msra.mxu0 %v5252
    %5570 = vmatprep.subr.bf16.mxu0 0
    %5571 = vmatpush1.bf16.msra.mxu0 %v5253
    %5572 = vmatprep.subr.bf16.mxu0 0
    %5573 = vmatpush1.bf16.msra.mxu0 %v5254
    %5574 = vmatprep.subr.bf16.mxu0 0
    %5575 = vmatpush1.bf16.msra.mxu0 %v5255
    %5576 = vmatprep.subr.bf16.mxu0 0
    %5577 = vmatpush1.bf16.msra.mxu0 %v5256
    %5578 = vmatprep.subr.bf16.mxu0 0
    %5579 = vmatpush1.bf16.msra.mxu0 %v5257
    %5580 = vmatprep.mubr.bf16.mxu0 %v4681
    %5581 = vmatmul.mubr.bf16.gmra.mrb[0].mxu0 %v4680
    %v5582 = vpop.f32.mrb[0].mxu0
    %v5583 = vadd.f32 %v5542, %v5582
    %v5584 = vpop.f32.mrb[0].mxu0
    %v5585 = vpop.f32.mrb[0].mxu0
    %v5586 = vadd.f32 %v5545, %v5585
    %v5587 = vpop.f32.mrb[0].mxu0
    %5588 = vdwg.mxu0
    %5589 = vmatprep.subr.bf16.mxu0 0
    %5590 = vmatpush1.bf16.msra.mxu0 %v5258
    %5591 = vmatprep.subr.bf16.mxu0 0
    %5592 = vmatpush1.bf16.msra.mxu0 %v5259
    %5593 = vmatprep.subr.bf16.mxu0 0
    %5594 = vmatpush1.bf16.msra.mxu0 %v5260
    %5595 = vmatprep.subr.bf16.mxu0 0
    %5596 = vmatpush1.bf16.msra.mxu0 %v5261
    %5597 = vmatprep.subr.bf16.mxu0 0
    %5598 = vmatpush1.bf16.msra.mxu0 %v5262
    %5599 = vmatprep.subr.bf16.mxu0 0
    %5600 = vmatpush1.bf16.msra.mxu0 %v5263
    %5601 = vmatprep.subr.bf16.mxu0 0
    %5602 = vmatpush1.bf16.msra.mxu0 %v5264
    %5603 = vmatprep.subr.bf16.mxu0 0
    %5604 = vmatpush1.bf16.msra.mxu0 %v5265
    %5605 = vmatprep.subr.bf16.mxu0 0
    %5606 = vmatpush1.bf16.msra.mxu0 %v5266
    %5607 = vmatprep.subr.bf16.mxu0 0
    %5608 = vmatpush1.bf16.msra.mxu0 %v5267
    %5609 = vmatprep.subr.bf16.mxu0 0
    %5610 = vmatpush1.bf16.msra.mxu0 %v5268
    %5611 = vmatprep.subr.bf16.mxu0 0
    %5612 = vmatpush1.bf16.msra.mxu0 %v5269
    %5613 = vmatprep.subr.bf16.mxu0 0
    %5614 = vmatpush1.bf16.msra.mxu0 %v5270
    %5615 = vmatprep.subr.bf16.mxu0 0
    %5616 = vmatpush1.bf16.msra.mxu0 %v5271
    %5617 = vmatprep.subr.bf16.mxu0 0
    %5618 = vmatpush1.bf16.msra.mxu0 %v5272
    %5619 = vmatprep.subr.bf16.mxu0 0
    %5620 = vmatpush1.bf16.msra.mxu0 %v5273
    %5621 = vmatprep.mubr.bf16.mxu0 %v4683
    %5622 = vmatmul.mubr.bf16.gmra.mrb[0].mxu0 %v4682
    %v5623 = vpop.f32.mrb[0].mxu0
    %v5624 = vadd.f32 %v5583, %v5623
    %v5625 = vpop.f32.mrb[0].mxu0
    %v5626 = vpop.f32.mrb[0].mxu0
    %v5627 = vadd.f32 %v5586, %v5626
    %v5628 = vpop.f32.mrb[0].mxu0
    %5629 = vdwg.mxu0
    %5630 = vmatprep.subr.bf16.mxu0 0
    %5631 = vmatpush1.bf16.msra.mxu0 %v5274
    %5632 = vmatprep.subr.bf16.mxu0 0
    %5633 = vmatpush1.bf16.msra.mxu0 %v5275
    %5634 = vmatprep.subr.bf16.mxu0 0
    %5635 = vmatpush1.bf16.msra.mxu0 %v5276
    %5636 = vmatprep.subr.bf16.mxu0 0
    %5637 = vmatpush1.bf16.msra.mxu0 %v5277
    %5638 = vmatprep.subr.bf16.mxu0 0
    %5639 = vmatpush1.bf16.msra.mxu0 %v5278
    %5640 = vmatprep.subr.bf16.mxu0 0
    %5641 = vmatpush1.bf16.msra.mxu0 %v5279
    %5642 = vmatprep.subr.bf16.mxu0 0
    %5643 = vmatpush1.bf16.msra.mxu0 %v5280
    %5644 = vmatprep.subr.bf16.mxu0 0
    %5645 = vmatpush1.bf16.msra.mxu0 %v5281
    %5646 = vmatprep.subr.bf16.mxu0 0
    %5647 = vmatpush1.bf16.msra.mxu0 %v5282
    %5648 = vmatprep.subr.bf16.mxu0 0
    %5649 = vmatpush1.bf16.msra.mxu0 %v5283
    %5650 = vmatprep.subr.bf16.mxu0 0
    %5651 = vmatpush1.bf16.msra.mxu0 %v5284
    %5652 = vmatprep.subr.bf16.mxu0 0
    %5653 = vmatpush1.bf16.msra.mxu0 %v5285
    %5654 = vmatprep.subr.bf16.mxu0 0
    %5655 = vmatpush1.bf16.msra.mxu0 %v5286
    %5656 = vmatprep.subr.bf16.mxu0 0
    %5657 = vmatpush1.bf16.msra.mxu0 %v5287
    %5658 = vmatprep.subr.bf16.mxu0 0
    %5659 = vmatpush1.bf16.msra.mxu0 %v5288
    %5660 = vmatprep.subr.bf16.mxu0 0
    %5661 = vmatpush1.bf16.msra.mxu0 %v5289
    %5662 = vmatprep.mubr.bf16.mxu0 %v4685
    %5663 = vmatmul.mubr.bf16.gmra.mrb[0].mxu0 %v4684
    %v5664 = vpop.f32.mrb[0].mxu0
    %v5665 = vadd.f32 %v5624, %v5664
    %v5666 = vpop.f32.mrb[0].mxu0
    %v5667 = vpop.f32.mrb[0].mxu0
    %v5668 = vadd.f32 %v5627, %v5667
    %v5669 = vpop.f32.mrb[0].mxu0
    %5670 = vdwg.mxu0
    %5671 = vmatprep.subr.bf16.mxu0 0
    %5672 = vmatpush1.bf16.msra.mxu0 %v5290
    %5673 = vmatprep.subr.bf16.mxu0 0
    %5674 = vmatpush1.bf16.msra.mxu0 %v5291
    %5675 = vmatprep.subr.bf16.mxu0 0
    %5676 = vmatpush1.bf16.msra.mxu0 %v5292
    %5677 = vmatprep.subr.bf16.mxu0 0
    %5678 = vmatpush1.bf16.msra.mxu0 %v5293
    %5679 = vmatprep.subr.bf16.mxu0 0
    %5680 = vmatpush1.bf16.msra.mxu0 %v5294
    %5681 = vmatprep.subr.bf16.mxu0 0
    %5682 = vmatpush1.bf16.msra.mxu0 %v5295
    %5683 = vmatprep.subr.bf16.mxu0 0
    %5684 = vmatpush1.bf16.msra.mxu0 %v5296
    %5685 = vmatprep.subr.bf16.mxu0 0
    %5686 = vmatpush1.bf16.msra.mxu0 %v5297
    %5687 = vmatprep.subr.bf16.mxu0 0
    %5688 = vmatpush1.bf16.msra.mxu0 %v5298
    %5689 = vmatprep.subr.bf16.mxu0 0
    %5690 = vmatpush1.bf16.msra.mxu0 %v5299
    %5691 = vmatprep.subr.bf16.mxu0 0
    %5692 = vmatpush1.bf16.msra.mxu0 %v5300
    %5693 = vmatprep.subr.bf16.mxu0 0
    %5694 = vmatpush1.bf16.msra.mxu0 %v5301
    %5695 = vmatprep.subr.bf16.mxu0 0
    %5696 = vmatpush1.bf16.msra.mxu0 %v5302
    %5697 = vmatprep.subr.bf16.mxu0 0
    %5698 = vmatpush1.bf16.msra.mxu0 %v5303
    %5699 = vmatprep.subr.bf16.mxu0 0
    %5700 = vmatpush1.bf16.msra.mxu0 %v5304
    %5701 = vmatprep.subr.bf16.mxu0 0
    %5702 = vmatpush1.bf16.msra.mxu0 %v5305
    %5703 = vmatprep.mubr.bf16.mxu0 %v4687
    %5704 = vmatmul.mubr.bf16.gmra.mrb[0].mxu0 %v4686
    %v5705 = vpop.f32.mrb[0].mxu0
    %v5706 = vadd.f32 %v5665, %v5705
    %v5707 = vpop.f32.mrb[0].mxu0
    %v5708 = vpop.f32.mrb[0].mxu0
    %v5709 = vadd.f32 %v5668, %v5708
    %v5710 = vpop.f32.mrb[0].mxu0
    %5711 = vdwg.mxu0
    %5712 = vmatprep.subr.bf16.mxu0 0
    %5713 = vmatpush1.bf16.msra.mxu0 %v5306
    %5714 = vmatprep.subr.bf16.mxu0 0
    %5715 = vmatpush1.bf16.msra.mxu0 %v5307
    %5716 = vmatprep.subr.bf16.mxu0 0
    %5717 = vmatpush1.bf16.msra.mxu0 %v5308
    %5718 = vmatprep.subr.bf16.mxu0 0
    %5719 = vmatpush1.bf16.msra.mxu0 %v5309
    %5720 = vmatprep.subr.bf16.mxu0 0
    %5721 = vmatpush1.bf16.msra.mxu0 %v5310
    %5722 = vmatprep.subr.bf16.mxu0 0
    %5723 = vmatpush1.bf16.msra.mxu0 %v5311
    %5724 = vmatprep.subr.bf16.mxu0 0
    %5725 = vmatpush1.bf16.msra.mxu0 %v5312
    %5726 = vmatprep.subr.bf16.mxu0 0
    %5727 = vmatpush1.bf16.msra.mxu0 %v5313
    %5728 = vmatprep.subr.bf16.mxu0 0
    %5729 = vmatpush1.bf16.msra.mxu0 %v5314
    %5730 = vmatprep.subr.bf16.mxu0 0
    %5731 = vmatpush1.bf16.msra.mxu0 %v5315
    %5732 = vmatprep.subr.bf16.mxu0 0
    %5733 = vmatpush1.bf16.msra.mxu0 %v5316
    %5734 = vmatprep.subr.bf16.mxu0 0
    %5735 = vmatpush1.bf16.msra.mxu0 %v5317
    %5736 = vmatprep.subr.bf16.mxu0 0
    %5737 = vmatpush1.bf16.msra.mxu0 %v5318
    %5738 = vmatprep.subr.bf16.mxu0 0
    %5739 = vmatpush1.bf16.msra.mxu0 %v5319
    %5740 = vmatprep.subr.bf16.mxu0 0
    %5741 = vmatpush1.bf16.msra.mxu0 %v5320
    %5742 = vmatprep.subr.bf16.mxu0 0
    %5743 = vmatpush1.bf16.msra.mxu0 %v5321
    %5744 = vmatprep.mubr.bf16.mxu0 %v4689
    %5745 = vmatmul.mubr.bf16.gmra.mrb[0].mxu0 %v4688
    %v5746 = vpop.f32.mrb[0].mxu0
    %v5747 = vadd.f32 %v5706, %v5746
    %v5748 = vpop.f32.mrb[0].mxu0
    %v5749 = vpop.f32.mrb[0].mxu0
    %v5750 = vadd.f32 %v5709, %v5749
    %v5751 = vpop.f32.mrb[0].mxu0
    %5752 = vdwg.mxu0
    %5753 = vmatprep.subr.bf16.mxu0 0
    %5754 = vmatpush1.bf16.msra.mxu0 %v5322
    %5755 = vmatprep.subr.bf16.mxu0 0
    %5756 = vmatpush1.bf16.msra.mxu0 %v5323
    %5757 = vmatprep.subr.bf16.mxu0 0
    %5758 = vmatpush1.bf16.msra.mxu0 %v5324
    %5759 = vmatprep.subr.bf16.mxu0 0
    %5760 = vmatpush1.bf16.msra.mxu0 %v5325
    %5761 = vmatprep.subr.bf16.mxu0 0
    %5762 = vmatpush1.bf16.msra.mxu0 %v5326
    %5763 = vmatprep.subr.bf16.mxu0 0
    %5764 = vmatpush1.bf16.msra.mxu0 %v5327
    %5765 = vmatprep.subr.bf16.mxu0 0
    %5766 = vmatpush1.bf16.msra.mxu0 %v5328
    %5767 = vmatprep.subr.bf16.mxu0 0
    %5768 = vmatpush1.bf16.msra.mxu0 %v5329
    %5769 = vmatprep.subr.bf16.mxu0 0
    %5770 = vmatpush1.bf16.msra.mxu0 %v5330
    %5771 = vmatprep.subr.bf16.mxu0 0
    %5772 = vmatpush1.bf16.msra.mxu0 %v5331
    %5773 = vmatprep.subr.bf16.mxu0 0
    %5774 = vmatpush1.bf16.msra.mxu0 %v5332
    %5775 = vmatprep.subr.bf16.mxu0 0
    %5776 = vmatpush1.bf16.msra.mxu0 %v5333
    %5777 = vmatprep.subr.bf16.mxu0 0
    %5778 = vmatpush1.bf16.msra.mxu0 %v5334
    %5779 = vmatprep.subr.bf16.mxu0 0
    %5780 = vmatpush1.bf16.msra.mxu0 %v5335
    %5781 = vmatprep.subr.bf16.mxu0 0
    %5782 = vmatpush1.bf16.msra.mxu0 %v5336
    %5783 = vmatprep.subr.bf16.mxu0 0
    %5784 = vmatpush1.bf16.msra.mxu0 %v5337
    %5785 = vmatprep.mubr.bf16.mxu0 %v4691
    %5786 = vmatmul.mubr.bf16.gmra.mrb[0].mxu0 %v4690
    %v5787 = vpop.f32.mrb[0].mxu0
    %v5788 = vadd.f32 %v5747, %v5787
    %v5789 = vpop.f32.mrb[0].mxu0
    %v5790 = vpop.f32.mrb[0].mxu0
    %v5791 = vadd.f32 %v5750, %v5790
    %v5792 = vpop.f32.mrb[0].mxu0
    %5793 = vdwg.mxu0
    %5794 = vst [vmem:[%s7] sm:$0xff] %v5788
    %5795 = vst [vmem:[%s7 + $0x8] sm:$0xff] %v5791
    // Predicated region
    $region54: #{fasttext_forward.1} parent=1 // pred_check
      _
    $region55: #{fasttext_forward.1} parent=1 // pred_check_branch
      %5797 = sbr.rel (0) target = $region57
    $region56: #{fasttext_forward.1} parent=1 // pred_region
      _
    $region57: #{fasttext_forward.1} parent=1 // pred_fallthru
      _
    // Predicated region
    $region58: #{fasttext_forward.1} parent=1 // pred_check
      _
    $region59: #{fasttext_forward.1} parent=1 // pred_check_branch
      %5799 = sbr.rel (0) target = $region61
    $region60: #{fasttext_forward.1} parent=1 // pred_region
      _
    $region61: #{fasttext_forward.1} parent=1 // pred_fallthru
      _
    %5800 = vsyncpa [#allocation3], 1
    %5801 = vsyncpa [#allocation5], 1
    %5802 = vsyncpa [#allocation8], 1
    %5803 = vsyncpa [#allocation11], 1

</llo_original>
